<compile_context>
chip_gen: v6e
topology: v6e:2x2x1
jax: 0.10.0
libtpu: 0.0.40
codegen_flags: <defaults>
</compile_context>

<pallas_src>
import functools
import math

import jax
import jax.numpy as jnp
from jax.experimental import pallas as pl
from jax.experimental.pallas import tpu as pltpu


def _round_up(n, m):
    return ((n + m - 1) // m) * m


def _cdiv(a, b):
    return (a + b - 1) // b


def _vmem_capacity_bytes():
    """Per-core VMEM capacity; conservative fallback if the query is unavailable."""
    try:
        return int(pltpu.get_tpu_info().vmem_capacity_bytes)
    except Exception:
        return 64 << 20  # v7x per-TensorCore VMEM (smallest across v5e/v6e/v7x)


def _mlp_resident_kernel(x_ref, w_ref, b_ref, o_ref, *, pads, n_layers):
    """x_ref: [TB, pads[0]] f32; w_ref: [L, P, P] (bf16/f32, VMEM-resident);
    b_ref: [8, P] f32; o_ref: [TB, pads[-1]] f32."""
    compute_dtype = w_ref.dtype
    bias = b_ref[...]                                  # hoisted single bias load
    h = x_ref[...]                                     # f32 activations
    for l in range(n_layers):                          # static unroll (6 layers)
        p_in, p_out = pads[l], pads[l + 1]
        acc = jnp.dot(h.astype(compute_dtype), w_ref[l, :p_in, :p_out],
                      preferred_element_type=jnp.float32)
        h = acc + bias[l:l + 1, :p_out]                # f32 bias add
        if l < n_layers - 1:
            h = jnp.maximum(h, 0.0)                    # ReLU on all but last layer
    o_ref[...] = h.astype(o_ref.dtype)


def _mlp_stream_kernel(x_ref, w_hbm, b_ref, o_ref, w_buf, sem, *, pads, n_layers):
    """Weights stay in HBM; per-layer [P,P] slabs are double-buffered into VMEM,
    overlapping layer l+1's DMA with layer l's matmul."""
    compute_dtype = w_buf.dtype
    pltpu.make_async_copy(w_hbm.at[0], w_buf.at[0], sem.at[0]).start()
    bias = b_ref[...]
    h = x_ref[...]
    for l in range(n_layers):                          # static unroll
        slot = l % 2
        pltpu.make_async_copy(w_hbm.at[l], w_buf.at[slot], sem.at[slot]).wait()
        if l + 1 < n_layers:
            nxt = (l + 1) % 2
            pltpu.make_async_copy(w_hbm.at[l + 1], w_buf.at[nxt], sem.at[nxt]).start()
        p_in, p_out = pads[l], pads[l + 1]
        acc = jnp.dot(h.astype(compute_dtype), w_buf[slot, :p_in, :p_out],
                      preferred_element_type=jnp.float32)
        h = acc + bias[l:l + 1, :p_out]
        if l < n_layers - 1:
            h = jnp.maximum(h, 0.0)
    o_ref[...] = h.astype(o_ref.dtype)


def model2_forward(x, params, *, param_dtype=jnp.bfloat16, tile_b=None,
                   force_stream=False):
    """x: [B, D_in] f32; params: list of (w [in, out], b [out]) per layer.

    param_dtype controls only the matmul-input dtype (weights + activation
    casts at the dot); accumulation, bias add and ReLU always run in f32.
    """
    B, D_in = x.shape
    n_layers = len(params)
    dims = [D_in] + [w.shape[1] for w, _ in params]
    D_out = dims[-1]

    # Per-layer lane-dense padded widths.  Weights are packed into one
    # [L, P, P] slab (P = max padded width) but each matmul only uses its own
    # pads[l] x pads[l+1] sub-block.  Zero padding is exact: padded bias
    # columns are 0, so padded activation columns stay 0.
    pads = tuple(_round_up(d, 128) for d in dims)
    P = max(pads)
    itemsize = jnp.dtype(param_dtype).itemsize

    # ---- pack parameters into two operands ---------------------------------
    w_pack = jnp.stack([
        jnp.pad(w.astype(param_dtype),
                ((0, P - w.shape[0]), (0, P - w.shape[1])))
        for w, _ in params])                            # [L, P, P]
    b_rows = _round_up(n_layers, 8)
    b_pack = jnp.stack([
        jnp.pad(b.reshape(-1).astype(jnp.float32), (0, P - b.shape[-1]))
        for _, b in params])                            # [L, P]
    b_pack = jnp.pad(b_pack, ((0, b_rows - n_layers), (0, 0)))  # [8, P]

    # ---- generation-aware VMEM budget ---------------------------------------
    vmem_cap = _vmem_capacity_bytes()
    usable_vmem = int(vmem_cap * 0.8)   # headroom for compiler internal scratch

    # ---- batch tiling --------------------------------------------------------
    if tile_b is None:
        base = 256 if vmem_cap <= (64 << 20) else 512   # v7x : v5e/v6e
        if B <= base:
            tile_b = _round_up(B, 8)
        else:
            # Minimize batch padding: split into the fewest ~base-sized tiles.
            tile_b = _round_up(_cdiv(B, _cdiv(B, base)), 8)
        if vmem_cap <= (64 << 20) and B > 8 and _cdiv(B, tile_b) < 2:
            # v7x: 2 TensorCores share the ("parallel",) batch axis -> keep at
            # least 2 grid steps so neither core idles.
            tile_b = _round_up(_cdiv(B, 2), 8)
    Bp = _round_up(B, tile_b)
    x_pad = jnp.pad(x, ((0, Bp - B), (0, pads[0] - D_in)))  # [Bp, pads[0]]
    grid = (Bp // tile_b,)

    # ---- VMEM need / mode selection -----------------------------------------
    w_bytes = n_layers * P * P * itemsize
    io_bytes = 2 * tile_b * (pads[0] + pads[-1]) * 4    # double-buffered x/out tiles
    bias_bytes = 2 * b_rows * P * 4
    resident_need = w_bytes + io_bytes + bias_bytes + (2 << 20)
    stream_need = 2 * P * P * itemsize + io_bytes + bias_bytes + (2 << 20)
    vmem_limit = int(min(max(resident_need, stream_need, 16 << 20), usable_vmem))

    flops = 2 * Bp * sum(pads[l] * pads[l + 1] for l in range(n_layers))

    def run(mode, single_buffer):
        const_kw = {}
        if single_buffer:
            # Weights/biases have a constant index_map -> single buffer them.
            const_kw = dict(pipeline_mode=pl.Buffered(1))
        x_spec = pl.BlockSpec((tile_b, pads[0]), lambda i: (i, 0))
        o_spec = pl.BlockSpec((tile_b, pads[-1]), lambda i: (i, 0))
        b_spec = pl.BlockSpec((b_rows, P), lambda i: (0, 0), **const_kw)
        if mode == "resident":
            kernel = functools.partial(_mlp_resident_kernel, pads=pads,
                                       n_layers=n_layers)
            w_spec = pl.BlockSpec((n_layers, P, P), lambda i: (0, 0, 0), **const_kw)
            scratch = []
            w_traffic = w_bytes                          # fetched once
        else:
            kernel = functools.partial(_mlp_stream_kernel, pads=pads,
                                       n_layers=n_layers)
            w_spec = pl.BlockSpec(memory_space=pl.ANY)   # raw HBM ref
            scratch = [pltpu.VMEM((2, P, P), param_dtype),
                       pltpu.SemaphoreType.DMA((2,))]
            w_traffic = grid[0] * w_bytes                # re-streamed per batch tile
        bytes_accessed = (Bp * pads[0] * 4 + Bp * pads[-1] * 4
                          + w_traffic + b_rows * P * 4)
        out = pl.pallas_call(
            kernel,
            out_shape=jax.ShapeDtypeStruct((Bp, pads[-1]), x.dtype),
            grid_spec=pltpu.PrefetchScalarGridSpec(
                num_scalar_prefetch=0,
                grid=grid,
                in_specs=[x_spec, w_spec, b_spec],
                out_specs=o_spec,
                scratch_shapes=scratch),
            compiler_params=pltpu.CompilerParams(
                dimension_semantics=("parallel",),
                vmem_limit_bytes=vmem_limit),
            cost_estimate=pl.CostEstimate(
                flops=flops, transcendentals=0, bytes_accessed=bytes_accessed),
        )(x_pad, w_pack, b_pack)
        return jax.block_until_ready(out)

    # Preference order: VMEM-resident weights (single- then double-buffered),
    # then per-layer weight streaming when the packed weights don't fit VMEM
    # (or if a lowering path is unavailable on this jax/libtpu version).
    attempts = []
    if not force_stream and resident_need <= usable_vmem:
        attempts += [("resident", True), ("resident", False)]
    attempts += [("stream", True), ("stream", False)]

    out = None
    last_err = None
    for mode, single in attempts:
        try:
            out = run(mode, single)
            break
        except Exception as err:    # e.g. pipeline_mode / VMEM lowering failure
            last_err = err
    if out is None:
        raise last_err

    # Strip batch / lane padding.
    return out[:B, :D_out]


def init_params(key, D_in, H, D_out, H2=None, H3=None):
    """Mirror nn.Linear's U(-1/sqrt(fan_in), 1/sqrt(fan_in)) init; w is [in, out]."""
    if H2 is None:
        H2 = H
    if H3 is None:
        H3 = H
    layer_dims = [(D_in, H), (H, H2), (H2, H3), (H3, H2), (H2, H), (H, D_out)]
    params = []
    for fan_in, fan_out in layer_dims:
        key, kw, kb = jax.random.split(key, 3)
        bound = 1.0 / math.sqrt(fan_in)
        w = jax.random.uniform(kw, (fan_in, fan_out), jnp.float32,
                               minval=-bound, maxval=bound)
        b = jax.random.uniform(kb, (fan_out,), jnp.float32,
                               minval=-bound, maxval=bound)
        params.append((w, b))
    return params


def _reference(x, params):
    h = x
    for i, (w, b) in enumerate(params):
        h = h @ w + b
        if i < len(params) - 1:
            h = jnp.maximum(h, 0.0)
    return h


if __name__ == "__main__":
    key = jax.random.PRNGKey(0)
    k_x, k_p, k_x2, k_p2 = jax.random.split(key, 4)

    # Config 1: canonical small shapes (all dims pad to 128).
    B, D_in, H, D_out = 8, 32, 32, 16
    x = jax.random.normal(k_x, (B, D_in), jnp.float32)
    params = init_params(k_p, D_in, H, D_out)
    ref = _reference(x, params)

    # Default path: bf16 MXU inputs, f32 accumulation/bias/ReLU.
    out = model2_forward(x, params)
    jax.block_until_ready(out)
    assert out.shape == (B, D_out)
    assert jnp.allclose(out, ref, atol=1e-1, rtol=1e-1)

    # f32 path: exact semantics of the PyTorch module.
    out_f32 = model2_forward(x, params, param_dtype=jnp.float32)
    jax.block_until_ready(out_f32)
    assert jnp.allclose(out_f32, ref, atol=1e-5, rtol=1e-5)

    # Forced weight-streaming path (exercises the manual double-buffer DMA).
    out_stream = model2_forward(x, params, param_dtype=jnp.float32,
                                force_stream=True)
    jax.block_until_ready(out_stream)
    assert jnp.allclose(out_stream, ref, atol=1e-5, rtol=1e-5)

    # Config 2: uneven dims exercise per-layer padded widths + batch tiling.
    B2, D_in2, Hh, D_out2 = 48, 64, 200, 40
    x2 = jax.random.normal(k_x2, (B2, D_in2), jnp.float32)
    params2 = init_params(k_p2, D_in2, Hh, D_out2, H2=72, H3=136)
    ref2 = _reference(x2, params2)
    out2 = model2_forward(x2, params2, param_dtype=jnp.float32)
    jax.block_until_ready(out2)
    assert out2.shape == (B2, D_out2)
    assert jnp.allclose(out2, ref2, atol=2e-2, rtol=2e-2)

    print("KERNEL_OK")
</pallas_src>

<mosaic_0001>
module attributes {stable_mosaic.version = 11 : i64} {
  func.func @_mlp_resident_kernel(%arg0: i32, %arg1: memref<8x128xf32, #tpu.memory_space<vmem>>, %arg2: memref<6x128x128xbf16, #tpu.memory_space<vmem>>, %arg3: memref<8x128xf32, #tpu.memory_space<vmem>>, %arg4: memref<8x128xf32, #tpu.memory_space<vmem>>) attributes {dimension_semantics = [#tpu.dimension_semantics<parallel>], iteration_bounds = array<i64: 1>, scalar_prefetch = 0 : i64, scratch_operands = 0 : i64, tpu.core_type = #tpu.core_type<tc>, window_params = [{transform_indices = @transform_0, window_bounds = array<i64: 8, 128>}, {pipeline_mode = #tpu.pipeline_mode<synchronous>, transform_indices = @transform_1, window_bounds = array<i64: 6, 128, 128>}, {pipeline_mode = #tpu.pipeline_mode<synchronous>, transform_indices = @transform_2, window_bounds = array<i64: 8, 128>}, {transform_indices = @transform_3, window_bounds = array<i64: 8, 128>}]} {
    %c0 = arith.constant 0 : index
    %c0_0 = arith.constant 0 : index
    %0 = vector.load %arg3[%c0, %c0_0] : memref<8x128xf32, #tpu.memory_space<vmem>>, vector<8x128xf32>
    %c0_1 = arith.constant 0 : index
    %c0_2 = arith.constant 0 : index
    %1 = vector.load %arg1[%c0_1, %c0_2] : memref<8x128xf32, #tpu.memory_space<vmem>>, vector<8x128xf32>
    %2 = arith.truncf %1 : vector<8x128xf32> to vector<8x128xbf16>
    %c0_3 = arith.constant 0 : index
    %c0_4 = arith.constant 0 : index
    %c0_5 = arith.constant 0 : index
    %3 = vector.load %arg2[%c0_3, %c0_4, %c0_5] : memref<6x128x128xbf16, #tpu.memory_space<vmem>>, vector<1x128x128xbf16>
    %4 = vector.shape_cast %3 : vector<1x128x128xbf16> to vector<128x128xbf16>
    %cst = arith.constant dense<0.000000e+00> : vector<8x128xf32>
    %5 = tpu.matmul %2, %4, %cst {dimension_numbers = #tpu.dot_dimension_numbers<[1], [0], [0], [1], [0, 0, 1, 1], [], []>} : vector<8x128xbf16>, vector<128x128xbf16>, vector<8x128xf32> -> vector<8x128xf32>
    %6 = vector.extract_strided_slice %0 {offsets = [0, 0], sizes = [1, 128], strides = [1, 1]} : vector<8x128xf32> to vector<1x128xf32>
    %7 = vector.broadcast %6 : vector<1x128xf32> to vector<8x128xf32>
    %8 = arith.addf %5, %7 : vector<8x128xf32>
    %cst_6 = arith.constant 0.000000e+00 : f32
    %9 = vector.broadcast %cst_6 : f32 to vector<8x128xf32>
    %10 = arith.maximumf %8, %9 : vector<8x128xf32>
    %11 = arith.truncf %10 : vector<8x128xf32> to vector<8x128xbf16>
    %c1 = arith.constant 1 : index
    %c0_7 = arith.constant 0 : index
    %c0_8 = arith.constant 0 : index
    %12 = vector.load %arg2[%c1, %c0_7, %c0_8] : memref<6x128x128xbf16, #tpu.memory_space<vmem>>, vector<1x128x128xbf16>
    %13 = vector.shape_cast %12 : vector<1x128x128xbf16> to vector<128x128xbf16>
    %cst_9 = arith.constant dense<0.000000e+00> : vector<8x128xf32>
    %14 = tpu.matmul %11, %13, %cst_9 {dimension_numbers = #tpu.dot_dimension_numbers<[1], [0], [0], [1], [0, 0, 1, 1], [], []>} : vector<8x128xbf16>, vector<128x128xbf16>, vector<8x128xf32> -> vector<8x128xf32>
    %15 = vector.extract_strided_slice %0 {offsets = [1, 0], sizes = [1, 128], strides = [1, 1]} : vector<8x128xf32> to vector<1x128xf32>
    %16 = vector.broadcast %15 : vector<1x128xf32> to vector<8x128xf32>
    %17 = arith.addf %14, %16 : vector<8x128xf32>
    %cst_10 = arith.constant 0.000000e+00 : f32
    %18 = vector.broadcast %cst_10 : f32 to vector<8x128xf32>
    %19 = arith.maximumf %17, %18 : vector<8x128xf32>
    %20 = arith.truncf %19 : vector<8x128xf32> to vector<8x128xbf16>
    %c2 = arith.constant 2 : index
    %c0_11 = arith.constant 0 : index
    %c0_12 = arith.constant 0 : index
    %21 = vector.load %arg2[%c2, %c0_11, %c0_12] : memref<6x128x128xbf16, #tpu.memory_space<vmem>>, vector<1x128x128xbf16>
    %22 = vector.shape_cast %21 : vector<1x128x128xbf16> to vector<128x128xbf16>
    %cst_13 = arith.constant dense<0.000000e+00> : vector<8x128xf32>
    %23 = tpu.matmul %20, %22, %cst_13 {dimension_numbers = #tpu.dot_dimension_numbers<[1], [0], [0], [1], [0, 0, 1, 1], [], []>} : vector<8x128xbf16>, vector<128x128xbf16>, vector<8x128xf32> -> vector<8x128xf32>
    %24 = vector.extract_strided_slice %0 {offsets = [2, 0], sizes = [1, 128], strides = [1, 1]} : vector<8x128xf32> to vector<1x128xf32>
    %25 = vector.broadcast %24 : vector<1x128xf32> to vector<8x128xf32>
    %26 = arith.addf %23, %25 : vector<8x128xf32>
    %cst_14 = arith.constant 0.000000e+00 : f32
    %27 = vector.broadcast %cst_14 : f32 to vector<8x128xf32>
    %28 = arith.maximumf %26, %27 : vector<8x128xf32>
    %29 = arith.truncf %28 : vector<8x128xf32> to vector<8x128xbf16>
    %c3 = arith.constant 3 : index
    %c0_15 = arith.constant 0 : index
    %c0_16 = arith.constant 0 : index
    %30 = vector.load %arg2[%c3, %c0_15, %c0_16] : memref<6x128x128xbf16, #tpu.memory_space<vmem>>, vector<1x128x128xbf16>
    %31 = vector.shape_cast %30 : vector<1x128x128xbf16> to vector<128x128xbf16>
    %cst_17 = arith.constant dense<0.000000e+00> : vector<8x128xf32>
    %32 = tpu.matmul %29, %31, %cst_17 {dimension_numbers = #tpu.dot_dimension_numbers<[1], [0], [0], [1], [0, 0, 1, 1], [], []>} : vector<8x128xbf16>, vector<128x128xbf16>, vector<8x128xf32> -> vector<8x128xf32>
    %33 = vector.extract_strided_slice %0 {offsets = [3, 0], sizes = [1, 128], strides = [1, 1]} : vector<8x128xf32> to vector<1x128xf32>
    %34 = vector.broadcast %33 : vector<1x128xf32> to vector<8x128xf32>
    %35 = arith.addf %32, %34 : vector<8x128xf32>
    %cst_18 = arith.constant 0.000000e+00 : f32
    %36 = vector.broadcast %cst_18 : f32 to vector<8x128xf32>
    %37 = arith.maximumf %35, %36 : vector<8x128xf32>
    %38 = arith.truncf %37 : vector<8x128xf32> to vector<8x128xbf16>
    %c4 = arith.constant 4 : index
    %c0_19 = arith.constant 0 : index
    %c0_20 = arith.constant 0 : index
    %39 = vector.load %arg2[%c4, %c0_19, %c0_20] : memref<6x128x128xbf16, #tpu.memory_space<vmem>>, vector<1x128x128xbf16>
    %40 = vector.shape_cast %39 : vector<1x128x128xbf16> to vector<128x128xbf16>
    %cst_21 = arith.constant dense<0.000000e+00> : vector<8x128xf32>
    %41 = tpu.matmul %38, %40, %cst_21 {dimension_numbers = #tpu.dot_dimension_numbers<[1], [0], [0], [1], [0, 0, 1, 1], [], []>} : vector<8x128xbf16>, vector<128x128xbf16>, vector<8x128xf32> -> vector<8x128xf32>
    %42 = vector.extract_strided_slice %0 {offsets = [4, 0], sizes = [1, 128], strides = [1, 1]} : vector<8x128xf32> to vector<1x128xf32>
    %43 = vector.broadcast %42 : vector<1x128xf32> to vector<8x128xf32>
    %44 = arith.addf %41, %43 : vector<8x128xf32>
    %cst_22 = arith.constant 0.000000e+00 : f32
    %45 = vector.broadcast %cst_22 : f32 to vector<8x128xf32>
    %46 = arith.maximumf %44, %45 : vector<8x128xf32>
    %47 = arith.truncf %46 : vector<8x128xf32> to vector<8x128xbf16>
    %c5 = arith.constant 5 : index
    %c0_23 = arith.constant 0 : index
    %c0_24 = arith.constant 0 : index
    %48 = vector.load %arg2[%c5, %c0_23, %c0_24] : memref<6x128x128xbf16, #tpu.memory_space<vmem>>, vector<1x128x128xbf16>
    %49 = vector.shape_cast %48 : vector<1x128x128xbf16> to vector<128x128xbf16>
    %cst_25 = arith.constant dense<0.000000e+00> : vector<8x128xf32>
    %50 = tpu.matmul %47, %49, %cst_25 {dimension_numbers = #tpu.dot_dimension_numbers<[1], [0], [0], [1], [0, 0, 1, 1], [], []>} : vector<8x128xbf16>, vector<128x128xbf16>, vector<8x128xf32> -> vector<8x128xf32>
    %51 = vector.extract_strided_slice %0 {offsets = [5, 0], sizes = [1, 128], strides = [1, 1]} : vector<8x128xf32> to vector<1x128xf32>
    %52 = vector.broadcast %51 : vector<1x128xf32> to vector<8x128xf32>
    %53 = arith.addf %50, %52 : vector<8x128xf32>
    %c0_26 = arith.constant 0 : index
    %c0_27 = arith.constant 0 : index
    %54 = vector.load %arg4[%c0_26, %c0_27] : memref<8x128xf32, #tpu.memory_space<vmem>>, vector<8x128xf32>
    tpu.vector_store %arg4[%c0_26, %c0_27], %53 {strides = array<i32>} : memref<8x128xf32, #tpu.memory_space<vmem>>, vector<8x128xf32>,
    return
  }
  func.func @transform_0(%arg0: i32) -> (i32, i32) {
    %c0_i32 = arith.constant 0 : i32
    %c0_i32_0 = arith.constant 0 : i32
    return %arg0, %c0_i32 : i32, i32
  }
  func.func @transform_1(%arg0: i32) -> (i32, i32, i32) {
    %c0_i32 = arith.constant 0 : i32
    %c0_i32_0 = arith.constant 0 : i32
    %c0_i32_1 = arith.constant 0 : i32
    %c0_i32_2 = arith.constant 0 : i32
    return %c0_i32, %c0_i32_0, %c0_i32_1 : i32, i32, i32
  }
  func.func @transform_2(%arg0: i32) -> (i32, i32) {
    %c0_i32 = arith.constant 0 : i32
    %c0_i32_0 = arith.constant 0 : i32
    %c0_i32_1 = arith.constant 0 : i32
    return %c0_i32, %c0_i32_0 : i32, i32
  }
  func.func @transform_3(%arg0: i32) -> (i32, i32) {
    %c0_i32 = arith.constant 0 : i32
    %c0_i32_0 = arith.constant 0 : i32
    return %arg0, %c0_i32 : i32, i32
  }
}

module attributes {stable_mosaic.version = 11 : i64} {
  func.func @_mlp_resident_kernel(%arg0: i32, %arg1: memref<8x128xf32, #tpu.memory_space<vmem>>, %arg2: memref<6x128x128xbf16, #tpu.memory_space<vmem>>, %arg3: memref<8x128xf32, #tpu.memory_space<vmem>>, %arg4: memref<8x128xf32, #tpu.memory_space<vmem>>) attributes {dimension_semantics = [#tpu.dimension_semantics<parallel>], iteration_bounds = array<i64: 1>, scalar_prefetch = 0 : i64, scratch_operands = 0 : i64, tpu.core_type = #tpu.core_type<tc>, window_params = [{transform_indices = @transform_0, window_bounds = array<i64: 8, 128>}, {pipeline_mode = #tpu.pipeline_mode<synchronous>, transform_indices = @transform_1, window_bounds = array<i64: 6, 128, 128>}, {pipeline_mode = #tpu.pipeline_mode<synchronous>, transform_indices = @transform_2, window_bounds = array<i64: 8, 128>}, {transform_indices = @transform_3, window_bounds = array<i64: 8, 128>}]} {
    %c0 = arith.constant 0 : index
    %c0_0 = arith.constant 0 : index
    %0 = vector.load %arg3[%c0, %c0_0] : memref<8x128xf32, #tpu.memory_space<vmem>>, vector<8x128xf32>
    %c0_1 = arith.constant 0 : index
    %c0_2 = arith.constant 0 : index
    %1 = vector.load %arg1[%c0_1, %c0_2] : memref<8x128xf32, #tpu.memory_space<vmem>>, vector<8x128xf32>
    %2 = arith.truncf %1 : vector<8x128xf32> to vector<8x128xbf16>
    %c0_3 = arith.constant 0 : index
    %c0_4 = arith.constant 0 : index
    %c0_5 = arith.constant 0 : index
    %3 = vector.load %arg2[%c0_3, %c0_4, %c0_5] : memref<6x128x128xbf16, #tpu.memory_space<vmem>>, vector<1x128x128xbf16>
    %4 = vector.shape_cast %3 : vector<1x128x128xbf16> to vector<128x128xbf16>
    %cst = arith.constant dense<0.000000e+00> : vector<8x128xf32>
    %5 = tpu.matmul %2, %4, %cst {dimension_numbers = #tpu.dot_dimension_numbers<[1], [0], [0], [1], [0, 0, 1, 1], [], []>} : vector<8x128xbf16>, vector<128x128xbf16>, vector<8x128xf32> -> vector<8x128xf32>
    %6 = vector.extract_strided_slice %0 {offsets = [0, 0], sizes = [1, 128], strides = [1, 1]} : vector<8x128xf32> to vector<1x128xf32>
    %7 = vector.broadcast %6 : vector<1x128xf32> to vector<8x128xf32>
    %8 = arith.addf %5, %7 : vector<8x128xf32>
    %cst_6 = arith.constant 0.000000e+00 : f32
    %9 = vector.broadcast %cst_6 : f32 to vector<8x128xf32>
    %10 = arith.maximumf %8, %9 : vector<8x128xf32>
    %11 = arith.truncf %10 : vector<8x128xf32> to vector<8x128xbf16>
    %c1 = arith.constant 1 : index
    %c0_7 = arith.constant 0 : index
    %c0_8 = arith.constant 0 : index
    %12 = vector.load %arg2[%c1, %c0_7, %c0_8] : memref<6x128x128xbf16, #tpu.memory_space<vmem>>, vector<1x128x128xbf16>
    %13 = vector.shape_cast %12 : vector<1x128x128xbf16> to vector<128x128xbf16>
    %cst_9 = arith.constant dense<0.000000e+00> : vector<8x128xf32>
    %14 = tpu.matmul %11, %13, %cst_9 {dimension_numbers = #tpu.dot_dimension_numbers<[1], [0], [0], [1], [0, 0, 1, 1], [], []>} : vector<8x128xbf16>, vector<128x128xbf16>, vector<8x128xf32> -> vector<8x128xf32>
    %15 = vector.extract_strided_slice %0 {offsets = [1, 0], sizes = [1, 128], strides = [1, 1]} : vector<8x128xf32> to vector<1x128xf32>
    %16 = vector.broadcast %15 : vector<1x128xf32> to vector<8x128xf32>
    %17 = arith.addf %14, %16 : vector<8x128xf32>
    %cst_10 = arith.constant 0.000000e+00 : f32
    %18 = vector.broadcast %cst_10 : f32 to vector<8x128xf32>
    %19 = arith.maximumf %17, %18 : vector<8x128xf32>
    %20 = arith.truncf %19 : vector<8x128xf32> to vector<8x128xbf16>
    %c2 = arith.constant 2 : index
    %c0_11 = arith.constant 0 : index
    %c0_12 = arith.constant 0 : index
    %21 = vector.load %arg2[%c2, %c0_11, %c0_12] : memref<6x128x128xbf16, #tpu.memory_space<vmem>>, vector<1x128x128xbf16>
    %22 = vector.shape_cast %21 : vector<1x128x128xbf16> to vector<128x128xbf16>
    %cst_13 = arith.constant dense<0.000000e+00> : vector<8x128xf32>
    %23 = tpu.matmul %20, %22, %cst_13 {dimension_numbers = #tpu.dot_dimension_numbers<[1], [0], [0], [1], [0, 0, 1, 1], [], []>} : vector<8x128xbf16>, vector<128x128xbf16>, vector<8x128xf32> -> vector<8x128xf32>
    %24 = vector.extract_strided_slice %0 {offsets = [2, 0], sizes = [1, 128], strides = [1, 1]} : vector<8x128xf32> to vector<1x128xf32>
    %25 = vector.broadcast %24 : vector<1x128xf32> to vector<8x128xf32>
    %26 = arith.addf %23, %25 : vector<8x128xf32>
    %cst_14 = arith.constant 0.000000e+00 : f32
    %27 = vector.broadcast %cst_14 : f32 to vector<8x128xf32>
    %28 = arith.maximumf %26, %27 : vector<8x128xf32>
    %29 = arith.truncf %28 : vector<8x128xf32> to vector<8x128xbf16>
    %c3 = arith.constant 3 : index
    %c0_15 = arith.constant 0 : index
    %c0_16 = arith.constant 0 : index
    %30 = vector.load %arg2[%c3, %c0_15, %c0_16] : memref<6x128x128xbf16, #tpu.memory_space<vmem>>, vector<1x128x128xbf16>
    %31 = vector.shape_cast %30 : vector<1x128x128xbf16> to vector<128x128xbf16>
    %cst_17 = arith.constant dense<0.000000e+00> : vector<8x128xf32>
    %32 = tpu.matmul %29, %31, %cst_17 {dimension_numbers = #tpu.dot_dimension_numbers<[1], [0], [0], [1], [0, 0, 1, 1], [], []>} : vector<8x128xbf16>, vector<128x128xbf16>, vector<8x128xf32> -> vector<8x128xf32>
    %33 = vector.extract_strided_slice %0 {offsets = [3, 0], sizes = [1, 128], strides = [1, 1]} : vector<8x128xf32> to vector<1x128xf32>
    %34 = vector.broadcast %33 : vector<1x128xf32> to vector<8x128xf32>
    %35 = arith.addf %32, %34 : vector<8x128xf32>
    %cst_18 = arith.constant 0.000000e+00 : f32
    %36 = vector.broadcast %cst_18 : f32 to vector<8x128xf32>
    %37 = arith.maximumf %35, %36 : vector<8x128xf32>
    %38 = arith.truncf %37 : vector<8x128xf32> to vector<8x128xbf16>
    %c4 = arith.constant 4 : index
    %c0_19 = arith.constant 0 : index
    %c0_20 = arith.constant 0 : index
    %39 = vector.load %arg2[%c4, %c0_19, %c0_20] : memref<6x128x128xbf16, #tpu.memory_space<vmem>>, vector<1x128x128xbf16>
    %40 = vector.shape_cast %39 : vector<1x128x128xbf16> to vector<128x128xbf16>
    %cst_21 = arith.constant dense<0.000000e+00> : vector<8x128xf32>
    %41 = tpu.matmul %38, %40, %cst_21 {dimension_numbers = #tpu.dot_dimension_numbers<[1], [0], [0], [1], [0, 0, 1, 1], [], []>} : vector<8x128xbf16>, vector<128x128xbf16>, vector<8x128xf32> -> vector<8x128xf32>
    %42 = vector.extract_strided_slice %0 {offsets = [4, 0], sizes = [1, 128], strides = [1, 1]} : vector<8x128xf32> to vector<1x128xf32>
    %43 = vector.broadcast %42 : vector<1x128xf32> to vector<8x128xf32>
    %44 = arith.addf %41, %43 : vector<8x128xf32>
    %cst_22 = arith.constant 0.000000e+00 : f32
    %45 = vector.broadcast %cst_22 : f32 to vector<8x128xf32>
    %46 = arith.maximumf %44, %45 : vector<8x128xf32>
    %47 = arith.truncf %46 : vector<8x128xf32> to vector<8x128xbf16>
    %c5 = arith.constant 5 : index
    %c0_23 = arith.constant 0 : index
    %c0_24 = arith.constant 0 : index
    %48 = vector.load %arg2[%c5, %c0_23, %c0_24] : memref<6x128x128xbf16, #tpu.memory_space<vmem>>, vector<1x128x128xbf16>
    %49 = vector.shape_cast %48 : vector<1x128x128xbf16> to vector<128x128xbf16>
    %cst_25 = arith.constant dense<0.000000e+00> : vector<8x128xf32>
    %50 = tpu.matmul %47, %49, %cst_25 {dimension_numbers = #tpu.dot_dimension_numbers<[1], [0], [0], [1], [0, 0, 1, 1], [], []>} : vector<8x128xbf16>, vector<128x128xbf16>, vector<8x128xf32> -> vector<8x128xf32>
    %51 = vector.extract_strided_slice %0 {offsets = [5, 0], sizes = [1, 128], strides = [1, 1]} : vector<8x128xf32> to vector<1x128xf32>
    %52 = vector.broadcast %51 : vector<1x128xf32> to vector<8x128xf32>
    %53 = arith.addf %50, %52 : vector<8x128xf32>
    %c0_26 = arith.constant 0 : index
    %c0_27 = arith.constant 0 : index
    %54 = vector.load %arg4[%c0_26, %c0_27] : memref<8x128xf32, #tpu.memory_space<vmem>>, vector<8x128xf32>
    tpu.vector_store %arg4[%c0_26, %c0_27], %53 {strides = array<i32>} : memref<8x128xf32, #tpu.memory_space<vmem>>, vector<8x128xf32>,
    return
  }
  func.func @transform_0(%arg0: i32) -> (i32, i32) {
    %c0_i32 = arith.constant 0 : i32
    %c0_i32_0 = arith.constant 0 : i32
    return %arg0, %c0_i32 : i32, i32
  }
  func.func @transform_1(%arg0: i32) -> (i32, i32, i32) {
    %c0_i32 = arith.constant 0 : i32
    %c0_i32_0 = arith.constant 0 : i32
    %c0_i32_1 = arith.constant 0 : i32
    %c0_i32_2 = arith.constant 0 : i32
    return %c0_i32, %c0_i32_0, %c0_i32_1 : i32, i32, i32
  }
  func.func @transform_2(%arg0: i32) -> (i32, i32) {
    %c0_i32 = arith.constant 0 : i32
    %c0_i32_0 = arith.constant 0 : i32
    %c0_i32_1 = arith.constant 0 : i32
    return %c0_i32, %c0_i32_0 : i32, i32
  }
  func.func @transform_3(%arg0: i32) -> (i32, i32) {
    %c0_i32 = arith.constant 0 : i32
    %c0_i32_0 = arith.constant 0 : i32
    return %arg0, %c0_i32 : i32, i32
  }
}

module attributes {stable_mosaic.version = 11 : i64} {
  func.func @_mlp_stream_kernel(%arg0: i32, %arg1: memref<8x128xf32, #tpu.memory_space<vmem>>, %arg2: memref<6x128x128xbf16, #tpu.memory_space<any>>, %arg3: memref<8x128xf32, #tpu.memory_space<vmem>>, %arg4: memref<8x128xf32, #tpu.memory_space<vmem>>, %arg5: memref<2x128x128xbf16, #tpu.memory_space<vmem>>, %arg6: memref<2x!tpu.dma_semaphore, #tpu.memory_space<semaphore_mem>>) attributes {dimension_semantics = [#tpu.dimension_semantics<parallel>], iteration_bounds = array<i64: 1>, scalar_prefetch = 0 : i64, scratch_operands = 2 : i64, tpu.core_type = #tpu.core_type<tc>, window_params = [{transform_indices = @transform_0, window_bounds = array<i64: 8, 128>}, {}, {pipeline_mode = #tpu.pipeline_mode<synchronous>, transform_indices = @transform_2, window_bounds = array<i64: 8, 128>}, {transform_indices = @transform_3, window_bounds = array<i64: 8, 128>}]} {
    %c0_i32 = arith.constant 0 : i32
    %c0_i32_0 = arith.constant 0 : i32
    %c0_i32_1 = arith.constant 0 : i32
    %c0_i32_2 = arith.constant 0 : i32
    %c0_i32_3 = arith.constant 0 : i32
    %0 = tpu.memref_slice %arg2[%c0_i32, %c0_i32_2, %c0_i32_3] : memref<6x128x128xbf16, #tpu.memory_space<any>> -> memref<1x128x128xbf16, #tpu.memory_space<any>>
    %1 = tpu.memref_squeeze %0 : memref<1x128x128xbf16, #tpu.memory_space<any>> -> memref<128x128xbf16, #tpu.memory_space<any>>
    %c0_i32_4 = arith.constant 0 : i32
    %c0_i32_5 = arith.constant 0 : i32
    %2 = tpu.memref_slice %arg5[%c0_i32_0, %c0_i32_4, %c0_i32_5] : memref<2x128x128xbf16, #tpu.memory_space<vmem>> -> memref<1x128x128xbf16, #tpu.memory_space<vmem>>
    %3 = tpu.memref_squeeze %2 : memref<1x128x128xbf16, #tpu.memory_space<vmem>> -> memref<128x128xbf16, #tpu.memory_space<vmem>>
    %4 = tpu.memref_slice %arg6[%c0_i32_1] : memref<2x!tpu.dma_semaphore, #tpu.memory_space<semaphore_mem>> -> memref<1x!tpu.dma_semaphore, #tpu.memory_space<semaphore_mem>>
    %5 = tpu.memref_squeeze %4 : memref<1x!tpu.dma_semaphore, #tpu.memory_space<semaphore_mem>> -> memref<!tpu.dma_semaphore, #tpu.memory_space<semaphore_mem>>
    tpu.enqueue_dma source(%1 : memref<128x128xbf16, #tpu.memory_space<any>>) target(%3 : memref<128x128xbf16, #tpu.memory_space<vmem>>) target_semaphore(%5 : memref<!tpu.dma_semaphore, #tpu.memory_space<semaphore_mem>>)
    %c0 = arith.constant 0 : index
    %c0_6 = arith.constant 0 : index
    %6 = vector.load %arg3[%c0, %c0_6] : memref<8x128xf32, #tpu.memory_space<vmem>>, vector<8x128xf32>
    %c0_7 = arith.constant 0 : index
    %c0_8 = arith.constant 0 : index
    %7 = vector.load %arg1[%c0_7, %c0_8] : memref<8x128xf32, #tpu.memory_space<vmem>>, vector<8x128xf32>
    %c0_i32_9 = arith.constant 0 : i32
    %c0_i32_10 = arith.constant 0 : i32
    %c0_i32_11 = arith.constant 0 : i32
    %c0_i32_12 = arith.constant 0 : i32
    %c0_i32_13 = arith.constant 0 : i32
    %8 = tpu.memref_slice %arg2[%c0_i32_9, %c0_i32_12, %c0_i32_13] : memref<6x128x128xbf16, #tpu.memory_space<any>> -> memref<1x128x128xbf16, #tpu.memory_space<any>>
    %9 = tpu.memref_squeeze %8 : memref<1x128x128xbf16, #tpu.memory_space<any>> -> memref<128x128xbf16, #tpu.memory_space<any>>
    %c0_i32_14 = arith.constant 0 : i32
    %c0_i32_15 = arith.constant 0 : i32
    %10 = tpu.memref_slice %arg5[%c0_i32_10, %c0_i32_14, %c0_i32_15] : memref<2x128x128xbf16, #tpu.memory_space<vmem>> -> memref<1x128x128xbf16, #tpu.memory_space<vmem>>
    %11 = tpu.memref_squeeze %10 : memref<1x128x128xbf16, #tpu.memory_space<vmem>> -> memref<128x128xbf16, #tpu.memory_space<vmem>>
    %12 = tpu.memref_slice %arg6[%c0_i32_11] : memref<2x!tpu.dma_semaphore, #tpu.memory_space<semaphore_mem>> -> memref<1x!tpu.dma_semaphore, #tpu.memory_space<semaphore_mem>>
    %13 = tpu.memref_squeeze %12 : memref<1x!tpu.dma_semaphore, #tpu.memory_space<semaphore_mem>> -> memref<!tpu.dma_semaphore, #tpu.memory_space<semaphore_mem>>
    tpu.wait_dma2 semaphore(%13 : memref<!tpu.dma_semaphore, #tpu.memory_space<semaphore_mem>>) src(%9 : memref<128x128xbf16, #tpu.memory_space<any>>) dst(%11 : memref<128x128xbf16, #tpu.memory_space<vmem>>)
    %c1_i32 = arith.constant 1 : i32
    %c1_i32_16 = arith.constant 1 : i32
    %c1_i32_17 = arith.constant 1 : i32
    %c0_i32_18 = arith.constant 0 : i32
    %c0_i32_19 = arith.constant 0 : i32
    %14 = tpu.memref_slice %arg2[%c1_i32, %c0_i32_18, %c0_i32_19] : memref<6x128x128xbf16, #tpu.memory_space<any>> -> memref<1x128x128xbf16, #tpu.memory_space<any>>
    %15 = tpu.memref_squeeze %14 : memref<1x128x128xbf16, #tpu.memory_space<any>> -> memref<128x128xbf16, #tpu.memory_space<any>>
    %c0_i32_20 = arith.constant 0 : i32
    %c0_i32_21 = arith.constant 0 : i32
    %16 = tpu.memref_slice %arg5[%c1_i32_16, %c0_i32_20, %c0_i32_21] : memref<2x128x128xbf16, #tpu.memory_space<vmem>> -> memref<1x128x128xbf16, #tpu.memory_space<vmem>>
    %17 = tpu.memref_squeeze %16 : memref<1x128x128xbf16, #tpu.memory_space<vmem>> -> memref<128x128xbf16, #tpu.memory_space<vmem>>
    %18 = tpu.memref_slice %arg6[%c1_i32_17] : memref<2x!tpu.dma_semaphore, #tpu.memory_space<semaphore_mem>> -> memref<1x!tpu.dma_semaphore, #tpu.memory_space<semaphore_mem>>
    %19 = tpu.memref_squeeze %18 : memref<1x!tpu.dma_semaphore, #tpu.memory_space<semaphore_mem>> -> memref<!tpu.dma_semaphore, #tpu.memory_space<semaphore_mem>>
    tpu.enqueue_dma source(%15 : memref<128x128xbf16, #tpu.memory_space<any>>) target(%17 : memref<128x128xbf16, #tpu.memory_space<vmem>>) target_semaphore(%19 : memref<!tpu.dma_semaphore, #tpu.memory_space<semaphore_mem>>)
    %20 = arith.truncf %7 : vector<8x128xf32> to vector<8x128xbf16>
    %c0_22 = arith.constant 0 : index
    %c0_23 = arith.constant 0 : index
    %c0_24 = arith.constant 0 : index
    %21 = vector.load %arg5[%c0_22, %c0_23, %c0_24] : memref<2x128x128xbf16, #tpu.memory_space<vmem>>, vector<1x128x128xbf16>
    %22 = vector.shape_cast %21 : vector<1x128x128xbf16> to vector<128x128xbf16>
    %cst = arith.constant dense<0.000000e+00> : vector<8x128xf32>
    %23 = tpu.matmul %20, %22, %cst {dimension_numbers = #tpu.dot_dimension_numbers<[1], [0], [0], [1], [0, 0, 1, 1], [], []>} : vector<8x128xbf16>, vector<128x128xbf16>, vector<8x128xf32> -> vector<8x128xf32>
    %24 = vector.extract_strided_slice %6 {offsets = [0, 0], sizes = [1, 128], strides = [1, 1]} : vector<8x128xf32> to vector<1x128xf32>
    %25 = vector.broadcast %24 : vector<1x128xf32> to vector<8x128xf32>
    %26 = arith.addf %23, %25 : vector<8x128xf32>
    %cst_25 = arith.constant 0.000000e+00 : f32
    %27 = vector.broadcast %cst_25 : f32 to vector<8x128xf32>
    %28 = arith.maximumf %26, %27 : vector<8x128xf32>
    %c1_i32_26 = arith.constant 1 : i32
    %c1_i32_27 = arith.constant 1 : i32
    %c1_i32_28 = arith.constant 1 : i32
    %c0_i32_29 = arith.constant 0 : i32
    %c0_i32_30 = arith.constant 0 : i32
    %29 = tpu.memref_slice %arg2[%c1_i32_26, %c0_i32_29, %c0_i32_30] : memref<6x128x128xbf16, #tpu.memory_space<any>> -> memref<1x128x128xbf16, #tpu.memory_space<any>>
    %30 = tpu.memref_squeeze %29 : memref<1x128x128xbf16, #tpu.memory_space<any>> -> memref<128x128xbf16, #tpu.memory_space<any>>
    %c0_i32_31 = arith.constant 0 : i32
    %c0_i32_32 = arith.constant 0 : i32
    %31 = tpu.memref_slice %arg5[%c1_i32_27, %c0_i32_31, %c0_i32_32] : memref<2x128x128xbf16, #tpu.memory_space<vmem>> -> memref<1x128x128xbf16, #tpu.memory_space<vmem>>
    %32 = tpu.memref_squeeze %31 : memref<1x128x128xbf16, #tpu.memory_space<vmem>> -> memref<128x128xbf16, #tpu.memory_space<vmem>>
    %33 = tpu.memref_slice %arg6[%c1_i32_28] : memref<2x!tpu.dma_semaphore, #tpu.memory_space<semaphore_mem>> -> memref<1x!tpu.dma_semaphore, #tpu.memory_space<semaphore_mem>>
    %34 = tpu.memref_squeeze %33 : memref<1x!tpu.dma_semaphore, #tpu.memory_space<semaphore_mem>> -> memref<!tpu.dma_semaphore, #tpu.memory_space<semaphore_mem>>
    tpu.wait_dma2 semaphore(%34 : memref<!tpu.dma_semaphore, #tpu.memory_space<semaphore_mem>>) src(%30 : memref<128x128xbf16, #tpu.memory_space<any>>) dst(%32 : memref<128x128xbf16, #tpu.memory_space<vmem>>)
    %c2_i32 = arith.constant 2 : i32
    %c0_i32_33 = arith.constant 0 : i32
    %c0_i32_34 = arith.constant 0 : i32
    %c0_i32_35 = arith.constant 0 : i32
    %c0_i32_36 = arith.constant 0 : i32
    %35 = tpu.memref_slice %arg2[%c2_i32, %c0_i32_35, %c0_i32_36] : memref<6x128x128xbf16, #tpu.memory_space<any>> -> memref<1x128x128xbf16, #tpu.memory_space<any>>
    %36 = tpu.memref_squeeze %35 : memref<1x128x128xbf16, #tpu.memory_space<any>> -> memref<128x128xbf16, #tpu.memory_space<any>>
    %c0_i32_37 = arith.constant 0 : i32
    %c0_i32_38 = arith.constant 0 : i32
    %37 = tpu.memref_slice %arg5[%c0_i32_33, %c0_i32_37, %c0_i32_38] : memref<2x128x128xbf16, #tpu.memory_space<vmem>> -> memref<1x128x128xbf16, #tpu.memory_space<vmem>>
    %38 = tpu.memref_squeeze %37 : memref<1x128x128xbf16, #tpu.memory_space<vmem>> -> memref<128x128xbf16, #tpu.memory_space<vmem>>
    %39 = tpu.memref_slice %arg6[%c0_i32_34] : memref<2x!tpu.dma_semaphore, #tpu.memory_space<semaphore_mem>> -> memref<1x!tpu.dma_semaphore, #tpu.memory_space<semaphore_mem>>
    %40 = tpu.memref_squeeze %39 : memref<1x!tpu.dma_semaphore, #tpu.memory_space<semaphore_mem>> -> memref<!tpu.dma_semaphore, #tpu.memory_space<semaphore_mem>>
    tpu.enqueue_dma source(%36 : memref<128x128xbf16, #tpu.memory_space<any>>) target(%38 : memref<128x128xbf16, #tpu.memory_space<vmem>>) target_semaphore(%40 : memref<!tpu.dma_semaphore, #tpu.memory_space<semaphore_mem>>)
    %41 = arith.truncf %28 : vector<8x128xf32> to vector<8x128xbf16>
    %c1 = arith.constant 1 : index
    %c0_39 = arith.constant 0 : index
    %c0_40 = arith.constant 0 : index
    %42 = vector.load %arg5[%c1, %c0_39, %c0_40] : memref<2x128x128xbf16, #tpu.memory_space<vmem>>, vector<1x128x128xbf16>
    %43 = vector.shape_cast %42 : vector<1x128x128xbf16> to vector<128x128xbf16>
    %cst_41 = arith.constant dense<0.000000e+00> : vector<8x128xf32>
    %44 = tpu.matmul %41, %43, %cst_41 {dimension_numbers = #tpu.dot_dimension_numbers<[1], [0], [0], [1], [0, 0, 1, 1], [], []>} : vector<8x128xbf16>, vector<128x128xbf16>, vector<8x128xf32> -> vector<8x128xf32>
    %45 = vector.extract_strided_slice %6 {offsets = [1, 0], sizes = [1, 128], strides = [1, 1]} : vector<8x128xf32> to vector<1x128xf32>
    %46 = vector.broadcast %45 : vector<1x128xf32> to vector<8x128xf32>
    %47 = arith.addf %44, %46 : vector<8x128xf32>
    %cst_42 = arith.constant 0.000000e+00 : f32
    %48 = vector.broadcast %cst_42 : f32 to vector<8x128xf32>
    %49 = arith.maximumf %47, %48 : vector<8x128xf32>
    %c2_i32_43 = arith.constant 2 : i32
    %c0_i32_44 = arith.constant 0 : i32
    %c0_i32_45 = arith.constant 0 : i32
    %c0_i32_46 = arith.constant 0 : i32
    %c0_i32_47 = arith.constant 0 : i32
    %50 = tpu.memref_slice %arg2[%c2_i32_43, %c0_i32_46, %c0_i32_47] : memref<6x128x128xbf16, #tpu.memory_space<any>> -> memref<1x128x128xbf16, #tpu.memory_space<any>>
    %51 = tpu.memref_squeeze %50 : memref<1x128x128xbf16, #tpu.memory_space<any>> -> memref<128x128xbf16, #tpu.memory_space<any>>
    %c0_i32_48 = arith.constant 0 : i32
    %c0_i32_49 = arith.constant 0 : i32
    %52 = tpu.memref_slice %arg5[%c0_i32_44, %c0_i32_48, %c0_i32_49] : memref<2x128x128xbf16, #tpu.memory_space<vmem>> -> memref<1x128x128xbf16, #tpu.memory_space<vmem>>
    %53 = tpu.memref_squeeze %52 : memref<1x128x128xbf16, #tpu.memory_space<vmem>> -> memref<128x128xbf16, #tpu.memory_space<vmem>>
    %54 = tpu.memref_slice %arg6[%c0_i32_45] : memref<2x!tpu.dma_semaphore, #tpu.memory_space<semaphore_mem>> -> memref<1x!tpu.dma_semaphore, #tpu.memory_space<semaphore_mem>>
    %55 = tpu.memref_squeeze %54 : memref<1x!tpu.dma_semaphore, #tpu.memory_space<semaphore_mem>> -> memref<!tpu.dma_semaphore, #tpu.memory_space<semaphore_mem>>
    tpu.wait_dma2 semaphore(%55 : memref<!tpu.dma_semaphore, #tpu.memory_space<semaphore_mem>>) src(%51 : memref<128x128xbf16, #tpu.memory_space<any>>) dst(%53 : memref<128x128xbf16, #tpu.memory_space<vmem>>)
    %c3_i32 = arith.constant 3 : i32
    %c1_i32_50 = arith.constant 1 : i32
    %c1_i32_51 = arith.constant 1 : i32
    %c0_i32_52 = arith.constant 0 : i32
    %c0_i32_53 = arith.constant 0 : i32
    %56 = tpu.memref_slice %arg2[%c3_i32, %c0_i32_52, %c0_i32_53] : memref<6x128x128xbf16, #tpu.memory_space<any>> -> memref<1x128x128xbf16, #tpu.memory_space<any>>
    %57 = tpu.memref_squeeze %56 : memref<1x128x128xbf16, #tpu.memory_space<any>> -> memref<128x128xbf16, #tpu.memory_space<any>>
    %c0_i32_54 = arith.constant 0 : i32
    %c0_i32_55 = arith.constant 0 : i32
    %58 = tpu.memref_slice %arg5[%c1_i32_50, %c0_i32_54, %c0_i32_55] : memref<2x128x128xbf16, #tpu.memory_space<vmem>> -> memref<1x128x128xbf16, #tpu.memory_space<vmem>>
    %59 = tpu.memref_squeeze %58 : memref<1x128x128xbf16, #tpu.memory_space<vmem>> -> memref<128x128xbf16, #tpu.memory_space<vmem>>
    %60 = tpu.memref_slice %arg6[%c1_i32_51] : memref<2x!tpu.dma_semaphore, #tpu.memory_space<semaphore_mem>> -> memref<1x!tpu.dma_semaphore, #tpu.memory_space<semaphore_mem>>
    %61 = tpu.memref_squeeze %60 : memref<1x!tpu.dma_semaphore, #tpu.memory_space<semaphore_mem>> -> memref<!tpu.dma_semaphore, #tpu.memory_space<semaphore_mem>>
    tpu.enqueue_dma source(%57 : memref<128x128xbf16, #tpu.memory_space<any>>) target(%59 : memref<128x128xbf16, #tpu.memory_space<vmem>>) target_semaphore(%61 : memref<!tpu.dma_semaphore, #tpu.memory_space<semaphore_mem>>)
    %62 = arith.truncf %49 : vector<8x128xf32> to vector<8x128xbf16>
    %c0_56 = arith.constant 0 : index
    %c0_57 = arith.constant 0 : index
    %c0_58 = arith.constant 0 : index
    %63 = vector.load %arg5[%c0_56, %c0_57, %c0_58] : memref<2x128x128xbf16, #tpu.memory_space<vmem>>, vector<1x128x128xbf16>
    %64 = vector.shape_cast %63 : vector<1x128x128xbf16> to vector<128x128xbf16>
    %cst_59 = arith.constant dense<0.000000e+00> : vector<8x128xf32>
    %65 = tpu.matmul %62, %64, %cst_59 {dimension_numbers = #tpu.dot_dimension_numbers<[1], [0], [0], [1], [0, 0, 1, 1], [], []>} : vector<8x128xbf16>, vector<128x128xbf16>, vector<8x128xf32> -> vector<8x128xf32>
    %66 = vector.extract_strided_slice %6 {offsets = [2, 0], sizes = [1, 128], strides = [1, 1]} : vector<8x128xf32> to vector<1x128xf32>
    %67 = vector.broadcast %66 : vector<1x128xf32> to vector<8x128xf32>
    %68 = arith.addf %65, %67 : vector<8x128xf32>
    %cst_60 = arith.constant 0.000000e+00 : f32
    %69 = vector.broadcast %cst_60 : f32 to vector<8x128xf32>
    %70 = arith.maximumf %68, %69 : vector<8x128xf32>
    %c3_i32_61 = arith.constant 3 : i32
    %c1_i32_62 = arith.constant 1 : i32
    %c1_i32_63 = arith.constant 1 : i32
    %c0_i32_64 = arith.constant 0 : i32
    %c0_i32_65 = arith.constant 0 : i32
    %71 = tpu.memref_slice %arg2[%c3_i32_61, %c0_i32_64, %c0_i32_65] : memref<6x128x128xbf16, #tpu.memory_space<any>> -> memref<1x128x128xbf16, #tpu.memory_space<any>>
    %72 = tpu.memref_squeeze %71 : memref<1x128x128xbf16, #tpu.memory_space<any>> -> memref<128x128xbf16, #tpu.memory_space<any>>
    %c0_i32_66 = arith.constant 0 : i32
    %c0_i32_67 = arith.constant 0 : i32
    %73 = tpu.memref_slice %arg5[%c1_i32_62, %c0_i32_66, %c0_i32_67] : memref<2x128x128xbf16, #tpu.memory_space<vmem>> -> memref<1x128x128xbf16, #tpu.memory_space<vmem>>
    %74 = tpu.memref_squeeze %73 : memref<1x128x128xbf16, #tpu.memory_space<vmem>> -> memref<128x128xbf16, #tpu.memory_space<vmem>>
    %75 = tpu.memref_slice %arg6[%c1_i32_63] : memref<2x!tpu.dma_semaphore, #tpu.memory_space<semaphore_mem>> -> memref<1x!tpu.dma_semaphore, #tpu.memory_space<semaphore_mem>>
    %76 = tpu.memref_squeeze %75 : memref<1x!tpu.dma_semaphore, #tpu.memory_space<semaphore_mem>> -> memref<!tpu.dma_semaphore, #tpu.memory_space<semaphore_mem>>
    tpu.wait_dma2 semaphore(%76 : memref<!tpu.dma_semaphore, #tpu.memory_space<semaphore_mem>>) src(%72 : memref<128x128xbf16, #tpu.memory_space<any>>) dst(%74 : memref<128x128xbf16, #tpu.memory_space<vmem>>)
    %c4_i32 = arith.constant 4 : i32
    %c0_i32_68 = arith.constant 0 : i32
    %c0_i32_69 = arith.constant 0 : i32
    %c0_i32_70 = arith.constant 0 : i32
    %c0_i32_71 = arith.constant 0 : i32
    %77 = tpu.memref_slice %arg2[%c4_i32, %c0_i32_70, %c0_i32_71] : memref<6x128x128xbf16, #tpu.memory_space<any>> -> memref<1x128x128xbf16, #tpu.memory_space<any>>
    %78 = tpu.memref_squeeze %77 : memref<1x128x128xbf16, #tpu.memory_space<any>> -> memref<128x128xbf16, #tpu.memory_space<any>>
    %c0_i32_72 = arith.constant 0 : i32
    %c0_i32_73 = arith.constant 0 : i32
    %79 = tpu.memref_slice %arg5[%c0_i32_68, %c0_i32_72, %c0_i32_73] : memref<2x128x128xbf16, #tpu.memory_space<vmem>> -> memref<1x128x128xbf16, #tpu.memory_space<vmem>>
    %80 = tpu.memref_squeeze %79 : memref<1x128x128xbf16, #tpu.memory_space<vmem>> -> memref<128x128xbf16, #tpu.memory_space<vmem>>
    %81 = tpu.memref_slice %arg6[%c0_i32_69] : memref<2x!tpu.dma_semaphore, #tpu.memory_space<semaphore_mem>> -> memref<1x!tpu.dma_semaphore, #tpu.memory_space<semaphore_mem>>
    %82 = tpu.memref_squeeze %81 : memref<1x!tpu.dma_semaphore, #tpu.memory_space<semaphore_mem>> -> memref<!tpu.dma_semaphore, #tpu.memory_space<semaphore_mem>>
    tpu.enqueue_dma source(%78 : memref<128x128xbf16, #tpu.memory_space<any>>) target(%80 : memref<128x128xbf16, #tpu.memory_space<vmem>>) target_semaphore(%82 : memref<!tpu.dma_semaphore, #tpu.memory_space<semaphore_mem>>)
    %83 = arith.truncf %70 : vector<8x128xf32> to vector<8x128xbf16>
    %c1_74 = arith.constant 1 : index
    %c0_75 = arith.constant 0 : index
    %c0_76 = arith.constant 0 : index
    %84 = vector.load %arg5[%c1_74, %c0_75, %c0_76] : memref<2x128x128xbf16, #tpu.memory_space<vmem>>, vector<1x128x128xbf16>
    %85 = vector.shape_cast %84 : vector<1x128x128xbf16> to vector<128x128xbf16>
    %cst_77 = arith.constant dense<0.000000e+00> : vector<8x128xf32>
    %86 = tpu.matmul %83, %85, %cst_77 {dimension_numbers = #tpu.dot_dimension_numbers<[1], [0], [0], [1], [0, 0, 1, 1], [], []>} : vector<8x128xbf16>, vector<128x128xbf16>, vector<8x128xf32> -> vector<8x128xf32>
    %87 = vector.extract_strided_slice %6 {offsets = [3, 0], sizes = [1, 128], strides = [1, 1]} : vector<8x128xf32> to vector<1x128xf32>
    %88 = vector.broadcast %87 : vector<1x128xf32> to vector<8x128xf32>
    %89 = arith.addf %86, %88 : vector<8x128xf32>
    %cst_78 = arith.constant 0.000000e+00 : f32
    %90 = vector.broadcast %cst_78 : f32 to vector<8x128xf32>
    %91 = arith.maximumf %89, %90 : vector<8x128xf32>
    %c4_i32_79 = arith.constant 4 : i32
    %c0_i32_80 = arith.constant 0 : i32
    %c0_i32_81 = arith.constant 0 : i32
    %c0_i32_82 = arith.constant 0 : i32
    %c0_i32_83 = arith.constant 0 : i32
    %92 = tpu.memref_slice %arg2[%c4_i32_79, %c0_i32_82, %c0_i32_83] : memref<6x128x128xbf16, #tpu.memory_space<any>> -> memref<1x128x128xbf16, #tpu.memory_space<any>>
    %93 = tpu.memref_squeeze %92 : memref<1x128x128xbf16, #tpu.memory_space<any>> -> memref<128x128xbf16, #tpu.memory_space<any>>
    %c0_i32_84 = arith.constant 0 : i32
    %c0_i32_85 = arith.constant 0 : i32
    %94 = tpu.memref_slice %arg5[%c0_i32_80, %c0_i32_84, %c0_i32_85] : memref<2x128x128xbf16, #tpu.memory_space<vmem>> -> memref<1x128x128xbf16, #tpu.memory_space<vmem>>
    %95 = tpu.memref_squeeze %94 : memref<1x128x128xbf16, #tpu.memory_space<vmem>> -> memref<128x128xbf16, #tpu.memory_space<vmem>>
    %96 = tpu.memref_slice %arg6[%c0_i32_81] : memref<2x!tpu.dma_semaphore, #tpu.memory_space<semaphore_mem>> -> memref<1x!tpu.dma_semaphore, #tpu.memory_space<semaphore_mem>>
    %97 = tpu.memref_squeeze %96 : memref<1x!tpu.dma_semaphore, #tpu.memory_space<semaphore_mem>> -> memref<!tpu.dma_semaphore, #tpu.memory_space<semaphore_mem>>
    tpu.wait_dma2 semaphore(%97 : memref<!tpu.dma_semaphore, #tpu.memory_space<semaphore_mem>>) src(%93 : memref<128x128xbf16, #tpu.memory_space<any>>) dst(%95 : memref<128x128xbf16, #tpu.memory_space<vmem>>)
    %c5_i32 = arith.constant 5 : i32
    %c1_i32_86 = arith.constant 1 : i32
    %c1_i32_87 = arith.constant 1 : i32
    %c0_i32_88 = arith.constant 0 : i32
    %c0_i32_89 = arith.constant 0 : i32
    %98 = tpu.memref_slice %arg2[%c5_i32, %c0_i32_88, %c0_i32_89] : memref<6x128x128xbf16, #tpu.memory_space<any>> -> memref<1x128x128xbf16, #tpu.memory_space<any>>
    %99 = tpu.memref_squeeze %98 : memref<1x128x128xbf16, #tpu.memory_space<any>> -> memref<128x128xbf16, #tpu.memory_space<any>>
    %c0_i32_90 = arith.constant 0 : i32
    %c0_i32_91 = arith.constant 0 : i32
    %100 = tpu.memref_slice %arg5[%c1_i32_86, %c0_i32_90, %c0_i32_91] : memref<2x128x128xbf16, #tpu.memory_space<vmem>> -> memref<1x128x128xbf16, #tpu.memory_space<vmem>>
    %101 = tpu.memref_squeeze %100 : memref<1x128x128xbf16, #tpu.memory_space<vmem>> -> memref<128x128xbf16, #tpu.memory_space<vmem>>
    %102 = tpu.memref_slice %arg6[%c1_i32_87] : memref<2x!tpu.dma_semaphore, #tpu.memory_space<semaphore_mem>> -> memref<1x!tpu.dma_semaphore, #tpu.memory_space<semaphore_mem>>
    %103 = tpu.memref_squeeze %102 : memref<1x!tpu.dma_semaphore, #tpu.memory_space<semaphore_mem>> -> memref<!tpu.dma_semaphore, #tpu.memory_space<semaphore_mem>>
    tpu.enqueue_dma source(%99 : memref<128x128xbf16, #tpu.memory_space<any>>) target(%101 : memref<128x128xbf16, #tpu.memory_space<vmem>>) target_semaphore(%103 : memref<!tpu.dma_semaphore, #tpu.memory_space<semaphore_mem>>)
    %104 = arith.truncf %91 : vector<8x128xf32> to vector<8x128xbf16>
    %c0_92 = arith.constant 0 : index
    %c0_93 = arith.constant 0 : index
    %c0_94 = arith.constant 0 : index
    %105 = vector.load %arg5[%c0_92, %c0_93, %c0_94] : memref<2x128x128xbf16, #tpu.memory_space<vmem>>, vector<1x128x128xbf16>
    %106 = vector.shape_cast %105 : vector<1x128x128xbf16> to vector<128x128xbf16>
    %cst_95 = arith.constant dense<0.000000e+00> : vector<8x128xf32>
    %107 = tpu.matmul %104, %106, %cst_95 {dimension_numbers = #tpu.dot_dimension_numbers<[1], [0], [0], [1], [0, 0, 1, 1], [], []>} : vector<8x128xbf16>, vector<128x128xbf16>, vector<8x128xf32> -> vector<8x128xf32>
    %108 = vector.extract_strided_slice %6 {offsets = [4, 0], sizes = [1, 128], strides = [1, 1]} : vector<8x128xf32> to vector<1x128xf32>
    %109 = vector.broadcast %108 : vector<1x128xf32> to vector<8x128xf32>
    %110 = arith.addf %107, %109 : vector<8x128xf32>
    %cst_96 = arith.constant 0.000000e+00 : f32
    %111 = vector.broadcast %cst_96 : f32 to vector<8x128xf32>
    %112 = arith.maximumf %110, %111 : vector<8x128xf32>
    %c5_i32_97 = arith.constant 5 : i32
    %c1_i32_98 = arith.constant 1 : i32
    %c1_i32_99 = arith.constant 1 : i32
    %c0_i32_100 = arith.constant 0 : i32
    %c0_i32_101 = arith.constant 0 : i32
    %113 = tpu.memref_slice %arg2[%c5_i32_97, %c0_i32_100, %c0_i32_101] : memref<6x128x128xbf16, #tpu.memory_space<any>> -> memref<1x128x128xbf16, #tpu.memory_space<any>>
    %114 = tpu.memref_squeeze %113 : memref<1x128x128xbf16, #tpu.memory_space<any>> -> memref<128x128xbf16, #tpu.memory_space<any>>
    %c0_i32_102 = arith.constant 0 : i32
    %c0_i32_103 = arith.constant 0 : i32
    %115 = tpu.memref_slice %arg5[%c1_i32_98, %c0_i32_102, %c0_i32_103] : memref<2x128x128xbf16, #tpu.memory_space<vmem>> -> memref<1x128x128xbf16, #tpu.memory_space<vmem>>
    %116 = tpu.memref_squeeze %115 : memref<1x128x128xbf16, #tpu.memory_space<vmem>> -> memref<128x128xbf16, #tpu.memory_space<vmem>>
    %117 = tpu.memref_slice %arg6[%c1_i32_99] : memref<2x!tpu.dma_semaphore, #tpu.memory_space<semaphore_mem>> -> memref<1x!tpu.dma_semaphore, #tpu.memory_space<semaphore_mem>>
    %118 = tpu.memref_squeeze %117 : memref<1x!tpu.dma_semaphore, #tpu.memory_space<semaphore_mem>> -> memref<!tpu.dma_semaphore, #tpu.memory_space<semaphore_mem>>
    tpu.wait_dma2 semaphore(%118 : memref<!tpu.dma_semaphore, #tpu.memory_space<semaphore_mem>>) src(%114 : memref<128x128xbf16, #tpu.memory_space<any>>) dst(%116 : memref<128x128xbf16, #tpu.memory_space<vmem>>)
    %119 = arith.truncf %112 : vector<8x128xf32> to vector<8x128xbf16>
    %c1_104 = arith.constant 1 : index
    %c0_105 = arith.constant 0 : index
    %c0_106 = arith.constant 0 : index
    %120 = vector.load %arg5[%c1_104, %c0_105, %c0_106] : memref<2x128x128xbf16, #tpu.memory_space<vmem>>, vector<1x128x128xbf16>
    %121 = vector.shape_cast %120 : vector<1x128x128xbf16> to vector<128x128xbf16>
    %cst_107 = arith.constant dense<0.000000e+00> : vector<8x128xf32>
    %122 = tpu.matmul %119, %121, %cst_107 {dimension_numbers = #tpu.dot_dimension_numbers<[1], [0], [0], [1], [0, 0, 1, 1], [], []>} : vector<8x128xbf16>, vector<128x128xbf16>, vector<8x128xf32> -> vector<8x128xf32>
    %123 = vector.extract_strided_slice %6 {offsets = [5, 0], sizes = [1, 128], strides = [1, 1]} : vector<8x128xf32> to vector<1x128xf32>
    %124 = vector.broadcast %123 : vector<1x128xf32> to vector<8x128xf32>
    %125 = arith.addf %122, %124 : vector<8x128xf32>
    %c0_108 = arith.constant 0 : index
    %c0_109 = arith.constant 0 : index
    %126 = vector.load %arg4[%c0_108, %c0_109] : memref<8x128xf32, #tpu.memory_space<vmem>>, vector<8x128xf32>
    tpu.vector_store %arg4[%c0_108, %c0_109], %125 {strides = array<i32>} : memref<8x128xf32, #tpu.memory_space<vmem>>, vector<8x128xf32>,
    return
  }
  func.func @transform_0(%arg0: i32) -> (i32, i32) {
    %c0_i32 = arith.constant 0 : i32
    %c0_i32_0 = arith.constant 0 : i32
    return %arg0, %c0_i32 : i32, i32
  }
  func.func @transform_2(%arg0: i32) -> (i32, i32) {
    %c0_i32 = arith.constant 0 : i32
    %c0_i32_0 = arith.constant 0 : i32
    %c0_i32_1 = arith.constant 0 : i32
    return %c0_i32, %c0_i32_0 : i32, i32
  }
  func.func @transform_3(%arg0: i32) -> (i32, i32) {
    %c0_i32 = arith.constant 0 : i32
    %c0_i32_0 = arith.constant 0 : i32
    return %arg0, %c0_i32 : i32, i32
  }
}

module attributes {stable_mosaic.version = 11 : i64} {
  func.func @_mlp_stream_kernel(%arg0: i32, %arg1: memref<8x128xf32, #tpu.memory_space<vmem>>, %arg2: memref<6x128x128xbf16, #tpu.memory_space<any>>, %arg3: memref<8x128xf32, #tpu.memory_space<vmem>>, %arg4: memref<8x128xf32, #tpu.memory_space<vmem>>, %arg5: memref<2x128x128xbf16, #tpu.memory_space<vmem>>, %arg6: memref<2x!tpu.dma_semaphore, #tpu.memory_space<semaphore_mem>>) attributes {dimension_semantics = [#tpu.dimension_semantics<parallel>], iteration_bounds = array<i64: 1>, scalar_prefetch = 0 : i64, scratch_operands = 2 : i64, tpu.core_type = #tpu.core_type<tc>, window_params = [{transform_indices = @transform_0, window_bounds = array<i64: 8, 128>}, {}, {pipeline_mode = #tpu.pipeline_mode<synchronous>, transform_indices = @transform_2, window_bounds = array<i64: 8, 128>}, {transform_indices = @transform_3, window_bounds = array<i64: 8, 128>}]} {
    %c0_i32 = arith.constant 0 : i32
    %c0_i32_0 = arith.constant 0 : i32
    %c0_i32_1 = arith.constant 0 : i32
    %c0_i32_2 = arith.constant 0 : i32
    %c0_i32_3 = arith.constant 0 : i32
    %0 = tpu.memref_slice %arg2[%c0_i32, %c0_i32_2, %c0_i32_3] : memref<6x128x128xbf16, #tpu.memory_space<any>> -> memref<1x128x128xbf16, #tpu.memory_space<any>>
    %1 = tpu.memref_squeeze %0 : memref<1x128x128xbf16, #tpu.memory_space<any>> -> memref<128x128xbf16, #tpu.memory_space<any>>
    %c0_i32_4 = arith.constant 0 : i32
    %c0_i32_5 = arith.constant 0 : i32
    %2 = tpu.memref_slice %arg5[%c0_i32_0, %c0_i32_4, %c0_i32_5] : memref<2x128x128xbf16, #tpu.memory_space<vmem>> -> memref<1x128x128xbf16, #tpu.memory_space<vmem>>
    %3 = tpu.memref_squeeze %2 : memref<1x128x128xbf16, #tpu.memory_space<vmem>> -> memref<128x128xbf16, #tpu.memory_space<vmem>>
    %4 = tpu.memref_slice %arg6[%c0_i32_1] : memref<2x!tpu.dma_semaphore, #tpu.memory_space<semaphore_mem>> -> memref<1x!tpu.dma_semaphore, #tpu.memory_space<semaphore_mem>>
    %5 = tpu.memref_squeeze %4 : memref<1x!tpu.dma_semaphore, #tpu.memory_space<semaphore_mem>> -> memref<!tpu.dma_semaphore, #tpu.memory_space<semaphore_mem>>
    tpu.enqueue_dma source(%1 : memref<128x128xbf16, #tpu.memory_space<any>>) target(%3 : memref<128x128xbf16, #tpu.memory_space<vmem>>) target_semaphore(%5 : memref<!tpu.dma_semaphore, #tpu.memory_space<semaphore_mem>>)
    %c0 = arith.constant 0 : index
    %c0_6 = arith.constant 0 : index
    %6 = vector.load %arg3[%c0, %c0_6] : memref<8x128xf32, #tpu.memory_space<vmem>>, vector<8x128xf32>
    %c0_7 = arith.constant 0 : index
    %c0_8 = arith.constant 0 : index
    %7 = vector.load %arg1[%c0_7, %c0_8] : memref<8x128xf32, #tpu.memory_space<vmem>>, vector<8x128xf32>
    %c0_i32_9 = arith.constant 0 : i32
    %c0_i32_10 = arith.constant 0 : i32
    %c0_i32_11 = arith.constant 0 : i32
    %c0_i32_12 = arith.constant 0 : i32
    %c0_i32_13 = arith.constant 0 : i32
    %8 = tpu.memref_slice %arg2[%c0_i32_9, %c0_i32_12, %c0_i32_13] : memref<6x128x128xbf16, #tpu.memory_space<any>> -> memref<1x128x128xbf16, #tpu.memory_space<any>>
    %9 = tpu.memref_squeeze %8 : memref<1x128x128xbf16, #tpu.memory_space<any>> -> memref<128x128xbf16, #tpu.memory_space<any>>
    %c0_i32_14 = arith.constant 0 : i32
    %c0_i32_15 = arith.constant 0 : i32
    %10 = tpu.memref_slice %arg5[%c0_i32_10, %c0_i32_14, %c0_i32_15] : memref<2x128x128xbf16, #tpu.memory_space<vmem>> -> memref<1x128x128xbf16, #tpu.memory_space<vmem>>
    %11 = tpu.memref_squeeze %10 : memref<1x128x128xbf16, #tpu.memory_space<vmem>> -> memref<128x128xbf16, #tpu.memory_space<vmem>>
    %12 = tpu.memref_slice %arg6[%c0_i32_11] : memref<2x!tpu.dma_semaphore, #tpu.memory_space<semaphore_mem>> -> memref<1x!tpu.dma_semaphore, #tpu.memory_space<semaphore_mem>>
    %13 = tpu.memref_squeeze %12 : memref<1x!tpu.dma_semaphore, #tpu.memory_space<semaphore_mem>> -> memref<!tpu.dma_semaphore, #tpu.memory_space<semaphore_mem>>
    tpu.wait_dma2 semaphore(%13 : memref<!tpu.dma_semaphore, #tpu.memory_space<semaphore_mem>>) src(%9 : memref<128x128xbf16, #tpu.memory_space<any>>) dst(%11 : memref<128x128xbf16, #tpu.memory_space<vmem>>)
    %c1_i32 = arith.constant 1 : i32
    %c1_i32_16 = arith.constant 1 : i32
    %c1_i32_17 = arith.constant 1 : i32
    %c0_i32_18 = arith.constant 0 : i32
    %c0_i32_19 = arith.constant 0 : i32
    %14 = tpu.memref_slice %arg2[%c1_i32, %c0_i32_18, %c0_i32_19] : memref<6x128x128xbf16, #tpu.memory_space<any>> -> memref<1x128x128xbf16, #tpu.memory_space<any>>
    %15 = tpu.memref_squeeze %14 : memref<1x128x128xbf16, #tpu.memory_space<any>> -> memref<128x128xbf16, #tpu.memory_space<any>>
    %c0_i32_20 = arith.constant 0 : i32
    %c0_i32_21 = arith.constant 0 : i32
    %16 = tpu.memref_slice %arg5[%c1_i32_16, %c0_i32_20, %c0_i32_21] : memref<2x128x128xbf16, #tpu.memory_space<vmem>> -> memref<1x128x128xbf16, #tpu.memory_space<vmem>>
    %17 = tpu.memref_squeeze %16 : memref<1x128x128xbf16, #tpu.memory_space<vmem>> -> memref<128x128xbf16, #tpu.memory_space<vmem>>
    %18 = tpu.memref_slice %arg6[%c1_i32_17] : memref<2x!tpu.dma_semaphore, #tpu.memory_space<semaphore_mem>> -> memref<1x!tpu.dma_semaphore, #tpu.memory_space<semaphore_mem>>
    %19 = tpu.memref_squeeze %18 : memref<1x!tpu.dma_semaphore, #tpu.memory_space<semaphore_mem>> -> memref<!tpu.dma_semaphore, #tpu.memory_space<semaphore_mem>>
    tpu.enqueue_dma source(%15 : memref<128x128xbf16, #tpu.memory_space<any>>) target(%17 : memref<128x128xbf16, #tpu.memory_space<vmem>>) target_semaphore(%19 : memref<!tpu.dma_semaphore, #tpu.memory_space<semaphore_mem>>)
    %20 = arith.truncf %7 : vector<8x128xf32> to vector<8x128xbf16>
    %c0_22 = arith.constant 0 : index
    %c0_23 = arith.constant 0 : index
    %c0_24 = arith.constant 0 : index
    %21 = vector.load %arg5[%c0_22, %c0_23, %c0_24] : memref<2x128x128xbf16, #tpu.memory_space<vmem>>, vector<1x128x128xbf16>
    %22 = vector.shape_cast %21 : vector<1x128x128xbf16> to vector<128x128xbf16>
    %cst = arith.constant dense<0.000000e+00> : vector<8x128xf32>
    %23 = tpu.matmul %20, %22, %cst {dimension_numbers = #tpu.dot_dimension_numbers<[1], [0], [0], [1], [0, 0, 1, 1], [], []>} : vector<8x128xbf16>, vector<128x128xbf16>, vector<8x128xf32> -> vector<8x128xf32>
    %24 = vector.extract_strided_slice %6 {offsets = [0, 0], sizes = [1, 128], strides = [1, 1]} : vector<8x128xf32> to vector<1x128xf32>
    %25 = vector.broadcast %24 : vector<1x128xf32> to vector<8x128xf32>
    %26 = arith.addf %23, %25 : vector<8x128xf32>
    %cst_25 = arith.constant 0.000000e+00 : f32
    %27 = vector.broadcast %cst_25 : f32 to vector<8x128xf32>
    %28 = arith.maximumf %26, %27 : vector<8x128xf32>
    %c1_i32_26 = arith.constant 1 : i32
    %c1_i32_27 = arith.constant 1 : i32
    %c1_i32_28 = arith.constant 1 : i32
    %c0_i32_29 = arith.constant 0 : i32
    %c0_i32_30 = arith.constant 0 : i32
    %29 = tpu.memref_slice %arg2[%c1_i32_26, %c0_i32_29, %c0_i32_30] : memref<6x128x128xbf16, #tpu.memory_space<any>> -> memref<1x128x128xbf16, #tpu.memory_space<any>>
    %30 = tpu.memref_squeeze %29 : memref<1x128x128xbf16, #tpu.memory_space<any>> -> memref<128x128xbf16, #tpu.memory_space<any>>
    %c0_i32_31 = arith.constant 0 : i32
    %c0_i32_32 = arith.constant 0 : i32
    %31 = tpu.memref_slice %arg5[%c1_i32_27, %c0_i32_31, %c0_i32_32] : memref<2x128x128xbf16, #tpu.memory_space<vmem>> -> memref<1x128x128xbf16, #tpu.memory_space<vmem>>
    %32 = tpu.memref_squeeze %31 : memref<1x128x128xbf16, #tpu.memory_space<vmem>> -> memref<128x128xbf16, #tpu.memory_space<vmem>>
    %33 = tpu.memref_slice %arg6[%c1_i32_28] : memref<2x!tpu.dma_semaphore, #tpu.memory_space<semaphore_mem>> -> memref<1x!tpu.dma_semaphore, #tpu.memory_space<semaphore_mem>>
    %34 = tpu.memref_squeeze %33 : memref<1x!tpu.dma_semaphore, #tpu.memory_space<semaphore_mem>> -> memref<!tpu.dma_semaphore, #tpu.memory_space<semaphore_mem>>
    tpu.wait_dma2 semaphore(%34 : memref<!tpu.dma_semaphore, #tpu.memory_space<semaphore_mem>>) src(%30 : memref<128x128xbf16, #tpu.memory_space<any>>) dst(%32 : memref<128x128xbf16, #tpu.memory_space<vmem>>)
    %c2_i32 = arith.constant 2 : i32
    %c0_i32_33 = arith.constant 0 : i32
    %c0_i32_34 = arith.constant 0 : i32
    %c0_i32_35 = arith.constant 0 : i32
    %c0_i32_36 = arith.constant 0 : i32
    %35 = tpu.memref_slice %arg2[%c2_i32, %c0_i32_35, %c0_i32_36] : memref<6x128x128xbf16, #tpu.memory_space<any>> -> memref<1x128x128xbf16, #tpu.memory_space<any>>
    %36 = tpu.memref_squeeze %35 : memref<1x128x128xbf16, #tpu.memory_space<any>> -> memref<128x128xbf16, #tpu.memory_space<any>>
    %c0_i32_37 = arith.constant 0 : i32
    %c0_i32_38 = arith.constant 0 : i32
    %37 = tpu.memref_slice %arg5[%c0_i32_33, %c0_i32_37, %c0_i32_38] : memref<2x128x128xbf16, #tpu.memory_space<vmem>> -> memref<1x128x128xbf16, #tpu.memory_space<vmem>>
    %38 = tpu.memref_squeeze %37 : memref<1x128x128xbf16, #tpu.memory_space<vmem>> -> memref<128x128xbf16, #tpu.memory_space<vmem>>
    %39 = tpu.memref_slice %arg6[%c0_i32_34] : memref<2x!tpu.dma_semaphore, #tpu.memory_space<semaphore_mem>> -> memref<1x!tpu.dma_semaphore, #tpu.memory_space<semaphore_mem>>
    %40 = tpu.memref_squeeze %39 : memref<1x!tpu.dma_semaphore, #tpu.memory_space<semaphore_mem>> -> memref<!tpu.dma_semaphore, #tpu.memory_space<semaphore_mem>>
    tpu.enqueue_dma source(%36 : memref<128x128xbf16, #tpu.memory_space<any>>) target(%38 : memref<128x128xbf16, #tpu.memory_space<vmem>>) target_semaphore(%40 : memref<!tpu.dma_semaphore, #tpu.memory_space<semaphore_mem>>)
    %41 = arith.truncf %28 : vector<8x128xf32> to vector<8x128xbf16>
    %c1 = arith.constant 1 : index
    %c0_39 = arith.constant 0 : index
    %c0_40 = arith.constant 0 : index
    %42 = vector.load %arg5[%c1, %c0_39, %c0_40] : memref<2x128x128xbf16, #tpu.memory_space<vmem>>, vector<1x128x128xbf16>
    %43 = vector.shape_cast %42 : vector<1x128x128xbf16> to vector<128x128xbf16>
    %cst_41 = arith.constant dense<0.000000e+00> : vector<8x128xf32>
    %44 = tpu.matmul %41, %43, %cst_41 {dimension_numbers = #tpu.dot_dimension_numbers<[1], [0], [0], [1], [0, 0, 1, 1], [], []>} : vector<8x128xbf16>, vector<128x128xbf16>, vector<8x128xf32> -> vector<8x128xf32>
    %45 = vector.extract_strided_slice %6 {offsets = [1, 0], sizes = [1, 128], strides = [1, 1]} : vector<8x128xf32> to vector<1x128xf32>
    %46 = vector.broadcast %45 : vector<1x128xf32> to vector<8x128xf32>
    %47 = arith.addf %44, %46 : vector<8x128xf32>
    %cst_42 = arith.constant 0.000000e+00 : f32
    %48 = vector.broadcast %cst_42 : f32 to vector<8x128xf32>
    %49 = arith.maximumf %47, %48 : vector<8x128xf32>
    %c2_i32_43 = arith.constant 2 : i32
    %c0_i32_44 = arith.constant 0 : i32
    %c0_i32_45 = arith.constant 0 : i32
    %c0_i32_46 = arith.constant 0 : i32
    %c0_i32_47 = arith.constant 0 : i32
    %50 = tpu.memref_slice %arg2[%c2_i32_43, %c0_i32_46, %c0_i32_47] : memref<6x128x128xbf16, #tpu.memory_space<any>> -> memref<1x128x128xbf16, #tpu.memory_space<any>>
    %51 = tpu.memref_squeeze %50 : memref<1x128x128xbf16, #tpu.memory_space<any>> -> memref<128x128xbf16, #tpu.memory_space<any>>
    %c0_i32_48 = arith.constant 0 : i32
    %c0_i32_49 = arith.constant 0 : i32
    %52 = tpu.memref_slice %arg5[%c0_i32_44, %c0_i32_48, %c0_i32_49] : memref<2x128x128xbf16, #tpu.memory_space<vmem>> -> memref<1x128x128xbf16, #tpu.memory_space<vmem>>
    %53 = tpu.memref_squeeze %52 : memref<1x128x128xbf16, #tpu.memory_space<vmem>> -> memref<128x128xbf16, #tpu.memory_space<vmem>>
    %54 = tpu.memref_slice %arg6[%c0_i32_45] : memref<2x!tpu.dma_semaphore, #tpu.memory_space<semaphore_mem>> -> memref<1x!tpu.dma_semaphore, #tpu.memory_space<semaphore_mem>>
    %55 = tpu.memref_squeeze %54 : memref<1x!tpu.dma_semaphore, #tpu.memory_space<semaphore_mem>> -> memref<!tpu.dma_semaphore, #tpu.memory_space<semaphore_mem>>
    tpu.wait_dma2 semaphore(%55 : memref<!tpu.dma_semaphore, #tpu.memory_space<semaphore_mem>>) src(%51 : memref<128x128xbf16, #tpu.memory_space<any>>) dst(%53 : memref<128x128xbf16, #tpu.memory_space<vmem>>)
    %c3_i32 = arith.constant 3 : i32
    %c1_i32_50 = arith.constant 1 : i32
    %c1_i32_51 = arith.constant 1 : i32
    %c0_i32_52 = arith.constant 0 : i32
    %c0_i32_53 = arith.constant 0 : i32
    %56 = tpu.memref_slice %arg2[%c3_i32, %c0_i32_52, %c0_i32_53] : memref<6x128x128xbf16, #tpu.memory_space<any>> -> memref<1x128x128xbf16, #tpu.memory_space<any>>
    %57 = tpu.memref_squeeze %56 : memref<1x128x128xbf16, #tpu.memory_space<any>> -> memref<128x128xbf16, #tpu.memory_space<any>>
    %c0_i32_54 = arith.constant 0 : i32
    %c0_i32_55 = arith.constant 0 : i32
    %58 = tpu.memref_slice %arg5[%c1_i32_50, %c0_i32_54, %c0_i32_55] : memref<2x128x128xbf16, #tpu.memory_space<vmem>> -> memref<1x128x128xbf16, #tpu.memory_space<vmem>>
    %59 = tpu.memref_squeeze %58 : memref<1x128x128xbf16, #tpu.memory_space<vmem>> -> memref<128x128xbf16, #tpu.memory_space<vmem>>
    %60 = tpu.memref_slice %arg6[%c1_i32_51] : memref<2x!tpu.dma_semaphore, #tpu.memory_space<semaphore_mem>> -> memref<1x!tpu.dma_semaphore, #tpu.memory_space<semaphore_mem>>
    %61 = tpu.memref_squeeze %60 : memref<1x!tpu.dma_semaphore, #tpu.memory_space<semaphore_mem>> -> memref<!tpu.dma_semaphore, #tpu.memory_space<semaphore_mem>>
    tpu.enqueue_dma source(%57 : memref<128x128xbf16, #tpu.memory_space<any>>) target(%59 : memref<128x128xbf16, #tpu.memory_space<vmem>>) target_semaphore(%61 : memref<!tpu.dma_semaphore, #tpu.memory_space<semaphore_mem>>)
    %62 = arith.truncf %49 : vector<8x128xf32> to vector<8x128xbf16>
    %c0_56 = arith.constant 0 : index
    %c0_57 = arith.constant 0 : index
    %c0_58 = arith.constant 0 : index
    %63 = vector.load %arg5[%c0_56, %c0_57, %c0_58] : memref<2x128x128xbf16, #tpu.memory_space<vmem>>, vector<1x128x128xbf16>
    %64 = vector.shape_cast %63 : vector<1x128x128xbf16> to vector<128x128xbf16>
    %cst_59 = arith.constant dense<0.000000e+00> : vector<8x128xf32>
    %65 = tpu.matmul %62, %64, %cst_59 {dimension_numbers = #tpu.dot_dimension_numbers<[1], [0], [0], [1], [0, 0, 1, 1], [], []>} : vector<8x128xbf16>, vector<128x128xbf16>, vector<8x128xf32> -> vector<8x128xf32>
    %66 = vector.extract_strided_slice %6 {offsets = [2, 0], sizes = [1, 128], strides = [1, 1]} : vector<8x128xf32> to vector<1x128xf32>
    %67 = vector.broadcast %66 : vector<1x128xf32> to vector<8x128xf32>
    %68 = arith.addf %65, %67 : vector<8x128xf32>
    %cst_60 = arith.constant 0.000000e+00 : f32
    %69 = vector.broadcast %cst_60 : f32 to vector<8x128xf32>
    %70 = arith.maximumf %68, %69 : vector<8x128xf32>
    %c3_i32_61 = arith.constant 3 : i32
    %c1_i32_62 = arith.constant 1 : i32
    %c1_i32_63 = arith.constant 1 : i32
    %c0_i32_64 = arith.constant 0 : i32
    %c0_i32_65 = arith.constant 0 : i32
    %71 = tpu.memref_slice %arg2[%c3_i32_61, %c0_i32_64, %c0_i32_65] : memref<6x128x128xbf16, #tpu.memory_space<any>> -> memref<1x128x128xbf16, #tpu.memory_space<any>>
    %72 = tpu.memref_squeeze %71 : memref<1x128x128xbf16, #tpu.memory_space<any>> -> memref<128x128xbf16, #tpu.memory_space<any>>
    %c0_i32_66 = arith.constant 0 : i32
    %c0_i32_67 = arith.constant 0 : i32
    %73 = tpu.memref_slice %arg5[%c1_i32_62, %c0_i32_66, %c0_i32_67] : memref<2x128x128xbf16, #tpu.memory_space<vmem>> -> memref<1x128x128xbf16, #tpu.memory_space<vmem>>
    %74 = tpu.memref_squeeze %73 : memref<1x128x128xbf16, #tpu.memory_space<vmem>> -> memref<128x128xbf16, #tpu.memory_space<vmem>>
    %75 = tpu.memref_slice %arg6[%c1_i32_63] : memref<2x!tpu.dma_semaphore, #tpu.memory_space<semaphore_mem>> -> memref<1x!tpu.dma_semaphore, #tpu.memory_space<semaphore_mem>>
    %76 = tpu.memref_squeeze %75 : memref<1x!tpu.dma_semaphore, #tpu.memory_space<semaphore_mem>> -> memref<!tpu.dma_semaphore, #tpu.memory_space<semaphore_mem>>
    tpu.wait_dma2 semaphore(%76 : memref<!tpu.dma_semaphore, #tpu.memory_space<semaphore_mem>>) src(%72 : memref<128x128xbf16, #tpu.memory_space<any>>) dst(%74 : memref<128x128xbf16, #tpu.memory_space<vmem>>)
    %c4_i32 = arith.constant 4 : i32
    %c0_i32_68 = arith.constant 0 : i32
    %c0_i32_69 = arith.constant 0 : i32
    %c0_i32_70 = arith.constant 0 : i32
    %c0_i32_71 = arith.constant 0 : i32
    %77 = tpu.memref_slice %arg2[%c4_i32, %c0_i32_70, %c0_i32_71] : memref<6x128x128xbf16, #tpu.memory_space<any>> -> memref<1x128x128xbf16, #tpu.memory_space<any>>
    %78 = tpu.memref_squeeze %77 : memref<1x128x128xbf16, #tpu.memory_space<any>> -> memref<128x128xbf16, #tpu.memory_space<any>>
    %c0_i32_72 = arith.constant 0 : i32
    %c0_i32_73 = arith.constant 0 : i32
    %79 = tpu.memref_slice %arg5[%c0_i32_68, %c0_i32_72, %c0_i32_73] : memref<2x128x128xbf16, #tpu.memory_space<vmem>> -> memref<1x128x128xbf16, #tpu.memory_space<vmem>>
    %80 = tpu.memref_squeeze %79 : memref<1x128x128xbf16, #tpu.memory_space<vmem>> -> memref<128x128xbf16, #tpu.memory_space<vmem>>
    %81 = tpu.memref_slice %arg6[%c0_i32_69] : memref<2x!tpu.dma_semaphore, #tpu.memory_space<semaphore_mem>> -> memref<1x!tpu.dma_semaphore, #tpu.memory_space<semaphore_mem>>
    %82 = tpu.memref_squeeze %81 : memref<1x!tpu.dma_semaphore, #tpu.memory_space<semaphore_mem>> -> memref<!tpu.dma_semaphore, #tpu.memory_space<semaphore_mem>>
    tpu.enqueue_dma source(%78 : memref<128x128xbf16, #tpu.memory_space<any>>) target(%80 : memref<128x128xbf16, #tpu.memory_space<vmem>>) target_semaphore(%82 : memref<!tpu.dma_semaphore, #tpu.memory_space<semaphore_mem>>)
    %83 = arith.truncf %70 : vector<8x128xf32> to vector<8x128xbf16>
    %c1_74 = arith.constant 1 : index
    %c0_75 = arith.constant 0 : index
    %c0_76 = arith.constant 0 : index
    %84 = vector.load %arg5[%c1_74, %c0_75, %c0_76] : memref<2x128x128xbf16, #tpu.memory_space<vmem>>, vector<1x128x128xbf16>
    %85 = vector.shape_cast %84 : vector<1x128x128xbf16> to vector<128x128xbf16>
    %cst_77 = arith.constant dense<0.000000e+00> : vector<8x128xf32>
    %86 = tpu.matmul %83, %85, %cst_77 {dimension_numbers = #tpu.dot_dimension_numbers<[1], [0], [0], [1], [0, 0, 1, 1], [], []>} : vector<8x128xbf16>, vector<128x128xbf16>, vector<8x128xf32> -> vector<8x128xf32>
    %87 = vector.extract_strided_slice %6 {offsets = [3, 0], sizes = [1, 128], strides = [1, 1]} : vector<8x128xf32> to vector<1x128xf32>
    %88 = vector.broadcast %87 : vector<1x128xf32> to vector<8x128xf32>
    %89 = arith.addf %86, %88 : vector<8x128xf32>
    %cst_78 = arith.constant 0.000000e+00 : f32
    %90 = vector.broadcast %cst_78 : f32 to vector<8x128xf32>
    %91 = arith.maximumf %89, %90 : vector<8x128xf32>
    %c4_i32_79 = arith.constant 4 : i32
    %c0_i32_80 = arith.constant 0 : i32
    %c0_i32_81 = arith.constant 0 : i32
    %c0_i32_82 = arith.constant 0 : i32
    %c0_i32_83 = arith.constant 0 : i32
    %92 = tpu.memref_slice %arg2[%c4_i32_79, %c0_i32_82, %c0_i32_83] : memref<6x128x128xbf16, #tpu.memory_space<any>> -> memref<1x128x128xbf16, #tpu.memory_space<any>>
    %93 = tpu.memref_squeeze %92 : memref<1x128x128xbf16, #tpu.memory_space<any>> -> memref<128x128xbf16, #tpu.memory_space<any>>
    %c0_i32_84 = arith.constant 0 : i32
    %c0_i32_85 = arith.constant 0 : i32
    %94 = tpu.memref_slice %arg5[%c0_i32_80, %c0_i32_84, %c0_i32_85] : memref<2x128x128xbf16, #tpu.memory_space<vmem>> -> memref<1x128x128xbf16, #tpu.memory_space<vmem>>
    %95 = tpu.memref_squeeze %94 : memref<1x128x128xbf16, #tpu.memory_space<vmem>> -> memref<128x128xbf16, #tpu.memory_space<vmem>>
    %96 = tpu.memref_slice %arg6[%c0_i32_81] : memref<2x!tpu.dma_semaphore, #tpu.memory_space<semaphore_mem>> -> memref<1x!tpu.dma_semaphore, #tpu.memory_space<semaphore_mem>>
    %97 = tpu.memref_squeeze %96 : memref<1x!tpu.dma_semaphore, #tpu.memory_space<semaphore_mem>> -> memref<!tpu.dma_semaphore, #tpu.memory_space<semaphore_mem>>
    tpu.wait_dma2 semaphore(%97 : memref<!tpu.dma_semaphore, #tpu.memory_space<semaphore_mem>>) src(%93 : memref<128x128xbf16, #tpu.memory_space<any>>) dst(%95 : memref<128x128xbf16, #tpu.memory_space<vmem>>)
    %c5_i32 = arith.constant 5 : i32
    %c1_i32_86 = arith.constant 1 : i32
    %c1_i32_87 = arith.constant 1 : i32
    %c0_i32_88 = arith.constant 0 : i32
    %c0_i32_89 = arith.constant 0 : i32
    %98 = tpu.memref_slice %arg2[%c5_i32, %c0_i32_88, %c0_i32_89] : memref<6x128x128xbf16, #tpu.memory_space<any>> -> memref<1x128x128xbf16, #tpu.memory_space<any>>
    %99 = tpu.memref_squeeze %98 : memref<1x128x128xbf16, #tpu.memory_space<any>> -> memref<128x128xbf16, #tpu.memory_space<any>>
    %c0_i32_90 = arith.constant 0 : i32
    %c0_i32_91 = arith.constant 0 : i32
    %100 = tpu.memref_slice %arg5[%c1_i32_86, %c0_i32_90, %c0_i32_91] : memref<2x128x128xbf16, #tpu.memory_space<vmem>> -> memref<1x128x128xbf16, #tpu.memory_space<vmem>>
    %101 = tpu.memref_squeeze %100 : memref<1x128x128xbf16, #tpu.memory_space<vmem>> -> memref<128x128xbf16, #tpu.memory_space<vmem>>
    %102 = tpu.memref_slice %arg6[%c1_i32_87] : memref<2x!tpu.dma_semaphore, #tpu.memory_space<semaphore_mem>> -> memref<1x!tpu.dma_semaphore, #tpu.memory_space<semaphore_mem>>
    %103 = tpu.memref_squeeze %102 : memref<1x!tpu.dma_semaphore, #tpu.memory_space<semaphore_mem>> -> memref<!tpu.dma_semaphore, #tpu.memory_space<semaphore_mem>>
    tpu.enqueue_dma source(%99 : memref<128x128xbf16, #tpu.memory_space<any>>) target(%101 : memref<128x128xbf16, #tpu.memory_space<vmem>>) target_semaphore(%103 : memref<!tpu.dma_semaphore, #tpu.memory_space<semaphore_mem>>)
    %104 = arith.truncf %91 : vector<8x128xf32> to vector<8x128xbf16>
    %c0_92 = arith.constant 0 : index
    %c0_93 = arith.constant 0 : index
    %c0_94 = arith.constant 0 : index
    %105 = vector.load %arg5[%c0_92, %c0_93, %c0_94] : memref<2x128x128xbf16, #tpu.memory_space<vmem>>, vector<1x128x128xbf16>
    %106 = vector.shape_cast %105 : vector<1x128x128xbf16> to vector<128x128xbf16>
    %cst_95 = arith.constant dense<0.000000e+00> : vector<8x128xf32>
    %107 = tpu.matmul %104, %106, %cst_95 {dimension_numbers = #tpu.dot_dimension_numbers<[1], [0], [0], [1], [0, 0, 1, 1], [], []>} : vector<8x128xbf16>, vector<128x128xbf16>, vector<8x128xf32> -> vector<8x128xf32>
    %108 = vector.extract_strided_slice %6 {offsets = [4, 0], sizes = [1, 128], strides = [1, 1]} : vector<8x128xf32> to vector<1x128xf32>
    %109 = vector.broadcast %108 : vector<1x128xf32> to vector<8x128xf32>
    %110 = arith.addf %107, %109 : vector<8x128xf32>
    %cst_96 = arith.constant 0.000000e+00 : f32
    %111 = vector.broadcast %cst_96 : f32 to vector<8x128xf32>
    %112 = arith.maximumf %110, %111 : vector<8x128xf32>
    %c5_i32_97 = arith.constant 5 : i32
    %c1_i32_98 = arith.constant 1 : i32
    %c1_i32_99 = arith.constant 1 : i32
    %c0_i32_100 = arith.constant 0 : i32
    %c0_i32_101 = arith.constant 0 : i32
    %113 = tpu.memref_slice %arg2[%c5_i32_97, %c0_i32_100, %c0_i32_101] : memref<6x128x128xbf16, #tpu.memory_space<any>> -> memref<1x128x128xbf16, #tpu.memory_space<any>>
    %114 = tpu.memref_squeeze %113 : memref<1x128x128xbf16, #tpu.memory_space<any>> -> memref<128x128xbf16, #tpu.memory_space<any>>
    %c0_i32_102 = arith.constant 0 : i32
    %c0_i32_103 = arith.constant 0 : i32
    %115 = tpu.memref_slice %arg5[%c1_i32_98, %c0_i32_102, %c0_i32_103] : memref<2x128x128xbf16, #tpu.memory_space<vmem>> -> memref<1x128x128xbf16, #tpu.memory_space<vmem>>
    %116 = tpu.memref_squeeze %115 : memref<1x128x128xbf16, #tpu.memory_space<vmem>> -> memref<128x128xbf16, #tpu.memory_space<vmem>>
    %117 = tpu.memref_slice %arg6[%c1_i32_99] : memref<2x!tpu.dma_semaphore, #tpu.memory_space<semaphore_mem>> -> memref<1x!tpu.dma_semaphore, #tpu.memory_space<semaphore_mem>>
    %118 = tpu.memref_squeeze %117 : memref<1x!tpu.dma_semaphore, #tpu.memory_space<semaphore_mem>> -> memref<!tpu.dma_semaphore, #tpu.memory_space<semaphore_mem>>
    tpu.wait_dma2 semaphore(%118 : memref<!tpu.dma_semaphore, #tpu.memory_space<semaphore_mem>>) src(%114 : memref<128x128xbf16, #tpu.memory_space<any>>) dst(%116 : memref<128x128xbf16, #tpu.memory_space<vmem>>)
    %119 = arith.truncf %112 : vector<8x128xf32> to vector<8x128xbf16>
    %c1_104 = arith.constant 1 : index
    %c0_105 = arith.constant 0 : index
    %c0_106 = arith.constant 0 : index
    %120 = vector.load %arg5[%c1_104, %c0_105, %c0_106] : memref<2x128x128xbf16, #tpu.memory_space<vmem>>, vector<1x128x128xbf16>
    %121 = vector.shape_cast %120 : vector<1x128x128xbf16> to vector<128x128xbf16>
    %cst_107 = arith.constant dense<0.000000e+00> : vector<8x128xf32>
    %122 = tpu.matmul %119, %121, %cst_107 {dimension_numbers = #tpu.dot_dimension_numbers<[1], [0], [0], [1], [0, 0, 1, 1], [], []>} : vector<8x128xbf16>, vector<128x128xbf16>, vector<8x128xf32> -> vector<8x128xf32>
    %123 = vector.extract_strided_slice %6 {offsets = [5, 0], sizes = [1, 128], strides = [1, 1]} : vector<8x128xf32> to vector<1x128xf32>
    %124 = vector.broadcast %123 : vector<1x128xf32> to vector<8x128xf32>
    %125 = arith.addf %122, %124 : vector<8x128xf32>
    %c0_108 = arith.constant 0 : index
    %c0_109 = arith.constant 0 : index
    %126 = vector.load %arg4[%c0_108, %c0_109] : memref<8x128xf32, #tpu.memory_space<vmem>>, vector<8x128xf32>
    tpu.vector_store %arg4[%c0_108, %c0_109], %125 {strides = array<i32>} : memref<8x128xf32, #tpu.memory_space<vmem>>, vector<8x128xf32>,
    return
  }
  func.func @transform_0(%arg0: i32) -> (i32, i32) {
    %c0_i32 = arith.constant 0 : i32
    %c0_i32_0 = arith.constant 0 : i32
    return %arg0, %c0_i32 : i32, i32
  }
  func.func @transform_2(%arg0: i32) -> (i32, i32) {
    %c0_i32 = arith.constant 0 : i32
    %c0_i32_0 = arith.constant 0 : i32
    %c0_i32_1 = arith.constant 0 : i32
    return %c0_i32, %c0_i32_0 : i32, i32
  }
  func.func @transform_3(%arg0: i32) -> (i32, i32) {
    %c0_i32 = arith.constant 0 : i32
    %c0_i32_0 = arith.constant 0 : i32
    return %arg0, %c0_i32 : i32, i32
  }
}

</mosaic_0001>

<llo_original>
// kernel: tpu_custom_call.1
$region0: #{tpu_custom_call.1}
  #allocation0 [shape = 'u32[]', space=smem, size = 0x4, offset = 0x4, fixed_abs, tag = 'smem constant byte address 0x4 - core index']
  #allocation1 [shape = 'u32[144,128]{1,0:T(1,128)}', space=vmem, size = 0x12000, scoped, tag = 'internal scratch']
  %s0 = inlined_call_operand.hbm [shape: f32[8,128], index: 0, kind: input, shape index: {}]
  %s1 = inlined_call_operand.hbm [shape: bf16[6,128,128], index: 1, kind: input, shape index: {}]
  %s2 = inlined_call_operand.hbm [shape: f32[8,128], index: 2, kind: input, shape index: {}]
  %s3 = inlined_call_operand.hbm [shape: f32[8,128], index: 3, kind: output, shape index: {}]
  %s4 = sld [smem:[#allocation0]]
  $region34: #{tpu_custom_call.1} parent=0
    _
  %s6 = ssub.s32 1, %s4
  %s7 = scalar_select 0, %s6, %s4
  $region1: #{tpu_custom_call.1} parent=0
    #allocation2 [shape = 'u8[4096]{0}', space=vmem, size = 0x1000, scoped, tag = 'input window, operand 0, single buffered']
    #allocation3 [shape = 's32[1]{0}', space=sflag, size = 0x4, scoped, tag = 'scoped memory for tpu_custom_call.1']
    #allocation4 [shape = 's32[1]{0}', space=sflag, size = 0x4, scoped, tag = 'scoped memory for tpu_custom_call.1']
    #allocation5 [shape = 'u8[196608]{0}', space=vmem, size = 0x30000, scoped, tag = 'input window, operand 1, single buffered']
    #allocation6 [shape = 's32[1]{0}', space=sflag, size = 0x4, scoped, tag = 'scoped memory for tpu_custom_call.1']
    #allocation7 [shape = 'u8[4096]{0}', space=vmem, size = 0x1000, scoped, tag = 'input window, operand 2, single buffered']
    #allocation8 [shape = 'u8[4096]{0}', space=vmem, size = 0x1000, scoped, tag = 'output window, operand 0, single buffered']
    %8 = vsyncpa [#allocation3], 0
    %9 = vsyncpa [#allocation6], 0
    %10 = vsyncpa [#allocation4], 0
    // Predicated region
    $region2: #{tpu_custom_call.1} parent=1 // pred_check
      _
    $region3: #{tpu_custom_call.1} parent=1 // pred_check_branch
      %12 = sbr.rel (0) target = $region5
    $region4: #{tpu_custom_call.1} parent=1 // pred_region
      %s14 = ssub.s32 128, 128
      %15 = vsyncadd [#allocation3], %s14
      %s17 = sshll.u32 [#allocation2], 4
      %s18 = int_to_ptr.vmem [resolvable:$true] %s17
      %20 = dma.hbm_to_vmem [thread:$0]  %s0, 128, %s18, [#allocation3]
    $region5: #{tpu_custom_call.1} parent=1 // pred_fallthru
      _
    // Predicated region
    $region6: #{tpu_custom_call.1} parent=1 // pred_check
      _
    $region7: #{tpu_custom_call.1} parent=1 // pred_check_branch
      %22 = sbr.rel (0) target = $region9
    $region8: #{tpu_custom_call.1} parent=1 // pred_region
      %s24 = ssub.s32 6144, 6144
      %25 = vsyncadd [#allocation6], %s24
      %s26 = sshll.u32 [#allocation5], 4
      %s27 = int_to_ptr.vmem [resolvable:$true] %s26
      %32 = dma.hbm_to_vmem [thread:$0]  %s1, 6144, %s27, [#allocation6], 64, 64, 4
    $region9: #{tpu_custom_call.1} parent=1 // pred_fallthru
      _
    // Predicated region
    $region10: #{tpu_custom_call.1} parent=1 // pred_check
      _
    $region11: #{tpu_custom_call.1} parent=1 // pred_check_branch
      %34 = sbr.rel (0) target = $region13
    $region12: #{tpu_custom_call.1} parent=1 // pred_region
      %s36 = ssub.s32 128, 128
      %37 = vsyncadd [#allocation6], %s36
      %s39 = sshll.u32 [#allocation7], 4
      %s40 = int_to_ptr.vmem [resolvable:$true] %s39
      %42 = dma.hbm_to_vmem [thread:$0]  %s2, 128, %s40, [#allocation6]
    $region13: #{tpu_custom_call.1} parent=1 // pred_fallthru
      _
    // Predicated region
    $region14: #{tpu_custom_call.1} parent=1 // pred_check
      _
    $region15: #{tpu_custom_call.1} parent=1 // pred_check_branch
      %44 = sbr.rel (0) target = $region17
    $region16: #{tpu_custom_call.1} parent=1 // pred_region
      %45 = dma.done [#allocation3], 128
    $region17: #{tpu_custom_call.1} parent=1 // pred_fallthru
      _
    // Predicated region
    $region18: #{tpu_custom_call.1} parent=1 // pred_check
      _
    $region19: #{tpu_custom_call.1} parent=1 // pred_check_branch
      %47 = sbr.rel (0) target = $region21
    $region20: #{tpu_custom_call.1} parent=1 // pred_region
      %48 = dma.done [#allocation6], 6144
    $region21: #{tpu_custom_call.1} parent=1 // pred_fallthru
      _
    // Predicated region
    $region22: #{tpu_custom_call.1} parent=1 // pred_check
      _
    $region23: #{tpu_custom_call.1} parent=1 // pred_check_branch
      %50 = sbr.rel (0) target = $region25
    $region24: #{tpu_custom_call.1} parent=1 // pred_region
      %51 = dma.done [#allocation6], 128
    $region25: #{tpu_custom_call.1} parent=1 // pred_fallthru
      _
    %v53 = vld [vmem:[#allocation7] sm:$0xff]
    %v54 = vld [vmem:[#allocation2] sm:$0xff]
    %v55 = vpack.c.bf16 %v54, %v54
    %v56 = vld [vmem:[#allocation5] sm:$0xf]
    %v57 = vld [vmem:[#allocation5 + $0x4] sm:$0xf]
    %v58 = vld [vmem:[#allocation5 + $0x8] sm:$0xf]
    %v59 = vld [vmem:[#allocation5 + $0xc] sm:$0xf]
    %v60 = vld [vmem:[#allocation5 + $0x10] sm:$0xf]
    %v61 = vld [vmem:[#allocation5 + $0x14] sm:$0xf]
    %v62 = vld [vmem:[#allocation5 + $0x18] sm:$0xf]
    %v63 = vld [vmem:[#allocation5 + $0x1c] sm:$0xf]
    %v64 = vld [vmem:[#allocation5 + $0x20] sm:$0xf]
    %v65 = vld [vmem:[#allocation5 + $0x24] sm:$0xf]
    %v66 = vld [vmem:[#allocation5 + $0x28] sm:$0xf]
    %v67 = vld [vmem:[#allocation5 + $0x2c] sm:$0xf]
    %v68 = vld [vmem:[#allocation5 + $0x30] sm:$0xf]
    %v69 = vld [vmem:[#allocation5 + $0x34] sm:$0xf]
    %v70 = vld [vmem:[#allocation5 + $0x38] sm:$0xf]
    %v71 = vld [vmem:[#allocation5 + $0x3c] sm:$0xf]
    %v72 = vlaneseq
    %v73 = vshrl.u32 %v72, 7
    %v74 = vsub.s32 0, %v73
    %v75 = vrot.slane %v53, %v74
    %v92 = vunpack.c.l.b16 %v56
    %v93 = vunpack.c.l.b16 %v57
    %v94 = vunpack.c.l.b16 %v58
    %v95 = vunpack.c.l.b16 %v59
    %v96 = vunpack.c.l.b16 %v60
    %v97 = vunpack.c.l.b16 %v61
    %v98 = vunpack.c.l.b16 %v62
    %v99 = vunpack.c.l.b16 %v63
    %v100 = vunpack.c.l.b16 %v64
    %v101 = vunpack.c.l.b16 %v65
    %v102 = vunpack.c.l.b16 %v66
    %v103 = vunpack.c.l.b16 %v67
    %v104 = vunpack.c.l.b16 %v68
    %v105 = vunpack.c.l.b16 %v69
    %v106 = vunpack.c.l.b16 %v70
    %v107 = vunpack.c.l.b16 %v71
    %v108 = vpack.c.b16 %v93, %v92
    %v109 = vpack.c.b16 %v95, %v94
    %v110 = vpack.c.b16 %v97, %v96
    %v111 = vpack.c.b16 %v99, %v98
    %v112 = vpack.c.b16 %v101, %v100
    %v113 = vpack.c.b16 %v103, %v102
    %v114 = vpack.c.b16 %v105, %v104
    %v115 = vpack.c.b16 %v107, %v106
    %124 = vmatprep.subr.bf16.mxu0 0
    %125 = vmatpush1.bf16.msra.mxu0 %v115
    %126 = vmatprep.subr.bf16.mxu0 0
    %127 = vmatpush1.bf16.msra.mxu0 %v114
    %128 = vmatprep.subr.bf16.mxu0 0
    %129 = vmatpush1.bf16.msra.mxu0 %v113
    %130 = vmatprep.subr.bf16.mxu0 0
    %131 = vmatpush1.bf16.msra.mxu0 %v112
    %132 = vmatprep.subr.bf16.mxu0 0
    %133 = vmatpush1.bf16.msra.mxu0 %v111
    %134 = vmatprep.subr.bf16.mxu0 0
    %135 = vmatpush1.bf16.msra.mxu0 %v110
    %136 = vmatprep.subr.bf16.mxu0 0
    %137 = vmatpush1.bf16.msra.mxu0 %v109
    %138 = vmatprep.subr.bf16.mxu0 0
    %139 = vmatpush1.bf16.msra.mxu0 %v108
    %140 = vmatprep.subr.bf16.mxu0 0
    %141 = vmatpush2.bf16.msra.mxu0 0
    %142 = vmatprep.subr.bf16.mxu0 0
    %143 = vmatpush2.bf16.msra.mxu0 0
    %144 = vmatprep.subr.bf16.mxu0 0
    %145 = vmatpush2.bf16.msra.mxu0 0
    %146 = vmatprep.subr.bf16.mxu0 0
    %147 = vmatpush2.bf16.msra.mxu0 0
    %148 = vmatprep.subr.bf16.mxu0 0
    %149 = vmatpush2.bf16.msra.mxu0 0
    %150 = vmatprep.subr.bf16.mxu0 0
    %151 = vmatpush2.bf16.msra.mxu0 0
    %152 = vmatprep.subr.bf16.mxu0 0
    %153 = vmatpush2.bf16.msra.mxu0 0
    %154 = vmatprep.subr.bf16.mxu0 0
    %155 = vmatpush2.bf16.msra.mxu0 0
    %156 = vmatprep.mubr.bf16.mxu0 0
    %157 = vmatmul.mubr.bf16.gmra.mxu0 %v55
    %v158 = vpop.f32.mrf.mxu0
    %v159 = vadd.f32 %v75, %v158
    %v160 = vpop.f32.mrf.mxu0
    %v161 = vpop.f32.mrf.mxu0
    %v162 = vpop.f32.mrf.mxu0
    %163 = vdwg.mxu0
    %v164 = vmax.f32 %v159, 0.0
    %v165 = vpack.c.bf16 %v164, %v164
    %s166 = scalar_lea.vmem [#allocation5], 64
    %v167 = vld [vmem:[%s166] sm:$0xf]
    %v168 = vld [vmem:[%s166 + $0x4] sm:$0xf]
    %v169 = vld [vmem:[%s166 + $0x8] sm:$0xf]
    %v170 = vld [vmem:[%s166 + $0xc] sm:$0xf]
    %v171 = vld [vmem:[%s166 + $0x10] sm:$0xf]
    %v172 = vld [vmem:[%s166 + $0x14] sm:$0xf]
    %v173 = vld [vmem:[%s166 + $0x18] sm:$0xf]
    %v174 = vld [vmem:[%s166 + $0x1c] sm:$0xf]
    %v175 = vld [vmem:[%s166 + $0x20] sm:$0xf]
    %v176 = vld [vmem:[%s166 + $0x24] sm:$0xf]
    %v177 = vld [vmem:[%s166 + $0x28] sm:$0xf]
    %v178 = vld [vmem:[%s166 + $0x2c] sm:$0xf]
    %v179 = vld [vmem:[%s166 + $0x30] sm:$0xf]
    %v180 = vld [vmem:[%s166 + $0x34] sm:$0xf]
    %v181 = vld [vmem:[%s166 + $0x38] sm:$0xf]
    %v182 = vld [vmem:[%s166 + $0x3c] sm:$0xf]
    %v183 = vlaneseq
    %v184 = vshrl.u32 %v183, 7
    %v185 = vsub.s32 1, %v184
    %v186 = vrot.slane %v53, %v185
    %v203 = vunpack.c.l.b16 %v167
    %v204 = vunpack.c.l.b16 %v168
    %v205 = vunpack.c.l.b16 %v169
    %v206 = vunpack.c.l.b16 %v170
    %v207 = vunpack.c.l.b16 %v171
    %v208 = vunpack.c.l.b16 %v172
    %v209 = vunpack.c.l.b16 %v173
    %v210 = vunpack.c.l.b16 %v174
    %v211 = vunpack.c.l.b16 %v175
    %v212 = vunpack.c.l.b16 %v176
    %v213 = vunpack.c.l.b16 %v177
    %v214 = vunpack.c.l.b16 %v178
    %v215 = vunpack.c.l.b16 %v179
    %v216 = vunpack.c.l.b16 %v180
    %v217 = vunpack.c.l.b16 %v181
    %v218 = vunpack.c.l.b16 %v182
    %v219 = vpack.c.b16 %v204, %v203
    %v220 = vpack.c.b16 %v206, %v205
    %v221 = vpack.c.b16 %v208, %v207
    %v222 = vpack.c.b16 %v210, %v209
    %v223 = vpack.c.b16 %v212, %v211
    %v224 = vpack.c.b16 %v214, %v213
    %v225 = vpack.c.b16 %v216, %v215
    %v226 = vpack.c.b16 %v218, %v217
    %235 = vmatprep.subr.bf16.mxu0 0
    %236 = vmatpush1.bf16.msra.mxu0 %v226
    %237 = vmatprep.subr.bf16.mxu0 0
    %238 = vmatpush1.bf16.msra.mxu0 %v225
    %239 = vmatprep.subr.bf16.mxu0 0
    %240 = vmatpush1.bf16.msra.mxu0 %v224
    %241 = vmatprep.subr.bf16.mxu0 0
    %242 = vmatpush1.bf16.msra.mxu0 %v223
    %243 = vmatprep.subr.bf16.mxu0 0
    %244 = vmatpush1.bf16.msra.mxu0 %v222
    %245 = vmatprep.subr.bf16.mxu0 0
    %246 = vmatpush1.bf16.msra.mxu0 %v221
    %247 = vmatprep.subr.bf16.mxu0 0
    %248 = vmatpush1.bf16.msra.mxu0 %v220
    %249 = vmatprep.subr.bf16.mxu0 0
    %250 = vmatpush1.bf16.msra.mxu0 %v219
    %251 = vmatprep.subr.bf16.mxu0 0
    %252 = vmatpush2.bf16.msra.mxu0 0
    %253 = vmatprep.subr.bf16.mxu0 0
    %254 = vmatpush2.bf16.msra.mxu0 0
    %255 = vmatprep.subr.bf16.mxu0 0
    %256 = vmatpush2.bf16.msra.mxu0 0
    %257 = vmatprep.subr.bf16.mxu0 0
    %258 = vmatpush2.bf16.msra.mxu0 0
    %259 = vmatprep.subr.bf16.mxu0 0
    %260 = vmatpush2.bf16.msra.mxu0 0
    %261 = vmatprep.subr.bf16.mxu0 0
    %262 = vmatpush2.bf16.msra.mxu0 0
    %263 = vmatprep.subr.bf16.mxu0 0
    %264 = vmatpush2.bf16.msra.mxu0 0
    %265 = vmatprep.subr.bf16.mxu0 0
    %266 = vmatpush2.bf16.msra.mxu0 0
    %267 = vmatprep.mubr.bf16.mxu0 0
    %268 = vmatmul.mubr.bf16.gmra.mxu0 %v165
    %v269 = vpop.f32.mrf.mxu0
    %v270 = vadd.f32 %v186, %v269
    %v271 = vpop.f32.mrf.mxu0
    %v272 = vpop.f32.mrf.mxu0
    %v273 = vpop.f32.mrf.mxu0
    %274 = vdwg.mxu0
    %v275 = vmax.f32 %v270, 0.0
    %v276 = vpack.c.bf16 %v275, %v275
    %s277 = scalar_lea.vmem [#allocation5], 128
    %v278 = vld [vmem:[%s277] sm:$0xf]
    %v279 = vld [vmem:[%s277 + $0x4] sm:$0xf]
    %v280 = vld [vmem:[%s277 + $0x8] sm:$0xf]
    %v281 = vld [vmem:[%s277 + $0xc] sm:$0xf]
    %v282 = vld [vmem:[%s277 + $0x10] sm:$0xf]
    %v283 = vld [vmem:[%s277 + $0x14] sm:$0xf]
    %v284 = vld [vmem:[%s277 + $0x18] sm:$0xf]
    %v285 = vld [vmem:[%s277 + $0x1c] sm:$0xf]
    %v286 = vld [vmem:[%s277 + $0x20] sm:$0xf]
    %v287 = vld [vmem:[%s277 + $0x24] sm:$0xf]
    %v288 = vld [vmem:[%s277 + $0x28] sm:$0xf]
    %v289 = vld [vmem:[%s277 + $0x2c] sm:$0xf]
    %v290 = vld [vmem:[%s277 + $0x30] sm:$0xf]
    %v291 = vld [vmem:[%s277 + $0x34] sm:$0xf]
    %v292 = vld [vmem:[%s277 + $0x38] sm:$0xf]
    %v293 = vld [vmem:[%s277 + $0x3c] sm:$0xf]
    %v294 = vlaneseq
    %v295 = vshrl.u32 %v294, 7
    %v296 = vsub.s32 2, %v295
    %v297 = vrot.slane %v53, %v296
    %v314 = vunpack.c.l.b16 %v278
    %v315 = vunpack.c.l.b16 %v279
    %v316 = vunpack.c.l.b16 %v280
    %v317 = vunpack.c.l.b16 %v281
    %v318 = vunpack.c.l.b16 %v282
    %v319 = vunpack.c.l.b16 %v283
    %v320 = vunpack.c.l.b16 %v284
    %v321 = vunpack.c.l.b16 %v285
    %v322 = vunpack.c.l.b16 %v286
    %v323 = vunpack.c.l.b16 %v287
    %v324 = vunpack.c.l.b16 %v288
    %v325 = vunpack.c.l.b16 %v289
    %v326 = vunpack.c.l.b16 %v290
    %v327 = vunpack.c.l.b16 %v291
    %v328 = vunpack.c.l.b16 %v292
    %v329 = vunpack.c.l.b16 %v293
    %v330 = vpack.c.b16 %v315, %v314
    %v331 = vpack.c.b16 %v317, %v316
    %v332 = vpack.c.b16 %v319, %v318
    %v333 = vpack.c.b16 %v321, %v320
    %v334 = vpack.c.b16 %v323, %v322
    %v335 = vpack.c.b16 %v325, %v324
    %v336 = vpack.c.b16 %v327, %v326
    %v337 = vpack.c.b16 %v329, %v328
    %346 = vmatprep.subr.bf16.mxu0 0
    %347 = vmatpush1.bf16.msra.mxu0 %v337
    %348 = vmatprep.subr.bf16.mxu0 0
    %349 = vmatpush1.bf16.msra.mxu0 %v336
    %350 = vmatprep.subr.bf16.mxu0 0
    %351 = vmatpush1.bf16.msra.mxu0 %v335
    %352 = vmatprep.subr.bf16.mxu0 0
    %353 = vmatpush1.bf16.msra.mxu0 %v334
    %354 = vmatprep.subr.bf16.mxu0 0
    %355 = vmatpush1.bf16.msra.mxu0 %v333
    %356 = vmatprep.subr.bf16.mxu0 0
    %357 = vmatpush1.bf16.msra.mxu0 %v332
    %358 = vmatprep.subr.bf16.mxu0 0
    %359 = vmatpush1.bf16.msra.mxu0 %v331
    %360 = vmatprep.subr.bf16.mxu0 0
    %361 = vmatpush1.bf16.msra.mxu0 %v330
    %362 = vmatprep.subr.bf16.mxu0 0
    %363 = vmatpush2.bf16.msra.mxu0 0
    %364 = vmatprep.subr.bf16.mxu0 0
    %365 = vmatpush2.bf16.msra.mxu0 0
    %366 = vmatprep.subr.bf16.mxu0 0
    %367 = vmatpush2.bf16.msra.mxu0 0
    %368 = vmatprep.subr.bf16.mxu0 0
    %369 = vmatpush2.bf16.msra.mxu0 0
    %370 = vmatprep.subr.bf16.mxu0 0
    %371 = vmatpush2.bf16.msra.mxu0 0
    %372 = vmatprep.subr.bf16.mxu0 0
    %373 = vmatpush2.bf16.msra.mxu0 0
    %374 = vmatprep.subr.bf16.mxu0 0
    %375 = vmatpush2.bf16.msra.mxu0 0
    %376 = vmatprep.subr.bf16.mxu0 0
    %377 = vmatpush2.bf16.msra.mxu0 0
    %378 = vmatprep.mubr.bf16.mxu0 0
    %379 = vmatmul.mubr.bf16.gmra.mxu0 %v276
    %v380 = vpop.f32.mrf.mxu0
    %v381 = vadd.f32 %v297, %v380
    %v382 = vpop.f32.mrf.mxu0
    %v383 = vpop.f32.mrf.mxu0
    %v384 = vpop.f32.mrf.mxu0
    %385 = vdwg.mxu0
    %v386 = vmax.f32 %v381, 0.0
    %v387 = vpack.c.bf16 %v386, %v386
    %s388 = scalar_lea.vmem [#allocation5], 192
    %v389 = vld [vmem:[%s388] sm:$0xf]
    %v390 = vld [vmem:[%s388 + $0x4] sm:$0xf]
    %v391 = vld [vmem:[%s388 + $0x8] sm:$0xf]
    %v392 = vld [vmem:[%s388 + $0xc] sm:$0xf]
    %v393 = vld [vmem:[%s388 + $0x10] sm:$0xf]
    %v394 = vld [vmem:[%s388 + $0x14] sm:$0xf]
    %v395 = vld [vmem:[%s388 + $0x18] sm:$0xf]
    %v396 = vld [vmem:[%s388 + $0x1c] sm:$0xf]
    %v397 = vld [vmem:[%s388 + $0x20] sm:$0xf]
    %v398 = vld [vmem:[%s388 + $0x24] sm:$0xf]
    %v399 = vld [vmem:[%s388 + $0x28] sm:$0xf]
    %v400 = vld [vmem:[%s388 + $0x2c] sm:$0xf]
    %v401 = vld [vmem:[%s388 + $0x30] sm:$0xf]
    %v402 = vld [vmem:[%s388 + $0x34] sm:$0xf]
    %v403 = vld [vmem:[%s388 + $0x38] sm:$0xf]
    %v404 = vld [vmem:[%s388 + $0x3c] sm:$0xf]
    %v405 = vlaneseq
    %v406 = vshrl.u32 %v405, 7
    %v407 = vsub.s32 3, %v406
    %v408 = vrot.slane %v53, %v407
    %v425 = vunpack.c.l.b16 %v389
    %v426 = vunpack.c.l.b16 %v390
    %v427 = vunpack.c.l.b16 %v391
    %v428 = vunpack.c.l.b16 %v392
    %v429 = vunpack.c.l.b16 %v393
    %v430 = vunpack.c.l.b16 %v394
    %v431 = vunpack.c.l.b16 %v395
    %v432 = vunpack.c.l.b16 %v396
    %v433 = vunpack.c.l.b16 %v397
    %v434 = vunpack.c.l.b16 %v398
    %v435 = vunpack.c.l.b16 %v399
    %v436 = vunpack.c.l.b16 %v400
    %v437 = vunpack.c.l.b16 %v401
    %v438 = vunpack.c.l.b16 %v402
    %v439 = vunpack.c.l.b16 %v403
    %v440 = vunpack.c.l.b16 %v404
    %v441 = vpack.c.b16 %v426, %v425
    %v442 = vpack.c.b16 %v428, %v427
    %v443 = vpack.c.b16 %v430, %v429
    %v444 = vpack.c.b16 %v432, %v431
    %v445 = vpack.c.b16 %v434, %v433
    %v446 = vpack.c.b16 %v436, %v435
    %v447 = vpack.c.b16 %v438, %v437
    %v448 = vpack.c.b16 %v440, %v439
    %457 = vmatprep.subr.bf16.mxu0 0
    %458 = vmatpush1.bf16.msra.mxu0 %v448
    %459 = vmatprep.subr.bf16.mxu0 0
    %460 = vmatpush1.bf16.msra.mxu0 %v447
    %461 = vmatprep.subr.bf16.mxu0 0
    %462 = vmatpush1.bf16.msra.mxu0 %v446
    %463 = vmatprep.subr.bf16.mxu0 0
    %464 = vmatpush1.bf16.msra.mxu0 %v445
    %465 = vmatprep.subr.bf16.mxu0 0
    %466 = vmatpush1.bf16.msra.mxu0 %v444
    %467 = vmatprep.subr.bf16.mxu0 0
    %468 = vmatpush1.bf16.msra.mxu0 %v443
    %469 = vmatprep.subr.bf16.mxu0 0
    %470 = vmatpush1.bf16.msra.mxu0 %v442
    %471 = vmatprep.subr.bf16.mxu0 0
    %472 = vmatpush1.bf16.msra.mxu0 %v441
    %473 = vmatprep.subr.bf16.mxu0 0
    %474 = vmatpush2.bf16.msra.mxu0 0
    %475 = vmatprep.subr.bf16.mxu0 0
    %476 = vmatpush2.bf16.msra.mxu0 0
    %477 = vmatprep.subr.bf16.mxu0 0
    %478 = vmatpush2.bf16.msra.mxu0 0
    %479 = vmatprep.subr.bf16.mxu0 0
    %480 = vmatpush2.bf16.msra.mxu0 0
    %481 = vmatprep.subr.bf16.mxu0 0
    %482 = vmatpush2.bf16.msra.mxu0 0
    %483 = vmatprep.subr.bf16.mxu0 0
    %484 = vmatpush2.bf16.msra.mxu0 0
    %485 = vmatprep.subr.bf16.mxu0 0
    %486 = vmatpush2.bf16.msra.mxu0 0
    %487 = vmatprep.subr.bf16.mxu0 0
    %488 = vmatpush2.bf16.msra.mxu0 0
    %489 = vmatprep.mubr.bf16.mxu0 0
    %490 = vmatmul.mubr.bf16.gmra.mxu0 %v387
    %v491 = vpop.f32.mrf.mxu0
    %v492 = vadd.f32 %v408, %v491
    %v493 = vpop.f32.mrf.mxu0
    %v494 = vpop.f32.mrf.mxu0
    %v495 = vpop.f32.mrf.mxu0
    %496 = vdwg.mxu0
    %v497 = vmax.f32 %v492, 0.0
    %v498 = vpack.c.bf16 %v497, %v497
    %s499 = scalar_lea.vmem [#allocation5], 256
    %v500 = vld [vmem:[%s499] sm:$0xf]
    %v501 = vld [vmem:[%s499 + $0x4] sm:$0xf]
    %v502 = vld [vmem:[%s499 + $0x8] sm:$0xf]
    %v503 = vld [vmem:[%s499 + $0xc] sm:$0xf]
    %v504 = vld [vmem:[%s499 + $0x10] sm:$0xf]
    %v505 = vld [vmem:[%s499 + $0x14] sm:$0xf]
    %v506 = vld [vmem:[%s499 + $0x18] sm:$0xf]
    %v507 = vld [vmem:[%s499 + $0x1c] sm:$0xf]
    %v508 = vld [vmem:[%s499 + $0x20] sm:$0xf]
    %v509 = vld [vmem:[%s499 + $0x24] sm:$0xf]
    %v510 = vld [vmem:[%s499 + $0x28] sm:$0xf]
    %v511 = vld [vmem:[%s499 + $0x2c] sm:$0xf]
    %v512 = vld [vmem:[%s499 + $0x30] sm:$0xf]
    %v513 = vld [vmem:[%s499 + $0x34] sm:$0xf]
    %v514 = vld [vmem:[%s499 + $0x38] sm:$0xf]
    %v515 = vld [vmem:[%s499 + $0x3c] sm:$0xf]
    %v516 = vlaneseq
    %v517 = vshrl.u32 %v516, 7
    %v518 = vsub.s32 4, %v517
    %v519 = vrot.slane %v53, %v518
    %v536 = vunpack.c.l.b16 %v500
    %v537 = vunpack.c.l.b16 %v501
    %v538 = vunpack.c.l.b16 %v502
    %v539 = vunpack.c.l.b16 %v503
    %v540 = vunpack.c.l.b16 %v504
    %v541 = vunpack.c.l.b16 %v505
    %v542 = vunpack.c.l.b16 %v506
    %v543 = vunpack.c.l.b16 %v507
    %v544 = vunpack.c.l.b16 %v508
    %v545 = vunpack.c.l.b16 %v509
    %v546 = vunpack.c.l.b16 %v510
    %v547 = vunpack.c.l.b16 %v511
    %v548 = vunpack.c.l.b16 %v512
    %v549 = vunpack.c.l.b16 %v513
    %v550 = vunpack.c.l.b16 %v514
    %v551 = vunpack.c.l.b16 %v515
    %v552 = vpack.c.b16 %v537, %v536
    %v553 = vpack.c.b16 %v539, %v538
    %v554 = vpack.c.b16 %v541, %v540
    %v555 = vpack.c.b16 %v543, %v542
    %v556 = vpack.c.b16 %v545, %v544
    %v557 = vpack.c.b16 %v547, %v546
    %v558 = vpack.c.b16 %v549, %v548
    %v559 = vpack.c.b16 %v551, %v550
    %568 = vmatprep.subr.bf16.mxu0 0
    %569 = vmatpush1.bf16.msra.mxu0 %v559
    %570 = vmatprep.subr.bf16.mxu0 0
    %571 = vmatpush1.bf16.msra.mxu0 %v558
    %572 = vmatprep.subr.bf16.mxu0 0
    %573 = vmatpush1.bf16.msra.mxu0 %v557
    %574 = vmatprep.subr.bf16.mxu0 0
    %575 = vmatpush1.bf16.msra.mxu0 %v556
    %576 = vmatprep.subr.bf16.mxu0 0
    %577 = vmatpush1.bf16.msra.mxu0 %v555
    %578 = vmatprep.subr.bf16.mxu0 0
    %579 = vmatpush1.bf16.msra.mxu0 %v554
    %580 = vmatprep.subr.bf16.mxu0 0
    %581 = vmatpush1.bf16.msra.mxu0 %v553
    %582 = vmatprep.subr.bf16.mxu0 0
    %583 = vmatpush1.bf16.msra.mxu0 %v552
    %584 = vmatprep.subr.bf16.mxu0 0
    %585 = vmatpush2.bf16.msra.mxu0 0
    %586 = vmatprep.subr.bf16.mxu0 0
    %587 = vmatpush2.bf16.msra.mxu0 0
    %588 = vmatprep.subr.bf16.mxu0 0
    %589 = vmatpush2.bf16.msra.mxu0 0
    %590 = vmatprep.subr.bf16.mxu0 0
    %591 = vmatpush2.bf16.msra.mxu0 0
    %592 = vmatprep.subr.bf16.mxu0 0
    %593 = vmatpush2.bf16.msra.mxu0 0
    %594 = vmatprep.subr.bf16.mxu0 0
    %595 = vmatpush2.bf16.msra.mxu0 0
    %596 = vmatprep.subr.bf16.mxu0 0
    %597 = vmatpush2.bf16.msra.mxu0 0
    %598 = vmatprep.subr.bf16.mxu0 0
    %599 = vmatpush2.bf16.msra.mxu0 0
    %600 = vmatprep.mubr.bf16.mxu0 0
    %601 = vmatmul.mubr.bf16.gmra.mxu0 %v498
    %v602 = vpop.f32.mrf.mxu0
    %v603 = vadd.f32 %v519, %v602
    %v604 = vpop.f32.mrf.mxu0
    %v605 = vpop.f32.mrf.mxu0
    %v606 = vpop.f32.mrf.mxu0
    %607 = vdwg.mxu0
    %v608 = vmax.f32 %v603, 0.0
    %v609 = vpack.c.bf16 %v608, %v608
    %s610 = scalar_lea.vmem [#allocation5], 320
    %v611 = vld [vmem:[%s610] sm:$0xf]
    %v612 = vld [vmem:[%s610 + $0x4] sm:$0xf]
    %v613 = vld [vmem:[%s610 + $0x8] sm:$0xf]
    %v614 = vld [vmem:[%s610 + $0xc] sm:$0xf]
    %v615 = vld [vmem:[%s610 + $0x10] sm:$0xf]
    %v616 = vld [vmem:[%s610 + $0x14] sm:$0xf]
    %v617 = vld [vmem:[%s610 + $0x18] sm:$0xf]
    %v618 = vld [vmem:[%s610 + $0x1c] sm:$0xf]
    %v619 = vld [vmem:[%s610 + $0x20] sm:$0xf]
    %v620 = vld [vmem:[%s610 + $0x24] sm:$0xf]
    %v621 = vld [vmem:[%s610 + $0x28] sm:$0xf]
    %v622 = vld [vmem:[%s610 + $0x2c] sm:$0xf]
    %v623 = vld [vmem:[%s610 + $0x30] sm:$0xf]
    %v624 = vld [vmem:[%s610 + $0x34] sm:$0xf]
    %v625 = vld [vmem:[%s610 + $0x38] sm:$0xf]
    %v626 = vld [vmem:[%s610 + $0x3c] sm:$0xf]
    %v627 = vlaneseq
    %v628 = vshrl.u32 %v627, 7
    %v629 = vsub.s32 5, %v628
    %v630 = vrot.slane %v53, %v629
    %v647 = vunpack.c.l.b16 %v611
    %v648 = vunpack.c.l.b16 %v612
    %v649 = vunpack.c.l.b16 %v613
    %v650 = vunpack.c.l.b16 %v614
    %v651 = vunpack.c.l.b16 %v615
    %v652 = vunpack.c.l.b16 %v616
    %v653 = vunpack.c.l.b16 %v617
    %v654 = vunpack.c.l.b16 %v618
    %v655 = vunpack.c.l.b16 %v619
    %v656 = vunpack.c.l.b16 %v620
    %v657 = vunpack.c.l.b16 %v621
    %v658 = vunpack.c.l.b16 %v622
    %v659 = vunpack.c.l.b16 %v623
    %v660 = vunpack.c.l.b16 %v624
    %v661 = vunpack.c.l.b16 %v625
    %v662 = vunpack.c.l.b16 %v626
    %v663 = vpack.c.b16 %v648, %v647
    %v664 = vpack.c.b16 %v650, %v649
    %v665 = vpack.c.b16 %v652, %v651
    %v666 = vpack.c.b16 %v654, %v653
    %v667 = vpack.c.b16 %v656, %v655
    %v668 = vpack.c.b16 %v658, %v657
    %v669 = vpack.c.b16 %v660, %v659
    %v670 = vpack.c.b16 %v662, %v661
    %679 = vmatprep.subr.bf16.mxu0 0
    %680 = vmatpush1.bf16.msra.mxu0 %v670
    %681 = vmatprep.subr.bf16.mxu0 0
    %682 = vmatpush1.bf16.msra.mxu0 %v669
    %683 = vmatprep.subr.bf16.mxu0 0
    %684 = vmatpush1.bf16.msra.mxu0 %v668
    %685 = vmatprep.subr.bf16.mxu0 0
    %686 = vmatpush1.bf16.msra.mxu0 %v667
    %687 = vmatprep.subr.bf16.mxu0 0
    %688 = vmatpush1.bf16.msra.mxu0 %v666
    %689 = vmatprep.subr.bf16.mxu0 0
    %690 = vmatpush1.bf16.msra.mxu0 %v665
    %691 = vmatprep.subr.bf16.mxu0 0
    %692 = vmatpush1.bf16.msra.mxu0 %v664
    %693 = vmatprep.subr.bf16.mxu0 0
    %694 = vmatpush1.bf16.msra.mxu0 %v663
    %695 = vmatprep.subr.bf16.mxu0 0
    %696 = vmatpush2.bf16.msra.mxu0 0
    %697 = vmatprep.subr.bf16.mxu0 0
    %698 = vmatpush2.bf16.msra.mxu0 0
    %699 = vmatprep.subr.bf16.mxu0 0
    %700 = vmatpush2.bf16.msra.mxu0 0
    %701 = vmatprep.subr.bf16.mxu0 0
    %702 = vmatpush2.bf16.msra.mxu0 0
    %703 = vmatprep.subr.bf16.mxu0 0
    %704 = vmatpush2.bf16.msra.mxu0 0
    %705 = vmatprep.subr.bf16.mxu0 0
    %706 = vmatpush2.bf16.msra.mxu0 0
    %707 = vmatprep.subr.bf16.mxu0 0
    %708 = vmatpush2.bf16.msra.mxu0 0
    %709 = vmatprep.subr.bf16.mxu0 0
    %710 = vmatpush2.bf16.msra.mxu0 0
    %711 = vmatprep.mubr.bf16.mxu0 0
    %712 = vmatmul.mubr.bf16.gmra.mxu0 %v609
    %v713 = vpop.f32.mrf.mxu0
    %v714 = vadd.f32 %v630, %v713
    %v715 = vpop.f32.mrf.mxu0
    %v716 = vpop.f32.mrf.mxu0
    %v717 = vpop.f32.mrf.mxu0
    %718 = vdwg.mxu0
    %719 = vst [vmem:[#allocation8] sm:$0xff] %v714
    // Predicated region
    $region26: #{tpu_custom_call.1} parent=1 // pred_check
      _
    $region27: #{tpu_custom_call.1} parent=1 // pred_check_branch
      %721 = sbr.rel (0) target = $region29
    $region28: #{tpu_custom_call.1} parent=1 // pred_region
      %s723 = ssub.s32 128, 128
      %724 = vsyncadd [#allocation4], %s723
      %s726 = sshll.u32 [#allocation8], 4
      %s727 = int_to_ptr.vmem [resolvable:$true] %s726
      %729 = dma.vmem_to_hbm [thread:$0]  %s727, 128, %s3, [#allocation4]
    $region29: #{tpu_custom_call.1} parent=1 // pred_fallthru
      _
    // Predicated region
    $region30: #{tpu_custom_call.1} parent=1 // pred_check
      _
    $region31: #{tpu_custom_call.1} parent=1 // pred_check_branch
      %731 = sbr.rel (0) target = $region33
    $region32: #{tpu_custom_call.1} parent=1 // pred_region
      %732 = dma.done [#allocation4], 128
    $region33: #{tpu_custom_call.1} parent=1 // pred_fallthru
      _
    %733 = vsyncpa [#allocation3], 1
    %734 = vsyncpa [#allocation6], 1
    %735 = vsyncpa [#allocation4], 1

// kernel: tpu_custom_call.1
$region0: #{tpu_custom_call.1}
  #allocation0 [shape = 'u32[]', space=smem, size = 0x4, offset = 0x4, fixed_abs, tag = 'smem constant byte address 0x4 - core index']
  #allocation1 [shape = 'u32[144,128]{1,0:T(1,128)}', space=vmem, size = 0x12000, scoped, tag = 'internal scratch']
  %s0 = inlined_call_operand.hbm [shape: f32[8,128], index: 0, kind: input, shape index: {}]
  %s1 = inlined_call_operand.hbm [shape: bf16[6,128,128], index: 1, kind: input, shape index: {}]
  %s2 = inlined_call_operand.hbm [shape: f32[8,128], index: 2, kind: input, shape index: {}]
  %s3 = inlined_call_operand.hbm [shape: f32[8,128], index: 3, kind: output, shape index: {}]
  %s4 = sld [smem:[#allocation0]]
  $region34: #{tpu_custom_call.1} parent=0
    _
  %s6 = ssub.s32 1, %s4
  %s7 = scalar_select 0, %s6, %s4
  $region1: #{tpu_custom_call.1} parent=0
    #allocation2 [shape = 'u8[4096]{0}', space=vmem, size = 0x1000, scoped, tag = 'input window, operand 0, single buffered']
    #allocation3 [shape = 's32[1]{0}', space=sflag, size = 0x4, scoped, tag = 'scoped memory for tpu_custom_call.1']
    #allocation4 [shape = 's32[1]{0}', space=sflag, size = 0x4, scoped, tag = 'scoped memory for tpu_custom_call.1']
    #allocation5 [shape = 'u8[196608]{0}', space=vmem, size = 0x30000, scoped, tag = 'input window, operand 1, single buffered']
    #allocation6 [shape = 's32[1]{0}', space=sflag, size = 0x4, scoped, tag = 'scoped memory for tpu_custom_call.1']
    #allocation7 [shape = 'u8[4096]{0}', space=vmem, size = 0x1000, scoped, tag = 'input window, operand 2, single buffered']
    #allocation8 [shape = 'u8[4096]{0}', space=vmem, size = 0x1000, scoped, tag = 'output window, operand 0, single buffered']
    %8 = vsyncpa [#allocation3], 0
    %9 = vsyncpa [#allocation6], 0
    %10 = vsyncpa [#allocation4], 0
    // Predicated region
    $region2: #{tpu_custom_call.1} parent=1 // pred_check
      _
    $region3: #{tpu_custom_call.1} parent=1 // pred_check_branch
      %12 = sbr.rel (0) target = $region5
    $region4: #{tpu_custom_call.1} parent=1 // pred_region
      %s14 = ssub.s32 128, 128
      %15 = vsyncadd [#allocation3], %s14
      %s17 = sshll.u32 [#allocation2], 4
      %s18 = int_to_ptr.vmem [resolvable:$true] %s17
      %20 = dma.hbm_to_vmem [thread:$0]  %s0, 128, %s18, [#allocation3]
    $region5: #{tpu_custom_call.1} parent=1 // pred_fallthru
      _
    // Predicated region
    $region6: #{tpu_custom_call.1} parent=1 // pred_check
      _
    $region7: #{tpu_custom_call.1} parent=1 // pred_check_branch
      %22 = sbr.rel (0) target = $region9
    $region8: #{tpu_custom_call.1} parent=1 // pred_region
      %s24 = ssub.s32 6144, 6144
      %25 = vsyncadd [#allocation6], %s24
      %s26 = sshll.u32 [#allocation5], 4
      %s27 = int_to_ptr.vmem [resolvable:$true] %s26
      %32 = dma.hbm_to_vmem [thread:$0]  %s1, 6144, %s27, [#allocation6], 64, 64, 4
    $region9: #{tpu_custom_call.1} parent=1 // pred_fallthru
      _
    // Predicated region
    $region10: #{tpu_custom_call.1} parent=1 // pred_check
      _
    $region11: #{tpu_custom_call.1} parent=1 // pred_check_branch
      %34 = sbr.rel (0) target = $region13
    $region12: #{tpu_custom_call.1} parent=1 // pred_region
      %s36 = ssub.s32 128, 128
      %37 = vsyncadd [#allocation6], %s36
      %s39 = sshll.u32 [#allocation7], 4
      %s40 = int_to_ptr.vmem [resolvable:$true] %s39
      %42 = dma.hbm_to_vmem [thread:$0]  %s2, 128, %s40, [#allocation6]
    $region13: #{tpu_custom_call.1} parent=1 // pred_fallthru
      _
    // Predicated region
    $region14: #{tpu_custom_call.1} parent=1 // pred_check
      _
    $region15: #{tpu_custom_call.1} parent=1 // pred_check_branch
      %44 = sbr.rel (0) target = $region17
    $region16: #{tpu_custom_call.1} parent=1 // pred_region
      %45 = dma.done [#allocation3], 128
    $region17: #{tpu_custom_call.1} parent=1 // pred_fallthru
      _
    // Predicated region
    $region18: #{tpu_custom_call.1} parent=1 // pred_check
      _
    $region19: #{tpu_custom_call.1} parent=1 // pred_check_branch
      %47 = sbr.rel (0) target = $region21
    $region20: #{tpu_custom_call.1} parent=1 // pred_region
      %48 = dma.done [#allocation6], 6144
    $region21: #{tpu_custom_call.1} parent=1 // pred_fallthru
      _
    // Predicated region
    $region22: #{tpu_custom_call.1} parent=1 // pred_check
      _
    $region23: #{tpu_custom_call.1} parent=1 // pred_check_branch
      %50 = sbr.rel (0) target = $region25
    $region24: #{tpu_custom_call.1} parent=1 // pred_region
      %51 = dma.done [#allocation6], 128
    $region25: #{tpu_custom_call.1} parent=1 // pred_fallthru
      _
    %v53 = vld [vmem:[#allocation7] sm:$0xff]
    %v54 = vld [vmem:[#allocation2] sm:$0xff]
    %v55 = vpack.c.bf16 %v54, %v54
    %v56 = vld [vmem:[#allocation5] sm:$0xf]
    %v57 = vld [vmem:[#allocation5 + $0x4] sm:$0xf]
    %v58 = vld [vmem:[#allocation5 + $0x8] sm:$0xf]
    %v59 = vld [vmem:[#allocation5 + $0xc] sm:$0xf]
    %v60 = vld [vmem:[#allocation5 + $0x10] sm:$0xf]
    %v61 = vld [vmem:[#allocation5 + $0x14] sm:$0xf]
    %v62 = vld [vmem:[#allocation5 + $0x18] sm:$0xf]
    %v63 = vld [vmem:[#allocation5 + $0x1c] sm:$0xf]
    %v64 = vld [vmem:[#allocation5 + $0x20] sm:$0xf]
    %v65 = vld [vmem:[#allocation5 + $0x24] sm:$0xf]
    %v66 = vld [vmem:[#allocation5 + $0x28] sm:$0xf]
    %v67 = vld [vmem:[#allocation5 + $0x2c] sm:$0xf]
    %v68 = vld [vmem:[#allocation5 + $0x30] sm:$0xf]
    %v69 = vld [vmem:[#allocation5 + $0x34] sm:$0xf]
    %v70 = vld [vmem:[#allocation5 + $0x38] sm:$0xf]
    %v71 = vld [vmem:[#allocation5 + $0x3c] sm:$0xf]
    %v72 = vlaneseq
    %v73 = vshrl.u32 %v72, 7
    %v74 = vsub.s32 0, %v73
    %v75 = vrot.slane %v53, %v74
    %v92 = vunpack.c.l.b16 %v56
    %v93 = vunpack.c.l.b16 %v57
    %v94 = vunpack.c.l.b16 %v58
    %v95 = vunpack.c.l.b16 %v59
    %v96 = vunpack.c.l.b16 %v60
    %v97 = vunpack.c.l.b16 %v61
    %v98 = vunpack.c.l.b16 %v62
    %v99 = vunpack.c.l.b16 %v63
    %v100 = vunpack.c.l.b16 %v64
    %v101 = vunpack.c.l.b16 %v65
    %v102 = vunpack.c.l.b16 %v66
    %v103 = vunpack.c.l.b16 %v67
    %v104 = vunpack.c.l.b16 %v68
    %v105 = vunpack.c.l.b16 %v69
    %v106 = vunpack.c.l.b16 %v70
    %v107 = vunpack.c.l.b16 %v71
    %v108 = vpack.c.b16 %v93, %v92
    %v109 = vpack.c.b16 %v95, %v94
    %v110 = vpack.c.b16 %v97, %v96
    %v111 = vpack.c.b16 %v99, %v98
    %v112 = vpack.c.b16 %v101, %v100
    %v113 = vpack.c.b16 %v103, %v102
    %v114 = vpack.c.b16 %v105, %v104
    %v115 = vpack.c.b16 %v107, %v106
    %124 = vmatprep.subr.bf16.mxu0 0
    %125 = vmatpush1.bf16.msra.mxu0 %v115
    %126 = vmatprep.subr.bf16.mxu0 0
    %127 = vmatpush1.bf16.msra.mxu0 %v114
    %128 = vmatprep.subr.bf16.mxu0 0
    %129 = vmatpush1.bf16.msra.mxu0 %v113
    %130 = vmatprep.subr.bf16.mxu0 0
    %131 = vmatpush1.bf16.msra.mxu0 %v112
    %132 = vmatprep.subr.bf16.mxu0 0
    %133 = vmatpush1.bf16.msra.mxu0 %v111
    %134 = vmatprep.subr.bf16.mxu0 0
    %135 = vmatpush1.bf16.msra.mxu0 %v110
    %136 = vmatprep.subr.bf16.mxu0 0
    %137 = vmatpush1.bf16.msra.mxu0 %v109
    %138 = vmatprep.subr.bf16.mxu0 0
    %139 = vmatpush1.bf16.msra.mxu0 %v108
    %140 = vmatprep.subr.bf16.mxu0 0
    %141 = vmatpush2.bf16.msra.mxu0 0
    %142 = vmatprep.subr.bf16.mxu0 0
    %143 = vmatpush2.bf16.msra.mxu0 0
    %144 = vmatprep.subr.bf16.mxu0 0
    %145 = vmatpush2.bf16.msra.mxu0 0
    %146 = vmatprep.subr.bf16.mxu0 0
    %147 = vmatpush2.bf16.msra.mxu0 0
    %148 = vmatprep.subr.bf16.mxu0 0
    %149 = vmatpush2.bf16.msra.mxu0 0
    %150 = vmatprep.subr.bf16.mxu0 0
    %151 = vmatpush2.bf16.msra.mxu0 0
    %152 = vmatprep.subr.bf16.mxu0 0
    %153 = vmatpush2.bf16.msra.mxu0 0
    %154 = vmatprep.subr.bf16.mxu0 0
    %155 = vmatpush2.bf16.msra.mxu0 0
    %156 = vmatprep.mubr.bf16.mxu0 0
    %157 = vmatmul.mubr.bf16.gmra.mxu0 %v55
    %v158 = vpop.f32.mrf.mxu0
    %v159 = vadd.f32 %v75, %v158
    %v160 = vpop.f32.mrf.mxu0
    %v161 = vpop.f32.mrf.mxu0
    %v162 = vpop.f32.mrf.mxu0
    %163 = vdwg.mxu0
    %v164 = vmax.f32 %v159, 0.0
    %v165 = vpack.c.bf16 %v164, %v164
    %s166 = scalar_lea.vmem [#allocation5], 64
    %v167 = vld [vmem:[%s166] sm:$0xf]
    %v168 = vld [vmem:[%s166 + $0x4] sm:$0xf]
    %v169 = vld [vmem:[%s166 + $0x8] sm:$0xf]
    %v170 = vld [vmem:[%s166 + $0xc] sm:$0xf]
    %v171 = vld [vmem:[%s166 + $0x10] sm:$0xf]
    %v172 = vld [vmem:[%s166 + $0x14] sm:$0xf]
    %v173 = vld [vmem:[%s166 + $0x18] sm:$0xf]
    %v174 = vld [vmem:[%s166 + $0x1c] sm:$0xf]
    %v175 = vld [vmem:[%s166 + $0x20] sm:$0xf]
    %v176 = vld [vmem:[%s166 + $0x24] sm:$0xf]
    %v177 = vld [vmem:[%s166 + $0x28] sm:$0xf]
    %v178 = vld [vmem:[%s166 + $0x2c] sm:$0xf]
    %v179 = vld [vmem:[%s166 + $0x30] sm:$0xf]
    %v180 = vld [vmem:[%s166 + $0x34] sm:$0xf]
    %v181 = vld [vmem:[%s166 + $0x38] sm:$0xf]
    %v182 = vld [vmem:[%s166 + $0x3c] sm:$0xf]
    %v183 = vlaneseq
    %v184 = vshrl.u32 %v183, 7
    %v185 = vsub.s32 1, %v184
    %v186 = vrot.slane %v53, %v185
    %v203 = vunpack.c.l.b16 %v167
    %v204 = vunpack.c.l.b16 %v168
    %v205 = vunpack.c.l.b16 %v169
    %v206 = vunpack.c.l.b16 %v170
    %v207 = vunpack.c.l.b16 %v171
    %v208 = vunpack.c.l.b16 %v172
    %v209 = vunpack.c.l.b16 %v173
    %v210 = vunpack.c.l.b16 %v174
    %v211 = vunpack.c.l.b16 %v175
    %v212 = vunpack.c.l.b16 %v176
    %v213 = vunpack.c.l.b16 %v177
    %v214 = vunpack.c.l.b16 %v178
    %v215 = vunpack.c.l.b16 %v179
    %v216 = vunpack.c.l.b16 %v180
    %v217 = vunpack.c.l.b16 %v181
    %v218 = vunpack.c.l.b16 %v182
    %v219 = vpack.c.b16 %v204, %v203
    %v220 = vpack.c.b16 %v206, %v205
    %v221 = vpack.c.b16 %v208, %v207
    %v222 = vpack.c.b16 %v210, %v209
    %v223 = vpack.c.b16 %v212, %v211
    %v224 = vpack.c.b16 %v214, %v213
    %v225 = vpack.c.b16 %v216, %v215
    %v226 = vpack.c.b16 %v218, %v217
    %235 = vmatprep.subr.bf16.mxu0 0
    %236 = vmatpush1.bf16.msra.mxu0 %v226
    %237 = vmatprep.subr.bf16.mxu0 0
    %238 = vmatpush1.bf16.msra.mxu0 %v225
    %239 = vmatprep.subr.bf16.mxu0 0
    %240 = vmatpush1.bf16.msra.mxu0 %v224
    %241 = vmatprep.subr.bf16.mxu0 0
    %242 = vmatpush1.bf16.msra.mxu0 %v223
    %243 = vmatprep.subr.bf16.mxu0 0
    %244 = vmatpush1.bf16.msra.mxu0 %v222
    %245 = vmatprep.subr.bf16.mxu0 0
    %246 = vmatpush1.bf16.msra.mxu0 %v221
    %247 = vmatprep.subr.bf16.mxu0 0
    %248 = vmatpush1.bf16.msra.mxu0 %v220
    %249 = vmatprep.subr.bf16.mxu0 0
    %250 = vmatpush1.bf16.msra.mxu0 %v219
    %251 = vmatprep.subr.bf16.mxu0 0
    %252 = vmatpush2.bf16.msra.mxu0 0
    %253 = vmatprep.subr.bf16.mxu0 0
    %254 = vmatpush2.bf16.msra.mxu0 0
    %255 = vmatprep.subr.bf16.mxu0 0
    %256 = vmatpush2.bf16.msra.mxu0 0
    %257 = vmatprep.subr.bf16.mxu0 0
    %258 = vmatpush2.bf16.msra.mxu0 0
    %259 = vmatprep.subr.bf16.mxu0 0
    %260 = vmatpush2.bf16.msra.mxu0 0
    %261 = vmatprep.subr.bf16.mxu0 0
    %262 = vmatpush2.bf16.msra.mxu0 0
    %263 = vmatprep.subr.bf16.mxu0 0
    %264 = vmatpush2.bf16.msra.mxu0 0
    %265 = vmatprep.subr.bf16.mxu0 0
    %266 = vmatpush2.bf16.msra.mxu0 0
    %267 = vmatprep.mubr.bf16.mxu0 0
    %268 = vmatmul.mubr.bf16.gmra.mxu0 %v165
    %v269 = vpop.f32.mrf.mxu0
    %v270 = vadd.f32 %v186, %v269
    %v271 = vpop.f32.mrf.mxu0
    %v272 = vpop.f32.mrf.mxu0
    %v273 = vpop.f32.mrf.mxu0
    %274 = vdwg.mxu0
    %v275 = vmax.f32 %v270, 0.0
    %v276 = vpack.c.bf16 %v275, %v275
    %s277 = scalar_lea.vmem [#allocation5], 128
    %v278 = vld [vmem:[%s277] sm:$0xf]
    %v279 = vld [vmem:[%s277 + $0x4] sm:$0xf]
    %v280 = vld [vmem:[%s277 + $0x8] sm:$0xf]
    %v281 = vld [vmem:[%s277 + $0xc] sm:$0xf]
    %v282 = vld [vmem:[%s277 + $0x10] sm:$0xf]
    %v283 = vld [vmem:[%s277 + $0x14] sm:$0xf]
    %v284 = vld [vmem:[%s277 + $0x18] sm:$0xf]
    %v285 = vld [vmem:[%s277 + $0x1c] sm:$0xf]
    %v286 = vld [vmem:[%s277 + $0x20] sm:$0xf]
    %v287 = vld [vmem:[%s277 + $0x24] sm:$0xf]
    %v288 = vld [vmem:[%s277 + $0x28] sm:$0xf]
    %v289 = vld [vmem:[%s277 + $0x2c] sm:$0xf]
    %v290 = vld [vmem:[%s277 + $0x30] sm:$0xf]
    %v291 = vld [vmem:[%s277 + $0x34] sm:$0xf]
    %v292 = vld [vmem:[%s277 + $0x38] sm:$0xf]
    %v293 = vld [vmem:[%s277 + $0x3c] sm:$0xf]
    %v294 = vlaneseq
    %v295 = vshrl.u32 %v294, 7
    %v296 = vsub.s32 2, %v295
    %v297 = vrot.slane %v53, %v296
    %v314 = vunpack.c.l.b16 %v278
    %v315 = vunpack.c.l.b16 %v279
    %v316 = vunpack.c.l.b16 %v280
    %v317 = vunpack.c.l.b16 %v281
    %v318 = vunpack.c.l.b16 %v282
    %v319 = vunpack.c.l.b16 %v283
    %v320 = vunpack.c.l.b16 %v284
    %v321 = vunpack.c.l.b16 %v285
    %v322 = vunpack.c.l.b16 %v286
    %v323 = vunpack.c.l.b16 %v287
    %v324 = vunpack.c.l.b16 %v288
    %v325 = vunpack.c.l.b16 %v289
    %v326 = vunpack.c.l.b16 %v290
    %v327 = vunpack.c.l.b16 %v291
    %v328 = vunpack.c.l.b16 %v292
    %v329 = vunpack.c.l.b16 %v293
    %v330 = vpack.c.b16 %v315, %v314
    %v331 = vpack.c.b16 %v317, %v316
    %v332 = vpack.c.b16 %v319, %v318
    %v333 = vpack.c.b16 %v321, %v320
    %v334 = vpack.c.b16 %v323, %v322
    %v335 = vpack.c.b16 %v325, %v324
    %v336 = vpack.c.b16 %v327, %v326
    %v337 = vpack.c.b16 %v329, %v328
    %346 = vmatprep.subr.bf16.mxu0 0
    %347 = vmatpush1.bf16.msra.mxu0 %v337
    %348 = vmatprep.subr.bf16.mxu0 0
    %349 = vmatpush1.bf16.msra.mxu0 %v336
    %350 = vmatprep.subr.bf16.mxu0 0
    %351 = vmatpush1.bf16.msra.mxu0 %v335
    %352 = vmatprep.subr.bf16.mxu0 0
    %353 = vmatpush1.bf16.msra.mxu0 %v334
    %354 = vmatprep.subr.bf16.mxu0 0
    %355 = vmatpush1.bf16.msra.mxu0 %v333
    %356 = vmatprep.subr.bf16.mxu0 0
    %357 = vmatpush1.bf16.msra.mxu0 %v332
    %358 = vmatprep.subr.bf16.mxu0 0
    %359 = vmatpush1.bf16.msra.mxu0 %v331
    %360 = vmatprep.subr.bf16.mxu0 0
    %361 = vmatpush1.bf16.msra.mxu0 %v330
    %362 = vmatprep.subr.bf16.mxu0 0
    %363 = vmatpush2.bf16.msra.mxu0 0
    %364 = vmatprep.subr.bf16.mxu0 0
    %365 = vmatpush2.bf16.msra.mxu0 0
    %366 = vmatprep.subr.bf16.mxu0 0
    %367 = vmatpush2.bf16.msra.mxu0 0
    %368 = vmatprep.subr.bf16.mxu0 0
    %369 = vmatpush2.bf16.msra.mxu0 0
    %370 = vmatprep.subr.bf16.mxu0 0
    %371 = vmatpush2.bf16.msra.mxu0 0
    %372 = vmatprep.subr.bf16.mxu0 0
    %373 = vmatpush2.bf16.msra.mxu0 0
    %374 = vmatprep.subr.bf16.mxu0 0
    %375 = vmatpush2.bf16.msra.mxu0 0
    %376 = vmatprep.subr.bf16.mxu0 0
    %377 = vmatpush2.bf16.msra.mxu0 0
    %378 = vmatprep.mubr.bf16.mxu0 0
    %379 = vmatmul.mubr.bf16.gmra.mxu0 %v276
    %v380 = vpop.f32.mrf.mxu0
    %v381 = vadd.f32 %v297, %v380
    %v382 = vpop.f32.mrf.mxu0
    %v383 = vpop.f32.mrf.mxu0
    %v384 = vpop.f32.mrf.mxu0
    %385 = vdwg.mxu0
    %v386 = vmax.f32 %v381, 0.0
    %v387 = vpack.c.bf16 %v386, %v386
    %s388 = scalar_lea.vmem [#allocation5], 192
    %v389 = vld [vmem:[%s388] sm:$0xf]
    %v390 = vld [vmem:[%s388 + $0x4] sm:$0xf]
    %v391 = vld [vmem:[%s388 + $0x8] sm:$0xf]
    %v392 = vld [vmem:[%s388 + $0xc] sm:$0xf]
    %v393 = vld [vmem:[%s388 + $0x10] sm:$0xf]
    %v394 = vld [vmem:[%s388 + $0x14] sm:$0xf]
    %v395 = vld [vmem:[%s388 + $0x18] sm:$0xf]
    %v396 = vld [vmem:[%s388 + $0x1c] sm:$0xf]
    %v397 = vld [vmem:[%s388 + $0x20] sm:$0xf]
    %v398 = vld [vmem:[%s388 + $0x24] sm:$0xf]
    %v399 = vld [vmem:[%s388 + $0x28] sm:$0xf]
    %v400 = vld [vmem:[%s388 + $0x2c] sm:$0xf]
    %v401 = vld [vmem:[%s388 + $0x30] sm:$0xf]
    %v402 = vld [vmem:[%s388 + $0x34] sm:$0xf]
    %v403 = vld [vmem:[%s388 + $0x38] sm:$0xf]
    %v404 = vld [vmem:[%s388 + $0x3c] sm:$0xf]
    %v405 = vlaneseq
    %v406 = vshrl.u32 %v405, 7
    %v407 = vsub.s32 3, %v406
    %v408 = vrot.slane %v53, %v407
    %v425 = vunpack.c.l.b16 %v389
    %v426 = vunpack.c.l.b16 %v390
    %v427 = vunpack.c.l.b16 %v391
    %v428 = vunpack.c.l.b16 %v392
    %v429 = vunpack.c.l.b16 %v393
    %v430 = vunpack.c.l.b16 %v394
    %v431 = vunpack.c.l.b16 %v395
    %v432 = vunpack.c.l.b16 %v396
    %v433 = vunpack.c.l.b16 %v397
    %v434 = vunpack.c.l.b16 %v398
    %v435 = vunpack.c.l.b16 %v399
    %v436 = vunpack.c.l.b16 %v400
    %v437 = vunpack.c.l.b16 %v401
    %v438 = vunpack.c.l.b16 %v402
    %v439 = vunpack.c.l.b16 %v403
    %v440 = vunpack.c.l.b16 %v404
    %v441 = vpack.c.b16 %v426, %v425
    %v442 = vpack.c.b16 %v428, %v427
    %v443 = vpack.c.b16 %v430, %v429
    %v444 = vpack.c.b16 %v432, %v431
    %v445 = vpack.c.b16 %v434, %v433
    %v446 = vpack.c.b16 %v436, %v435
    %v447 = vpack.c.b16 %v438, %v437
    %v448 = vpack.c.b16 %v440, %v439
    %457 = vmatprep.subr.bf16.mxu0 0
    %458 = vmatpush1.bf16.msra.mxu0 %v448
    %459 = vmatprep.subr.bf16.mxu0 0
    %460 = vmatpush1.bf16.msra.mxu0 %v447
    %461 = vmatprep.subr.bf16.mxu0 0
    %462 = vmatpush1.bf16.msra.mxu0 %v446
    %463 = vmatprep.subr.bf16.mxu0 0
    %464 = vmatpush1.bf16.msra.mxu0 %v445
    %465 = vmatprep.subr.bf16.mxu0 0
    %466 = vmatpush1.bf16.msra.mxu0 %v444
    %467 = vmatprep.subr.bf16.mxu0 0
    %468 = vmatpush1.bf16.msra.mxu0 %v443
    %469 = vmatprep.subr.bf16.mxu0 0
    %470 = vmatpush1.bf16.msra.mxu0 %v442
    %471 = vmatprep.subr.bf16.mxu0 0
    %472 = vmatpush1.bf16.msra.mxu0 %v441
    %473 = vmatprep.subr.bf16.mxu0 0
    %474 = vmatpush2.bf16.msra.mxu0 0
    %475 = vmatprep.subr.bf16.mxu0 0
    %476 = vmatpush2.bf16.msra.mxu0 0
    %477 = vmatprep.subr.bf16.mxu0 0
    %478 = vmatpush2.bf16.msra.mxu0 0
    %479 = vmatprep.subr.bf16.mxu0 0
    %480 = vmatpush2.bf16.msra.mxu0 0
    %481 = vmatprep.subr.bf16.mxu0 0
    %482 = vmatpush2.bf16.msra.mxu0 0
    %483 = vmatprep.subr.bf16.mxu0 0
    %484 = vmatpush2.bf16.msra.mxu0 0
    %485 = vmatprep.subr.bf16.mxu0 0
    %486 = vmatpush2.bf16.msra.mxu0 0
    %487 = vmatprep.subr.bf16.mxu0 0
    %488 = vmatpush2.bf16.msra.mxu0 0
    %489 = vmatprep.mubr.bf16.mxu0 0
    %490 = vmatmul.mubr.bf16.gmra.mxu0 %v387
    %v491 = vpop.f32.mrf.mxu0
    %v492 = vadd.f32 %v408, %v491
    %v493 = vpop.f32.mrf.mxu0
    %v494 = vpop.f32.mrf.mxu0
    %v495 = vpop.f32.mrf.mxu0
    %496 = vdwg.mxu0
    %v497 = vmax.f32 %v492, 0.0
    %v498 = vpack.c.bf16 %v497, %v497
    %s499 = scalar_lea.vmem [#allocation5], 256
    %v500 = vld [vmem:[%s499] sm:$0xf]
    %v501 = vld [vmem:[%s499 + $0x4] sm:$0xf]
    %v502 = vld [vmem:[%s499 + $0x8] sm:$0xf]
    %v503 = vld [vmem:[%s499 + $0xc] sm:$0xf]
    %v504 = vld [vmem:[%s499 + $0x10] sm:$0xf]
    %v505 = vld [vmem:[%s499 + $0x14] sm:$0xf]
    %v506 = vld [vmem:[%s499 + $0x18] sm:$0xf]
    %v507 = vld [vmem:[%s499 + $0x1c] sm:$0xf]
    %v508 = vld [vmem:[%s499 + $0x20] sm:$0xf]
    %v509 = vld [vmem:[%s499 + $0x24] sm:$0xf]
    %v510 = vld [vmem:[%s499 + $0x28] sm:$0xf]
    %v511 = vld [vmem:[%s499 + $0x2c] sm:$0xf]
    %v512 = vld [vmem:[%s499 + $0x30] sm:$0xf]
    %v513 = vld [vmem:[%s499 + $0x34] sm:$0xf]
    %v514 = vld [vmem:[%s499 + $0x38] sm:$0xf]
    %v515 = vld [vmem:[%s499 + $0x3c] sm:$0xf]
    %v516 = vlaneseq
    %v517 = vshrl.u32 %v516, 7
    %v518 = vsub.s32 4, %v517
    %v519 = vrot.slane %v53, %v518
    %v536 = vunpack.c.l.b16 %v500
    %v537 = vunpack.c.l.b16 %v501
    %v538 = vunpack.c.l.b16 %v502
    %v539 = vunpack.c.l.b16 %v503
    %v540 = vunpack.c.l.b16 %v504
    %v541 = vunpack.c.l.b16 %v505
    %v542 = vunpack.c.l.b16 %v506
    %v543 = vunpack.c.l.b16 %v507
    %v544 = vunpack.c.l.b16 %v508
    %v545 = vunpack.c.l.b16 %v509
    %v546 = vunpack.c.l.b16 %v510
    %v547 = vunpack.c.l.b16 %v511
    %v548 = vunpack.c.l.b16 %v512
    %v549 = vunpack.c.l.b16 %v513
    %v550 = vunpack.c.l.b16 %v514
    %v551 = vunpack.c.l.b16 %v515
    %v552 = vpack.c.b16 %v537, %v536
    %v553 = vpack.c.b16 %v539, %v538
    %v554 = vpack.c.b16 %v541, %v540
    %v555 = vpack.c.b16 %v543, %v542
    %v556 = vpack.c.b16 %v545, %v544
    %v557 = vpack.c.b16 %v547, %v546
    %v558 = vpack.c.b16 %v549, %v548
    %v559 = vpack.c.b16 %v551, %v550
    %568 = vmatprep.subr.bf16.mxu0 0
    %569 = vmatpush1.bf16.msra.mxu0 %v559
    %570 = vmatprep.subr.bf16.mxu0 0
    %571 = vmatpush1.bf16.msra.mxu0 %v558
    %572 = vmatprep.subr.bf16.mxu0 0
    %573 = vmatpush1.bf16.msra.mxu0 %v557
    %574 = vmatprep.subr.bf16.mxu0 0
    %575 = vmatpush1.bf16.msra.mxu0 %v556
    %576 = vmatprep.subr.bf16.mxu0 0
    %577 = vmatpush1.bf16.msra.mxu0 %v555
    %578 = vmatprep.subr.bf16.mxu0 0
    %579 = vmatpush1.bf16.msra.mxu0 %v554
    %580 = vmatprep.subr.bf16.mxu0 0
    %581 = vmatpush1.bf16.msra.mxu0 %v553
    %582 = vmatprep.subr.bf16.mxu0 0
    %583 = vmatpush1.bf16.msra.mxu0 %v552
    %584 = vmatprep.subr.bf16.mxu0 0
    %585 = vmatpush2.bf16.msra.mxu0 0
    %586 = vmatprep.subr.bf16.mxu0 0
    %587 = vmatpush2.bf16.msra.mxu0 0
    %588 = vmatprep.subr.bf16.mxu0 0
    %589 = vmatpush2.bf16.msra.mxu0 0
    %590 = vmatprep.subr.bf16.mxu0 0
    %591 = vmatpush2.bf16.msra.mxu0 0
    %592 = vmatprep.subr.bf16.mxu0 0
    %593 = vmatpush2.bf16.msra.mxu0 0
    %594 = vmatprep.subr.bf16.mxu0 0
    %595 = vmatpush2.bf16.msra.mxu0 0
    %596 = vmatprep.subr.bf16.mxu0 0
    %597 = vmatpush2.bf16.msra.mxu0 0
    %598 = vmatprep.subr.bf16.mxu0 0
    %599 = vmatpush2.bf16.msra.mxu0 0
    %600 = vmatprep.mubr.bf16.mxu0 0
    %601 = vmatmul.mubr.bf16.gmra.mxu0 %v498
    %v602 = vpop.f32.mrf.mxu0
    %v603 = vadd.f32 %v519, %v602
    %v604 = vpop.f32.mrf.mxu0
    %v605 = vpop.f32.mrf.mxu0
    %v606 = vpop.f32.mrf.mxu0
    %607 = vdwg.mxu0
    %v608 = vmax.f32 %v603, 0.0
    %v609 = vpack.c.bf16 %v608, %v608
    %s610 = scalar_lea.vmem [#allocation5], 320
    %v611 = vld [vmem:[%s610] sm:$0xf]
    %v612 = vld [vmem:[%s610 + $0x4] sm:$0xf]
    %v613 = vld [vmem:[%s610 + $0x8] sm:$0xf]
    %v614 = vld [vmem:[%s610 + $0xc] sm:$0xf]
    %v615 = vld [vmem:[%s610 + $0x10] sm:$0xf]
    %v616 = vld [vmem:[%s610 + $0x14] sm:$0xf]
    %v617 = vld [vmem:[%s610 + $0x18] sm:$0xf]
    %v618 = vld [vmem:[%s610 + $0x1c] sm:$0xf]
    %v619 = vld [vmem:[%s610 + $0x20] sm:$0xf]
    %v620 = vld [vmem:[%s610 + $0x24] sm:$0xf]
    %v621 = vld [vmem:[%s610 + $0x28] sm:$0xf]
    %v622 = vld [vmem:[%s610 + $0x2c] sm:$0xf]
    %v623 = vld [vmem:[%s610 + $0x30] sm:$0xf]
    %v624 = vld [vmem:[%s610 + $0x34] sm:$0xf]
    %v625 = vld [vmem:[%s610 + $0x38] sm:$0xf]
    %v626 = vld [vmem:[%s610 + $0x3c] sm:$0xf]
    %v627 = vlaneseq
    %v628 = vshrl.u32 %v627, 7
    %v629 = vsub.s32 5, %v628
    %v630 = vrot.slane %v53, %v629
    %v647 = vunpack.c.l.b16 %v611
    %v648 = vunpack.c.l.b16 %v612
    %v649 = vunpack.c.l.b16 %v613
    %v650 = vunpack.c.l.b16 %v614
    %v651 = vunpack.c.l.b16 %v615
    %v652 = vunpack.c.l.b16 %v616
    %v653 = vunpack.c.l.b16 %v617
    %v654 = vunpack.c.l.b16 %v618
    %v655 = vunpack.c.l.b16 %v619
    %v656 = vunpack.c.l.b16 %v620
    %v657 = vunpack.c.l.b16 %v621
    %v658 = vunpack.c.l.b16 %v622
    %v659 = vunpack.c.l.b16 %v623
    %v660 = vunpack.c.l.b16 %v624
    %v661 = vunpack.c.l.b16 %v625
    %v662 = vunpack.c.l.b16 %v626
    %v663 = vpack.c.b16 %v648, %v647
    %v664 = vpack.c.b16 %v650, %v649
    %v665 = vpack.c.b16 %v652, %v651
    %v666 = vpack.c.b16 %v654, %v653
    %v667 = vpack.c.b16 %v656, %v655
    %v668 = vpack.c.b16 %v658, %v657
    %v669 = vpack.c.b16 %v660, %v659
    %v670 = vpack.c.b16 %v662, %v661
    %679 = vmatprep.subr.bf16.mxu0 0
    %680 = vmatpush1.bf16.msra.mxu0 %v670
    %681 = vmatprep.subr.bf16.mxu0 0
    %682 = vmatpush1.bf16.msra.mxu0 %v669
    %683 = vmatprep.subr.bf16.mxu0 0
    %684 = vmatpush1.bf16.msra.mxu0 %v668
    %685 = vmatprep.subr.bf16.mxu0 0
    %686 = vmatpush1.bf16.msra.mxu0 %v667
    %687 = vmatprep.subr.bf16.mxu0 0
    %688 = vmatpush1.bf16.msra.mxu0 %v666
    %689 = vmatprep.subr.bf16.mxu0 0
    %690 = vmatpush1.bf16.msra.mxu0 %v665
    %691 = vmatprep.subr.bf16.mxu0 0
    %692 = vmatpush1.bf16.msra.mxu0 %v664
    %693 = vmatprep.subr.bf16.mxu0 0
    %694 = vmatpush1.bf16.msra.mxu0 %v663
    %695 = vmatprep.subr.bf16.mxu0 0
    %696 = vmatpush2.bf16.msra.mxu0 0
    %697 = vmatprep.subr.bf16.mxu0 0
    %698 = vmatpush2.bf16.msra.mxu0 0
    %699 = vmatprep.subr.bf16.mxu0 0
    %700 = vmatpush2.bf16.msra.mxu0 0
    %701 = vmatprep.subr.bf16.mxu0 0
    %702 = vmatpush2.bf16.msra.mxu0 0
    %703 = vmatprep.subr.bf16.mxu0 0
    %704 = vmatpush2.bf16.msra.mxu0 0
    %705 = vmatprep.subr.bf16.mxu0 0
    %706 = vmatpush2.bf16.msra.mxu0 0
    %707 = vmatprep.subr.bf16.mxu0 0
    %708 = vmatpush2.bf16.msra.mxu0 0
    %709 = vmatprep.subr.bf16.mxu0 0
    %710 = vmatpush2.bf16.msra.mxu0 0
    %711 = vmatprep.mubr.bf16.mxu0 0
    %712 = vmatmul.mubr.bf16.gmra.mxu0 %v609
    %v713 = vpop.f32.mrf.mxu0
    %v714 = vadd.f32 %v630, %v713
    %v715 = vpop.f32.mrf.mxu0
    %v716 = vpop.f32.mrf.mxu0
    %v717 = vpop.f32.mrf.mxu0
    %718 = vdwg.mxu0
    %719 = vst [vmem:[#allocation8] sm:$0xff] %v714
    // Predicated region
    $region26: #{tpu_custom_call.1} parent=1 // pred_check
      _
    $region27: #{tpu_custom_call.1} parent=1 // pred_check_branch
      %721 = sbr.rel (0) target = $region29
    $region28: #{tpu_custom_call.1} parent=1 // pred_region
      %s723 = ssub.s32 128, 128
      %724 = vsyncadd [#allocation4], %s723
      %s726 = sshll.u32 [#allocation8], 4
      %s727 = int_to_ptr.vmem [resolvable:$true] %s726
      %729 = dma.vmem_to_hbm [thread:$0]  %s727, 128, %s3, [#allocation4]
    $region29: #{tpu_custom_call.1} parent=1 // pred_fallthru
      _
    // Predicated region
    $region30: #{tpu_custom_call.1} parent=1 // pred_check
      _
    $region31: #{tpu_custom_call.1} parent=1 // pred_check_branch
      %731 = sbr.rel (0) target = $region33
    $region32: #{tpu_custom_call.1} parent=1 // pred_region
      %732 = dma.done [#allocation4], 128
    $region33: #{tpu_custom_call.1} parent=1 // pred_fallthru
      _
    %733 = vsyncpa [#allocation3], 1
    %734 = vsyncpa [#allocation6], 1
    %735 = vsyncpa [#allocation4], 1

// kernel: tpu_custom_call.1
$region0: #{tpu_custom_call.1}
  #allocation0 [shape = 'u32[]', space=smem, size = 0x4, offset = 0x4, fixed_abs, tag = 'smem constant byte address 0x4 - core index']
  #allocation1 [shape = 'u32[144,128]{1,0:T(1,128)}', space=vmem, size = 0x12000, scoped, tag = 'internal scratch']
  #allocation2 [shape = 'bf16[2,128,128]{2,1,0:T(8,128)(2,1)}', space=vmem, size = 0x10000, scoped, tag = 'scratch operand']
  #allocation3 [shape = 's32[2]{0}', space=sflag, size = 0x8, scoped, tag = 'scratch operand']
  #allocation10 [shape = 's32[]', space=sflag, size = 0x4, offset = 0, fixed_abs, tag = 'sflag constant byte address 0x0 - dummy sync flag']
  #allocation11 [shape = 's32[]', space=sflag, size = 0x4, offset = 0, fixed_abs, tag = 'sflag constant byte address 0x0 - dummy sync flag']
  #allocation12 [shape = 'u32[]', space=smem, size = 0x4, offset = 0x44, fixed_abs, tag = 'smem constant byte address 0x44 - assertion arg 0']
  #allocation13 [shape = 'u32[]', space=smem, size = 0x4, offset = 0x48, fixed_abs, tag = 'smem constant byte address 0x48 - assertion arg 1']
  #allocation14 [shape = 's32[]', space=sflag, size = 0x4, offset = 0, fixed_abs, tag = 'sflag constant byte address 0x0 - dummy sync flag']
  #allocation15 [shape = 's32[]', space=sflag, size = 0x4, offset = 0, fixed_abs, tag = 'sflag constant byte address 0x0 - dummy sync flag']
  #allocation16 [shape = 's32[]', space=sflag, size = 0x4, offset = 0, fixed_abs, tag = 'sflag constant byte address 0x0 - dummy sync flag']
  #allocation17 [shape = 's32[]', space=sflag, size = 0x4, offset = 0, fixed_abs, tag = 'sflag constant byte address 0x0 - dummy sync flag']
  #allocation18 [shape = 's32[]', space=sflag, size = 0x4, offset = 0, fixed_abs, tag = 'sflag constant byte address 0x0 - dummy sync flag']
  #allocation19 [shape = 's32[]', space=sflag, size = 0x4, offset = 0, fixed_abs, tag = 'sflag constant byte address 0x0 - dummy sync flag']
  #allocation20 [shape = 's32[]', space=sflag, size = 0x4, offset = 0, fixed_abs, tag = 'sflag constant byte address 0x0 - dummy sync flag']
  #allocation21 [shape = 's32[]', space=sflag, size = 0x4, offset = 0, fixed_abs, tag = 'sflag constant byte address 0x0 - dummy sync flag']
  #allocation22 [shape = 's32[]', space=sflag, size = 0x4, offset = 0, fixed_abs, tag = 'sflag constant byte address 0x0 - dummy sync flag']
  #allocation23 [shape = 's32[]', space=sflag, size = 0x4, offset = 0, fixed_abs, tag = 'sflag constant byte address 0x0 - dummy sync flag']
  %s0 = inlined_call_operand.hbm [shape: f32[8,128], index: 0, kind: input, shape index: {}]
  %s1 = inlined_call_operand.hbm [shape: bf16[6,128,128], index: 1, kind: input, shape index: {}]
  %s2 = inlined_call_operand.hbm [shape: f32[8,128], index: 2, kind: input, shape index: {}]
  %s3 = inlined_call_operand.hbm [shape: f32[8,128], index: 3, kind: output, shape index: {}]
  %s4 = sld [smem:[#allocation0]]
  $region50: #{tpu_custom_call.1} parent=0
    _
  %s6 = ssub.s32 1, %s4
  %s7 = scalar_select 0, %s6, %s4
  $region1: #{tpu_custom_call.1} parent=0
    #allocation4 [shape = 'u8[4096]{0}', space=vmem, size = 0x1000, scoped, tag = 'input window, operand 0, single buffered']
    #allocation5 [shape = 's32[1]{0}', space=sflag, size = 0x4, scoped, tag = 'scoped memory for tpu_custom_call.1']
    #allocation6 [shape = 's32[1]{0}', space=sflag, size = 0x4, scoped, tag = 'scoped memory for tpu_custom_call.1']
    #allocation7 [shape = 'u8[4096]{0}', space=vmem, size = 0x1000, scoped, tag = 'input window, operand 2, single buffered']
    #allocation8 [shape = 's32[1]{0}', space=sflag, size = 0x4, scoped, tag = 'scoped memory for tpu_custom_call.1']
    #allocation9 [shape = 'u8[4096]{0}', space=vmem, size = 0x1000, scoped, tag = 'output window, operand 0, single buffered']
    %8 = vsyncpa [#allocation5], 0
    %9 = vsyncpa [#allocation8], 0
    %10 = vsyncpa [#allocation6], 0
    // Predicated region
    $region2: #{tpu_custom_call.1} parent=1 // pred_check
      _
    $region3: #{tpu_custom_call.1} parent=1 // pred_check_branch
      %12 = sbr.rel (0) target = $region5
    $region4: #{tpu_custom_call.1} parent=1 // pred_region
      %s14 = ssub.s32 128, 128
      %15 = vsyncadd [#allocation5], %s14
      %s17 = sshll.u32 [#allocation4], 4
      %s18 = int_to_ptr.vmem [resolvable:$true] %s17
      %20 = dma.hbm_to_vmem [thread:$0]  %s0, 128, %s18, [#allocation5]
    $region5: #{tpu_custom_call.1} parent=1 // pred_fallthru
      _
    // Predicated region
    $region6: #{tpu_custom_call.1} parent=1 // pred_check
      _
    $region7: #{tpu_custom_call.1} parent=1 // pred_check_branch
      %22 = sbr.rel (0) target = $region9
    $region8: #{tpu_custom_call.1} parent=1 // pred_region
      %s24 = ssub.s32 128, 128
      %25 = vsyncadd [#allocation8], %s24
      %s27 = sshll.u32 [#allocation7], 4
      %s28 = int_to_ptr.vmem [resolvable:$true] %s27
      %30 = dma.hbm_to_vmem [thread:$0]  %s2, 128, %s28, [#allocation8]
    $region9: #{tpu_custom_call.1} parent=1 // pred_fallthru
      _
    // Predicated region
    $region10: #{tpu_custom_call.1} parent=1 // pred_check
      _
    $region11: #{tpu_custom_call.1} parent=1 // pred_check_branch
      %32 = sbr.rel (0) target = $region13
    $region12: #{tpu_custom_call.1} parent=1 // pred_region
      %33 = dma.done [#allocation5], 128
    $region13: #{tpu_custom_call.1} parent=1 // pred_fallthru
      _
    // Predicated region
    $region14: #{tpu_custom_call.1} parent=1 // pred_check
      _
    $region15: #{tpu_custom_call.1} parent=1 // pred_check_branch
      %35 = sbr.rel (0) target = $region17
    $region16: #{tpu_custom_call.1} parent=1 // pred_region
      %36 = dma.done [#allocation8], 128
    $region17: #{tpu_custom_call.1} parent=1 // pred_fallthru
      _
    // Predicated region
    $region18: #{tpu_custom_call.1} parent=1 // pred_check
      _
    $region19: #{tpu_custom_call.1} parent=1 // pred_check_branch
      %39 = sbr.rel target = $region21
    $region20: #{tpu_custom_call.1} parent=1 // pred_region
      %40 = sst [smem:[#allocation12]] [#allocation11]
      %41 = sst [smem:[#allocation13]] [#allocation10]
    $region21: #{tpu_custom_call.1} parent=1 // pred_fallthru
      _
    %43 = shalt.err (0)
    %s45 = sshll.u32 [#allocation2], 4
    %s46 = int_to_ptr.vmem [resolvable:$true] %s45
    %48 = dma.hbm_to_vmem [thread:$0]  %s1, 1024, %s46, [#allocation3]
    %v49 = vld [vmem:[#allocation7] sm:$0xff]
    %v50 = vld [vmem:[#allocation4] sm:$0xff]
    %s51 = smul.u32 4, 16
    %s52 = smul.u32 %s51, 1
    %s53 = sshll.u32 %s52, 4
    %54 = dma.done [#allocation3], %s53
    %s55 = scalar_lea.hbm %s1, 1024
    %s56 = scalar_lea.vmem [#allocation2], 64
    %s57 = scalar_lea.sflag [#allocation3], 1
    // Predicated region
    $region22: #{tpu_custom_call.1} parent=1 // pred_check
      _
    $region23: #{tpu_custom_call.1} parent=1 // pred_check_branch
      %59 = sbr.rel target = $region25
    $region24: #{tpu_custom_call.1} parent=1 // pred_region
      %60 = sst [smem:[#allocation12]] [#allocation15]
      %61 = sst [smem:[#allocation13]] [#allocation14]
    $region25: #{tpu_custom_call.1} parent=1 // pred_fallthru
      _
    %63 = shalt.err (0)
    %s65 = sshll.u32 %s56, 4
    %s66 = int_to_ptr.vmem [resolvable:$true] %s65
    %68 = dma.hbm_to_vmem [thread:$0]  %s55, 1024, %s66, %s57
    %v69 = vpack.c.bf16 %v50, %v50
    %v70 = vld [vmem:[#allocation2] sm:$0xf]
    %v71 = vld [vmem:[#allocation2 + $0x4] sm:$0xf]
    %v72 = vld [vmem:[#allocation2 + $0x8] sm:$0xf]
    %v73 = vld [vmem:[#allocation2 + $0xc] sm:$0xf]
    %v74 = vld [vmem:[#allocation2 + $0x10] sm:$0xf]
    %v75 = vld [vmem:[#allocation2 + $0x14] sm:$0xf]
    %v76 = vld [vmem:[#allocation2 + $0x18] sm:$0xf]
    %v77 = vld [vmem:[#allocation2 + $0x1c] sm:$0xf]
    %v78 = vld [vmem:[#allocation2 + $0x20] sm:$0xf]
    %v79 = vld [vmem:[#allocation2 + $0x24] sm:$0xf]
    %v80 = vld [vmem:[#allocation2 + $0x28] sm:$0xf]
    %v81 = vld [vmem:[#allocation2 + $0x2c] sm:$0xf]
    %v82 = vld [vmem:[#allocation2 + $0x30] sm:$0xf]
    %v83 = vld [vmem:[#allocation2 + $0x34] sm:$0xf]
    %v84 = vld [vmem:[#allocation2 + $0x38] sm:$0xf]
    %v85 = vld [vmem:[#allocation2 + $0x3c] sm:$0xf]
    %v86 = vlaneseq
    %v87 = vshrl.u32 %v86, 7
    %v88 = vsub.s32 0, %v87
    %v89 = vrot.slane %v49, %v88
    %v106 = vunpack.c.l.b16 %v70
    %v107 = vunpack.c.l.b16 %v71
    %v108 = vunpack.c.l.b16 %v72
    %v109 = vunpack.c.l.b16 %v73
    %v110 = vunpack.c.l.b16 %v74
    %v111 = vunpack.c.l.b16 %v75
    %v112 = vunpack.c.l.b16 %v76
    %v113 = vunpack.c.l.b16 %v77
    %v114 = vunpack.c.l.b16 %v78
    %v115 = vunpack.c.l.b16 %v79
    %v116 = vunpack.c.l.b16 %v80
    %v117 = vunpack.c.l.b16 %v81
    %v118 = vunpack.c.l.b16 %v82
    %v119 = vunpack.c.l.b16 %v83
    %v120 = vunpack.c.l.b16 %v84
    %v121 = vunpack.c.l.b16 %v85
    %v122 = vpack.c.b16 %v107, %v106
    %v123 = vpack.c.b16 %v109, %v108
    %v124 = vpack.c.b16 %v111, %v110
    %v125 = vpack.c.b16 %v113, %v112
    %v126 = vpack.c.b16 %v115, %v114
    %v127 = vpack.c.b16 %v117, %v116
    %v128 = vpack.c.b16 %v119, %v118
    %v129 = vpack.c.b16 %v121, %v120
    %138 = vmatprep.subr.bf16.mxu0 0
    %139 = vmatpush1.bf16.msra.mxu0 %v129
    %140 = vmatprep.subr.bf16.mxu0 0
    %141 = vmatpush1.bf16.msra.mxu0 %v128
    %142 = vmatprep.subr.bf16.mxu0 0
    %143 = vmatpush1.bf16.msra.mxu0 %v127
    %144 = vmatprep.subr.bf16.mxu0 0
    %145 = vmatpush1.bf16.msra.mxu0 %v126
    %146 = vmatprep.subr.bf16.mxu0 0
    %147 = vmatpush1.bf16.msra.mxu0 %v125
    %148 = vmatprep.subr.bf16.mxu0 0
    %149 = vmatpush1.bf16.msra.mxu0 %v124
    %150 = vmatprep.subr.bf16.mxu0 0
    %151 = vmatpush1.bf16.msra.mxu0 %v123
    %152 = vmatprep.subr.bf16.mxu0 0
    %153 = vmatpush1.bf16.msra.mxu0 %v122
    %154 = vmatprep.subr.bf16.mxu0 0
    %155 = vmatpush2.bf16.msra.mxu0 0
    %156 = vmatprep.subr.bf16.mxu0 0
    %157 = vmatpush2.bf16.msra.mxu0 0
    %158 = vmatprep.subr.bf16.mxu0 0
    %159 = vmatpush2.bf16.msra.mxu0 0
    %160 = vmatprep.subr.bf16.mxu0 0
    %161 = vmatpush2.bf16.msra.mxu0 0
    %162 = vmatprep.subr.bf16.mxu0 0
    %163 = vmatpush2.bf16.msra.mxu0 0
    %164 = vmatprep.subr.bf16.mxu0 0
    %165 = vmatpush2.bf16.msra.mxu0 0
    %166 = vmatprep.subr.bf16.mxu0 0
    %167 = vmatpush2.bf16.msra.mxu0 0
    %168 = vmatprep.subr.bf16.mxu0 0
    %169 = vmatpush2.bf16.msra.mxu0 0
    %170 = vmatprep.mubr.bf16.mxu0 0
    %171 = vmatmul.mubr.bf16.gmra.mxu0 %v69
    %v172 = vpop.f32.mrf.mxu0
    %v173 = vadd.f32 %v89, %v172
    %v174 = vpop.f32.mrf.mxu0
    %v175 = vpop.f32.mrf.mxu0
    %v176 = vpop.f32.mrf.mxu0
    %177 = vdwg.mxu0
    %v178 = vmax.f32 %v173, 0.0
    %s179 = sshll.u32 %s52, 4
    %180 = dma.done %s57, %s179
    %s181 = scalar_lea.hbm %s1, 2048
    // Predicated region
    $region26: #{tpu_custom_call.1} parent=1 // pred_check
      _
    $region27: #{tpu_custom_call.1} parent=1 // pred_check_branch
      %183 = sbr.rel target = $region29
    $region28: #{tpu_custom_call.1} parent=1 // pred_region
      %184 = sst [smem:[#allocation12]] [#allocation17]
      %185 = sst [smem:[#allocation13]] [#allocation16]
    $region29: #{tpu_custom_call.1} parent=1 // pred_fallthru
      _
    %187 = shalt.err (0)
    %s189 = sshll.u32 [#allocation2], 4
    %s190 = int_to_ptr.vmem [resolvable:$true] %s189
    %192 = dma.hbm_to_vmem [thread:$0]  %s181, 1024, %s190, [#allocation3]
    %v193 = vpack.c.bf16 %v178, %v178
    %v194 = vld [vmem:[%s56] sm:$0xf]
    %v195 = vld [vmem:[%s56 + $0x4] sm:$0xf]
    %v196 = vld [vmem:[%s56 + $0x8] sm:$0xf]
    %v197 = vld [vmem:[%s56 + $0xc] sm:$0xf]
    %v198 = vld [vmem:[%s56 + $0x10] sm:$0xf]
    %v199 = vld [vmem:[%s56 + $0x14] sm:$0xf]
    %v200 = vld [vmem:[%s56 + $0x18] sm:$0xf]
    %v201 = vld [vmem:[%s56 + $0x1c] sm:$0xf]
    %v202 = vld [vmem:[%s56 + $0x20] sm:$0xf]
    %v203 = vld [vmem:[%s56 + $0x24] sm:$0xf]
    %v204 = vld [vmem:[%s56 + $0x28] sm:$0xf]
    %v205 = vld [vmem:[%s56 + $0x2c] sm:$0xf]
    %v206 = vld [vmem:[%s56 + $0x30] sm:$0xf]
    %v207 = vld [vmem:[%s56 + $0x34] sm:$0xf]
    %v208 = vld [vmem:[%s56 + $0x38] sm:$0xf]
    %v209 = vld [vmem:[%s56 + $0x3c] sm:$0xf]
    %v210 = vlaneseq
    %v211 = vshrl.u32 %v210, 7
    %v212 = vsub.s32 1, %v211
    %v213 = vrot.slane %v49, %v212
    %v230 = vunpack.c.l.b16 %v194
    %v231 = vunpack.c.l.b16 %v195
    %v232 = vunpack.c.l.b16 %v196
    %v233 = vunpack.c.l.b16 %v197
    %v234 = vunpack.c.l.b16 %v198
    %v235 = vunpack.c.l.b16 %v199
    %v236 = vunpack.c.l.b16 %v200
    %v237 = vunpack.c.l.b16 %v201
    %v238 = vunpack.c.l.b16 %v202
    %v239 = vunpack.c.l.b16 %v203
    %v240 = vunpack.c.l.b16 %v204
    %v241 = vunpack.c.l.b16 %v205
    %v242 = vunpack.c.l.b16 %v206
    %v243 = vunpack.c.l.b16 %v207
    %v244 = vunpack.c.l.b16 %v208
    %v245 = vunpack.c.l.b16 %v209
    %v246 = vpack.c.b16 %v231, %v230
    %v247 = vpack.c.b16 %v233, %v232
    %v248 = vpack.c.b16 %v235, %v234
    %v249 = vpack.c.b16 %v237, %v236
    %v250 = vpack.c.b16 %v239, %v238
    %v251 = vpack.c.b16 %v241, %v240
    %v252 = vpack.c.b16 %v243, %v242
    %v253 = vpack.c.b16 %v245, %v244
    %262 = vmatprep.subr.bf16.mxu0 0
    %263 = vmatpush1.bf16.msra.mxu0 %v253
    %264 = vmatprep.subr.bf16.mxu0 0
    %265 = vmatpush1.bf16.msra.mxu0 %v252
    %266 = vmatprep.subr.bf16.mxu0 0
    %267 = vmatpush1.bf16.msra.mxu0 %v251
    %268 = vmatprep.subr.bf16.mxu0 0
    %269 = vmatpush1.bf16.msra.mxu0 %v250
    %270 = vmatprep.subr.bf16.mxu0 0
    %271 = vmatpush1.bf16.msra.mxu0 %v249
    %272 = vmatprep.subr.bf16.mxu0 0
    %273 = vmatpush1.bf16.msra.mxu0 %v248
    %274 = vmatprep.subr.bf16.mxu0 0
    %275 = vmatpush1.bf16.msra.mxu0 %v247
    %276 = vmatprep.subr.bf16.mxu0 0
    %277 = vmatpush1.bf16.msra.mxu0 %v246
    %278 = vmatprep.subr.bf16.mxu0 0
    %279 = vmatpush2.bf16.msra.mxu0 0
    %280 = vmatprep.subr.bf16.mxu0 0
    %281 = vmatpush2.bf16.msra.mxu0 0
    %282 = vmatprep.subr.bf16.mxu0 0
    %283 = vmatpush2.bf16.msra.mxu0 0
    %284 = vmatprep.subr.bf16.mxu0 0
    %285 = vmatpush2.bf16.msra.mxu0 0
    %286 = vmatprep.subr.bf16.mxu0 0
    %287 = vmatpush2.bf16.msra.mxu0 0
    %288 = vmatprep.subr.bf16.mxu0 0
    %289 = vmatpush2.bf16.msra.mxu0 0
    %290 = vmatprep.subr.bf16.mxu0 0
    %291 = vmatpush2.bf16.msra.mxu0 0
    %292 = vmatprep.subr.bf16.mxu0 0
    %293 = vmatpush2.bf16.msra.mxu0 0
    %294 = vmatprep.mubr.bf16.mxu0 0
    %295 = vmatmul.mubr.bf16.gmra.mxu0 %v193
    %v296 = vpop.f32.mrf.mxu0
    %v297 = vadd.f32 %v213, %v296
    %v298 = vpop.f32.mrf.mxu0
    %v299 = vpop.f32.mrf.mxu0
    %v300 = vpop.f32.mrf.mxu0
    %301 = vdwg.mxu0
    %v302 = vmax.f32 %v297, 0.0
    %s303 = sshll.u32 %s52, 4
    %304 = dma.done [#allocation3], %s303
    %s305 = scalar_lea.hbm %s1, 3072
    // Predicated region
    $region30: #{tpu_custom_call.1} parent=1 // pred_check
      _
    $region31: #{tpu_custom_call.1} parent=1 // pred_check_branch
      %307 = sbr.rel target = $region33
    $region32: #{tpu_custom_call.1} parent=1 // pred_region
      %308 = sst [smem:[#allocation12]] [#allocation19]
      %309 = sst [smem:[#allocation13]] [#allocation18]
    $region33: #{tpu_custom_call.1} parent=1 // pred_fallthru
      _
    %311 = shalt.err (0)
    %s313 = sshll.u32 %s56, 4
    %s314 = int_to_ptr.vmem [resolvable:$true] %s313
    %316 = dma.hbm_to_vmem [thread:$0]  %s305, 1024, %s314, %s57
    %v317 = vpack.c.bf16 %v302, %v302
    %v318 = vld [vmem:[#allocation2] sm:$0xf]
    %v319 = vld [vmem:[#allocation2 + $0x4] sm:$0xf]
    %v320 = vld [vmem:[#allocation2 + $0x8] sm:$0xf]
    %v321 = vld [vmem:[#allocation2 + $0xc] sm:$0xf]
    %v322 = vld [vmem:[#allocation2 + $0x10] sm:$0xf]
    %v323 = vld [vmem:[#allocation2 + $0x14] sm:$0xf]
    %v324 = vld [vmem:[#allocation2 + $0x18] sm:$0xf]
    %v325 = vld [vmem:[#allocation2 + $0x1c] sm:$0xf]
    %v326 = vld [vmem:[#allocation2 + $0x20] sm:$0xf]
    %v327 = vld [vmem:[#allocation2 + $0x24] sm:$0xf]
    %v328 = vld [vmem:[#allocation2 + $0x28] sm:$0xf]
    %v329 = vld [vmem:[#allocation2 + $0x2c] sm:$0xf]
    %v330 = vld [vmem:[#allocation2 + $0x30] sm:$0xf]
    %v331 = vld [vmem:[#allocation2 + $0x34] sm:$0xf]
    %v332 = vld [vmem:[#allocation2 + $0x38] sm:$0xf]
    %v333 = vld [vmem:[#allocation2 + $0x3c] sm:$0xf]
    %v334 = vlaneseq
    %v335 = vshrl.u32 %v334, 7
    %v336 = vsub.s32 2, %v335
    %v337 = vrot.slane %v49, %v336
    %v354 = vunpack.c.l.b16 %v318
    %v355 = vunpack.c.l.b16 %v319
    %v356 = vunpack.c.l.b16 %v320
    %v357 = vunpack.c.l.b16 %v321
    %v358 = vunpack.c.l.b16 %v322
    %v359 = vunpack.c.l.b16 %v323
    %v360 = vunpack.c.l.b16 %v324
    %v361 = vunpack.c.l.b16 %v325
    %v362 = vunpack.c.l.b16 %v326
    %v363 = vunpack.c.l.b16 %v327
    %v364 = vunpack.c.l.b16 %v328
    %v365 = vunpack.c.l.b16 %v329
    %v366 = vunpack.c.l.b16 %v330
    %v367 = vunpack.c.l.b16 %v331
    %v368 = vunpack.c.l.b16 %v332
    %v369 = vunpack.c.l.b16 %v333
    %v370 = vpack.c.b16 %v355, %v354
    %v371 = vpack.c.b16 %v357, %v356
    %v372 = vpack.c.b16 %v359, %v358
    %v373 = vpack.c.b16 %v361, %v360
    %v374 = vpack.c.b16 %v363, %v362
    %v375 = vpack.c.b16 %v365, %v364
    %v376 = vpack.c.b16 %v367, %v366
    %v377 = vpack.c.b16 %v369, %v368
    %386 = vmatprep.subr.bf16.mxu0 0
    %387 = vmatpush1.bf16.msra.mxu0 %v377
    %388 = vmatprep.subr.bf16.mxu0 0
    %389 = vmatpush1.bf16.msra.mxu0 %v376
    %390 = vmatprep.subr.bf16.mxu0 0
    %391 = vmatpush1.bf16.msra.mxu0 %v375
    %392 = vmatprep.subr.bf16.mxu0 0
    %393 = vmatpush1.bf16.msra.mxu0 %v374
    %394 = vmatprep.subr.bf16.mxu0 0
    %395 = vmatpush1.bf16.msra.mxu0 %v373
    %396 = vmatprep.subr.bf16.mxu0 0
    %397 = vmatpush1.bf16.msra.mxu0 %v372
    %398 = vmatprep.subr.bf16.mxu0 0
    %399 = vmatpush1.bf16.msra.mxu0 %v371
    %400 = vmatprep.subr.bf16.mxu0 0
    %401 = vmatpush1.bf16.msra.mxu0 %v370
    %402 = vmatprep.subr.bf16.mxu0 0
    %403 = vmatpush2.bf16.msra.mxu0 0
    %404 = vmatprep.subr.bf16.mxu0 0
    %405 = vmatpush2.bf16.msra.mxu0 0
    %406 = vmatprep.subr.bf16.mxu0 0
    %407 = vmatpush2.bf16.msra.mxu0 0
    %408 = vmatprep.subr.bf16.mxu0 0
    %409 = vmatpush2.bf16.msra.mxu0 0
    %410 = vmatprep.subr.bf16.mxu0 0
    %411 = vmatpush2.bf16.msra.mxu0 0
    %412 = vmatprep.subr.bf16.mxu0 0
    %413 = vmatpush2.bf16.msra.mxu0 0
    %414 = vmatprep.subr.bf16.mxu0 0
    %415 = vmatpush2.bf16.msra.mxu0 0
    %416 = vmatprep.subr.bf16.mxu0 0
    %417 = vmatpush2.bf16.msra.mxu0 0
    %418 = vmatprep.mubr.bf16.mxu0 0
    %419 = vmatmul.mubr.bf16.gmra.mxu0 %v317
    %v420 = vpop.f32.mrf.mxu0
    %v421 = vadd.f32 %v337, %v420
    %v422 = vpop.f32.mrf.mxu0
    %v423 = vpop.f32.mrf.mxu0
    %v424 = vpop.f32.mrf.mxu0
    %425 = vdwg.mxu0
    %v426 = vmax.f32 %v421, 0.0
    %s427 = sshll.u32 %s52, 4
    %428 = dma.done %s57, %s427
    %s429 = scalar_lea.hbm %s1, 4096
    // Predicated region
    $region34: #{tpu_custom_call.1} parent=1 // pred_check
      _
    $region35: #{tpu_custom_call.1} parent=1 // pred_check_branch
      %431 = sbr.rel target = $region37
    $region36: #{tpu_custom_call.1} parent=1 // pred_region
      %432 = sst [smem:[#allocation12]] [#allocation21]
      %433 = sst [smem:[#allocation13]] [#allocation20]
    $region37: #{tpu_custom_call.1} parent=1 // pred_fallthru
      _
    %435 = shalt.err (0)
    %s437 = sshll.u32 [#allocation2], 4
    %s438 = int_to_ptr.vmem [resolvable:$true] %s437
    %440 = dma.hbm_to_vmem [thread:$0]  %s429, 1024, %s438, [#allocation3]
    %v441 = vpack.c.bf16 %v426, %v426
    %v442 = vld [vmem:[%s56] sm:$0xf]
    %v443 = vld [vmem:[%s56 + $0x4] sm:$0xf]
    %v444 = vld [vmem:[%s56 + $0x8] sm:$0xf]
    %v445 = vld [vmem:[%s56 + $0xc] sm:$0xf]
    %v446 = vld [vmem:[%s56 + $0x10] sm:$0xf]
    %v447 = vld [vmem:[%s56 + $0x14] sm:$0xf]
    %v448 = vld [vmem:[%s56 + $0x18] sm:$0xf]
    %v449 = vld [vmem:[%s56 + $0x1c] sm:$0xf]
    %v450 = vld [vmem:[%s56 + $0x20] sm:$0xf]
    %v451 = vld [vmem:[%s56 + $0x24] sm:$0xf]
    %v452 = vld [vmem:[%s56 + $0x28] sm:$0xf]
    %v453 = vld [vmem:[%s56 + $0x2c] sm:$0xf]
    %v454 = vld [vmem:[%s56 + $0x30] sm:$0xf]
    %v455 = vld [vmem:[%s56 + $0x34] sm:$0xf]
    %v456 = vld [vmem:[%s56 + $0x38] sm:$0xf]
    %v457 = vld [vmem:[%s56 + $0x3c] sm:$0xf]
    %v458 = vlaneseq
    %v459 = vshrl.u32 %v458, 7
    %v460 = vsub.s32 3, %v459
    %v461 = vrot.slane %v49, %v460
    %v478 = vunpack.c.l.b16 %v442
    %v479 = vunpack.c.l.b16 %v443
    %v480 = vunpack.c.l.b16 %v444
    %v481 = vunpack.c.l.b16 %v445
    %v482 = vunpack.c.l.b16 %v446
    %v483 = vunpack.c.l.b16 %v447
    %v484 = vunpack.c.l.b16 %v448
    %v485 = vunpack.c.l.b16 %v449
    %v486 = vunpack.c.l.b16 %v450
    %v487 = vunpack.c.l.b16 %v451
    %v488 = vunpack.c.l.b16 %v452
    %v489 = vunpack.c.l.b16 %v453
    %v490 = vunpack.c.l.b16 %v454
    %v491 = vunpack.c.l.b16 %v455
    %v492 = vunpack.c.l.b16 %v456
    %v493 = vunpack.c.l.b16 %v457
    %v494 = vpack.c.b16 %v479, %v478
    %v495 = vpack.c.b16 %v481, %v480
    %v496 = vpack.c.b16 %v483, %v482
    %v497 = vpack.c.b16 %v485, %v484
    %v498 = vpack.c.b16 %v487, %v486
    %v499 = vpack.c.b16 %v489, %v488
    %v500 = vpack.c.b16 %v491, %v490
    %v501 = vpack.c.b16 %v493, %v492
    %510 = vmatprep.subr.bf16.mxu0 0
    %511 = vmatpush1.bf16.msra.mxu0 %v501
    %512 = vmatprep.subr.bf16.mxu0 0
    %513 = vmatpush1.bf16.msra.mxu0 %v500
    %514 = vmatprep.subr.bf16.mxu0 0
    %515 = vmatpush1.bf16.msra.mxu0 %v499
    %516 = vmatprep.subr.bf16.mxu0 0
    %517 = vmatpush1.bf16.msra.mxu0 %v498
    %518 = vmatprep.subr.bf16.mxu0 0
    %519 = vmatpush1.bf16.msra.mxu0 %v497
    %520 = vmatprep.subr.bf16.mxu0 0
    %521 = vmatpush1.bf16.msra.mxu0 %v496
    %522 = vmatprep.subr.bf16.mxu0 0
    %523 = vmatpush1.bf16.msra.mxu0 %v495
    %524 = vmatprep.subr.bf16.mxu0 0
    %525 = vmatpush1.bf16.msra.mxu0 %v494
    %526 = vmatprep.subr.bf16.mxu0 0
    %527 = vmatpush2.bf16.msra.mxu0 0
    %528 = vmatprep.subr.bf16.mxu0 0
    %529 = vmatpush2.bf16.msra.mxu0 0
    %530 = vmatprep.subr.bf16.mxu0 0
    %531 = vmatpush2.bf16.msra.mxu0 0
    %532 = vmatprep.subr.bf16.mxu0 0
    %533 = vmatpush2.bf16.msra.mxu0 0
    %534 = vmatprep.subr.bf16.mxu0 0
    %535 = vmatpush2.bf16.msra.mxu0 0
    %536 = vmatprep.subr.bf16.mxu0 0
    %537 = vmatpush2.bf16.msra.mxu0 0
    %538 = vmatprep.subr.bf16.mxu0 0
    %539 = vmatpush2.bf16.msra.mxu0 0
    %540 = vmatprep.subr.bf16.mxu0 0
    %541 = vmatpush2.bf16.msra.mxu0 0
    %542 = vmatprep.mubr.bf16.mxu0 0
    %543 = vmatmul.mubr.bf16.gmra.mxu0 %v441
    %v544 = vpop.f32.mrf.mxu0
    %v545 = vadd.f32 %v461, %v544
    %v546 = vpop.f32.mrf.mxu0
    %v547 = vpop.f32.mrf.mxu0
    %v548 = vpop.f32.mrf.mxu0
    %549 = vdwg.mxu0
    %v550 = vmax.f32 %v545, 0.0
    %s551 = sshll.u32 %s52, 4
    %552 = dma.done [#allocation3], %s551
    %s553 = scalar_lea.hbm %s1, 5120
    // Predicated region
    $region38: #{tpu_custom_call.1} parent=1 // pred_check
      _
    $region39: #{tpu_custom_call.1} parent=1 // pred_check_branch
      %555 = sbr.rel target = $region41
    $region40: #{tpu_custom_call.1} parent=1 // pred_region
      %556 = sst [smem:[#allocation12]] [#allocation23]
      %557 = sst [smem:[#allocation13]] [#allocation22]
    $region41: #{tpu_custom_call.1} parent=1 // pred_fallthru
      _
    %559 = shalt.err (0)
    %s561 = sshll.u32 %s56, 4
    %s562 = int_to_ptr.vmem [resolvable:$true] %s561
    %564 = dma.hbm_to_vmem [thread:$0]  %s553, 1024, %s562, %s57
    %v565 = vpack.c.bf16 %v550, %v550
    %v566 = vld [vmem:[#allocation2] sm:$0xf]
    %v567 = vld [vmem:[#allocation2 + $0x4] sm:$0xf]
    %v568 = vld [vmem:[#allocation2 + $0x8] sm:$0xf]
    %v569 = vld [vmem:[#allocation2 + $0xc] sm:$0xf]
    %v570 = vld [vmem:[#allocation2 + $0x10] sm:$0xf]
    %v571 = vld [vmem:[#allocation2 + $0x14] sm:$0xf]
    %v572 = vld [vmem:[#allocation2 + $0x18] sm:$0xf]
    %v573 = vld [vmem:[#allocation2 + $0x1c] sm:$0xf]
    %v574 = vld [vmem:[#allocation2 + $0x20] sm:$0xf]
    %v575 = vld [vmem:[#allocation2 + $0x24] sm:$0xf]
    %v576 = vld [vmem:[#allocation2 + $0x28] sm:$0xf]
    %v577 = vld [vmem:[#allocation2 + $0x2c] sm:$0xf]
    %v578 = vld [vmem:[#allocation2 + $0x30] sm:$0xf]
    %v579 = vld [vmem:[#allocation2 + $0x34] sm:$0xf]
    %v580 = vld [vmem:[#allocation2 + $0x38] sm:$0xf]
    %v581 = vld [vmem:[#allocation2 + $0x3c] sm:$0xf]
    %v582 = vlaneseq
    %v583 = vshrl.u32 %v582, 7
    %v584 = vsub.s32 4, %v583
    %v585 = vrot.slane %v49, %v584
    %v602 = vunpack.c.l.b16 %v566
    %v603 = vunpack.c.l.b16 %v567
    %v604 = vunpack.c.l.b16 %v568
    %v605 = vunpack.c.l.b16 %v569
    %v606 = vunpack.c.l.b16 %v570
    %v607 = vunpack.c.l.b16 %v571
    %v608 = vunpack.c.l.b16 %v572
    %v609 = vunpack.c.l.b16 %v573
    %v610 = vunpack.c.l.b16 %v574
    %v611 = vunpack.c.l.b16 %v575
    %v612 = vunpack.c.l.b16 %v576
    %v613 = vunpack.c.l.b16 %v577
    %v614 = vunpack.c.l.b16 %v578
    %v615 = vunpack.c.l.b16 %v579
    %v616 = vunpack.c.l.b16 %v580
    %v617 = vunpack.c.l.b16 %v581
    %v618 = vpack.c.b16 %v603, %v602
    %v619 = vpack.c.b16 %v605, %v604
    %v620 = vpack.c.b16 %v607, %v606
    %v621 = vpack.c.b16 %v609, %v608
    %v622 = vpack.c.b16 %v611, %v610
    %v623 = vpack.c.b16 %v613, %v612
    %v624 = vpack.c.b16 %v615, %v614
    %v625 = vpack.c.b16 %v617, %v616
    %634 = vmatprep.subr.bf16.mxu0 0
    %635 = vmatpush1.bf16.msra.mxu0 %v625
    %636 = vmatprep.subr.bf16.mxu0 0
    %637 = vmatpush1.bf16.msra.mxu0 %v624
    %638 = vmatprep.subr.bf16.mxu0 0
    %639 = vmatpush1.bf16.msra.mxu0 %v623
    %640 = vmatprep.subr.bf16.mxu0 0
    %641 = vmatpush1.bf16.msra.mxu0 %v622
    %642 = vmatprep.subr.bf16.mxu0 0
    %643 = vmatpush1.bf16.msra.mxu0 %v621
    %644 = vmatprep.subr.bf16.mxu0 0
    %645 = vmatpush1.bf16.msra.mxu0 %v620
    %646 = vmatprep.subr.bf16.mxu0 0
    %647 = vmatpush1.bf16.msra.mxu0 %v619
    %648 = vmatprep.subr.bf16.mxu0 0
    %649 = vmatpush1.bf16.msra.mxu0 %v618
    %650 = vmatprep.subr.bf16.mxu0 0
    %651 = vmatpush2.bf16.msra.mxu0 0
    %652 = vmatprep.subr.bf16.mxu0 0
    %653 = vmatpush2.bf16.msra.mxu0 0
    %654 = vmatprep.subr.bf16.mxu0 0
    %655 = vmatpush2.bf16.msra.mxu0 0
    %656 = vmatprep.subr.bf16.mxu0 0
    %657 = vmatpush2.bf16.msra.mxu0 0
    %658 = vmatprep.subr.bf16.mxu0 0
    %659 = vmatpush2.bf16.msra.mxu0 0
    %660 = vmatprep.subr.bf16.mxu0 0
    %661 = vmatpush2.bf16.msra.mxu0 0
    %662 = vmatprep.subr.bf16.mxu0 0
    %663 = vmatpush2.bf16.msra.mxu0 0
    %664 = vmatprep.subr.bf16.mxu0 0
    %665 = vmatpush2.bf16.msra.mxu0 0
    %666 = vmatprep.mubr.bf16.mxu0 0
    %667 = vmatmul.mubr.bf16.gmra.mxu0 %v565
    %v668 = vpop.f32.mrf.mxu0
    %v669 = vadd.f32 %v585, %v668
    %v670 = vpop.f32.mrf.mxu0
    %v671 = vpop.f32.mrf.mxu0
    %v672 = vpop.f32.mrf.mxu0
    %673 = vdwg.mxu0
    %v674 = vmax.f32 %v669, 0.0
    %s675 = sshll.u32 %s52, 4
    %676 = dma.done %s57, %s675
    %v677 = vpack.c.bf16 %v674, %v674
    %v678 = vld [vmem:[%s56] sm:$0xf]
    %v679 = vld [vmem:[%s56 + $0x4] sm:$0xf]
    %v680 = vld [vmem:[%s56 + $0x8] sm:$0xf]
    %v681 = vld [vmem:[%s56 + $0xc] sm:$0xf]
    %v682 = vld [vmem:[%s56 + $0x10] sm:$0xf]
    %v683 = vld [vmem:[%s56 + $0x14] sm:$0xf]
    %v684 = vld [vmem:[%s56 + $0x18] sm:$0xf]
    %v685 = vld [vmem:[%s56 + $0x1c] sm:$0xf]
    %v686 = vld [vmem:[%s56 + $0x20] sm:$0xf]
    %v687 = vld [vmem:[%s56 + $0x24] sm:$0xf]
    %v688 = vld [vmem:[%s56 + $0x28] sm:$0xf]
    %v689 = vld [vmem:[%s56 + $0x2c] sm:$0xf]
    %v690 = vld [vmem:[%s56 + $0x30] sm:$0xf]
    %v691 = vld [vmem:[%s56 + $0x34] sm:$0xf]
    %v692 = vld [vmem:[%s56 + $0x38] sm:$0xf]
    %v693 = vld [vmem:[%s56 + $0x3c] sm:$0xf]
    %v694 = vlaneseq
    %v695 = vshrl.u32 %v694, 7
    %v696 = vsub.s32 5, %v695
    %v697 = vrot.slane %v49, %v696
    %v714 = vunpack.c.l.b16 %v678
    %v715 = vunpack.c.l.b16 %v679
    %v716 = vunpack.c.l.b16 %v680
    %v717 = vunpack.c.l.b16 %v681
    %v718 = vunpack.c.l.b16 %v682
    %v719 = vunpack.c.l.b16 %v683
    %v720 = vunpack.c.l.b16 %v684
    %v721 = vunpack.c.l.b16 %v685
    %v722 = vunpack.c.l.b16 %v686
    %v723 = vunpack.c.l.b16 %v687
    %v724 = vunpack.c.l.b16 %v688
    %v725 = vunpack.c.l.b16 %v689
    %v726 = vunpack.c.l.b16 %v690
    %v727 = vunpack.c.l.b16 %v691
    %v728 = vunpack.c.l.b16 %v692
    %v729 = vunpack.c.l.b16 %v693
    %v730 = vpack.c.b16 %v715, %v714
    %v731 = vpack.c.b16 %v717, %v716
    %v732 = vpack.c.b16 %v719, %v718
    %v733 = vpack.c.b16 %v721, %v720
    %v734 = vpack.c.b16 %v723, %v722
    %v735 = vpack.c.b16 %v725, %v724
    %v736 = vpack.c.b16 %v727, %v726
    %v737 = vpack.c.b16 %v729, %v728
    %746 = vmatprep.subr.bf16.mxu0 0
    %747 = vmatpush1.bf16.msra.mxu0 %v737
    %748 = vmatprep.subr.bf16.mxu0 0
    %749 = vmatpush1.bf16.msra.mxu0 %v736
    %750 = vmatprep.subr.bf16.mxu0 0
    %751 = vmatpush1.bf16.msra.mxu0 %v735
    %752 = vmatprep.subr.bf16.mxu0 0
    %753 = vmatpush1.bf16.msra.mxu0 %v734
    %754 = vmatprep.subr.bf16.mxu0 0
    %755 = vmatpush1.bf16.msra.mxu0 %v733
    %756 = vmatprep.subr.bf16.mxu0 0
    %757 = vmatpush1.bf16.msra.mxu0 %v732
    %758 = vmatprep.subr.bf16.mxu0 0
    %759 = vmatpush1.bf16.msra.mxu0 %v731
    %760 = vmatprep.subr.bf16.mxu0 0
    %761 = vmatpush1.bf16.msra.mxu0 %v730
    %762 = vmatprep.subr.bf16.mxu0 0
    %763 = vmatpush2.bf16.msra.mxu0 0
    %764 = vmatprep.subr.bf16.mxu0 0
    %765 = vmatpush2.bf16.msra.mxu0 0
    %766 = vmatprep.subr.bf16.mxu0 0
    %767 = vmatpush2.bf16.msra.mxu0 0
    %768 = vmatprep.subr.bf16.mxu0 0
    %769 = vmatpush2.bf16.msra.mxu0 0
    %770 = vmatprep.subr.bf16.mxu0 0
    %771 = vmatpush2.bf16.msra.mxu0 0
    %772 = vmatprep.subr.bf16.mxu0 0
    %773 = vmatpush2.bf16.msra.mxu0 0
    %774 = vmatprep.subr.bf16.mxu0 0
    %775 = vmatpush2.bf16.msra.mxu0 0
    %776 = vmatprep.subr.bf16.mxu0 0
    %777 = vmatpush2.bf16.msra.mxu0 0
    %778 = vmatprep.mubr.bf16.mxu0 0
    %779 = vmatmul.mubr.bf16.gmra.mxu0 %v677
    %v780 = vpop.f32.mrf.mxu0
    %v781 = vadd.f32 %v697, %v780
    %v782 = vpop.f32.mrf.mxu0
    %v783 = vpop.f32.mrf.mxu0
    %v784 = vpop.f32.mrf.mxu0
    %785 = vdwg.mxu0
    %786 = vst [vmem:[#allocation9] sm:$0xff] %v781
    // Predicated region
    $region42: #{tpu_custom_call.1} parent=1 // pred_check
      _
    $region43: #{tpu_custom_call.1} parent=1 // pred_check_branch
      %788 = sbr.rel (0) target = $region45
    $region44: #{tpu_custom_call.1} parent=1 // pred_region
      %s790 = ssub.s32 128, 128
      %791 = vsyncadd [#allocation6], %s790
      %s793 = sshll.u32 [#allocation9], 4
      %s794 = int_to_ptr.vmem [resolvable:$true] %s793
      %796 = dma.vmem_to_hbm [thread:$0]  %s794, 128, %s3, [#allocation6]
    $region45: #{tpu_custom_call.1} parent=1 // pred_fallthru
      _
    // Predicated region
    $region46: #{tpu_custom_call.1} parent=1 // pred_check
      _
    $region47: #{tpu_custom_call.1} parent=1 // pred_check_branch
      %798 = sbr.rel (0) target = $region49
    $region48: #{tpu_custom_call.1} parent=1 // pred_region
      %799 = dma.done [#allocation6], 128
    $region49: #{tpu_custom_call.1} parent=1 // pred_fallthru
      _
    %800 = vsyncpa [#allocation5], 1
    %801 = vsyncpa [#allocation8], 1
    %802 = vsyncpa [#allocation6], 1
  %803 = vsyncmov [#allocation3]
  %s804 = vpop.sfrf %803
  %p805 = scmp.eq.s32.totalorder %s804, 0
  %p806 = pneg %p805
  %808 = shalt.err (%p806)
  %s809 = scalar_lea.sflag [#allocation3], 1
  %810 = vsyncmov %s809
  %s811 = vpop.sfrf %810
  %p812 = scmp.eq.s32.totalorder %s811, 0
  %p813 = pneg %p812
  %815 = shalt.err (%p813)

// kernel: tpu_custom_call.1
$region0: #{tpu_custom_call.1}
  #allocation0 [shape = 'u32[]', space=smem, size = 0x4, offset = 0x4, fixed_abs, tag = 'smem constant byte address 0x4 - core index']
  #allocation1 [shape = 'u32[144,128]{1,0:T(1,128)}', space=vmem, size = 0x12000, scoped, tag = 'internal scratch']
  #allocation2 [shape = 'bf16[2,128,128]{2,1,0:T(8,128)(2,1)}', space=vmem, size = 0x10000, scoped, tag = 'scratch operand']
  #allocation3 [shape = 's32[2]{0}', space=sflag, size = 0x8, scoped, tag = 'scratch operand']
  #allocation10 [shape = 's32[]', space=sflag, size = 0x4, offset = 0, fixed_abs, tag = 'sflag constant byte address 0x0 - dummy sync flag']
  #allocation11 [shape = 's32[]', space=sflag, size = 0x4, offset = 0, fixed_abs, tag = 'sflag constant byte address 0x0 - dummy sync flag']
  #allocation12 [shape = 'u32[]', space=smem, size = 0x4, offset = 0x44, fixed_abs, tag = 'smem constant byte address 0x44 - assertion arg 0']
  #allocation13 [shape = 'u32[]', space=smem, size = 0x4, offset = 0x48, fixed_abs, tag = 'smem constant byte address 0x48 - assertion arg 1']
  #allocation14 [shape = 's32[]', space=sflag, size = 0x4, offset = 0, fixed_abs, tag = 'sflag constant byte address 0x0 - dummy sync flag']
  #allocation15 [shape = 's32[]', space=sflag, size = 0x4, offset = 0, fixed_abs, tag = 'sflag constant byte address 0x0 - dummy sync flag']
  #allocation16 [shape = 's32[]', space=sflag, size = 0x4, offset = 0, fixed_abs, tag = 'sflag constant byte address 0x0 - dummy sync flag']
  #allocation17 [shape = 's32[]', space=sflag, size = 0x4, offset = 0, fixed_abs, tag = 'sflag constant byte address 0x0 - dummy sync flag']
  #allocation18 [shape = 's32[]', space=sflag, size = 0x4, offset = 0, fixed_abs, tag = 'sflag constant byte address 0x0 - dummy sync flag']
  #allocation19 [shape = 's32[]', space=sflag, size = 0x4, offset = 0, fixed_abs, tag = 'sflag constant byte address 0x0 - dummy sync flag']
  #allocation20 [shape = 's32[]', space=sflag, size = 0x4, offset = 0, fixed_abs, tag = 'sflag constant byte address 0x0 - dummy sync flag']
  #allocation21 [shape = 's32[]', space=sflag, size = 0x4, offset = 0, fixed_abs, tag = 'sflag constant byte address 0x0 - dummy sync flag']
  #allocation22 [shape = 's32[]', space=sflag, size = 0x4, offset = 0, fixed_abs, tag = 'sflag constant byte address 0x0 - dummy sync flag']
  #allocation23 [shape = 's32[]', space=sflag, size = 0x4, offset = 0, fixed_abs, tag = 'sflag constant byte address 0x0 - dummy sync flag']
  %s0 = inlined_call_operand.hbm [shape: f32[8,128], index: 0, kind: input, shape index: {}]
  %s1 = inlined_call_operand.hbm [shape: bf16[6,128,128], index: 1, kind: input, shape index: {}]
  %s2 = inlined_call_operand.hbm [shape: f32[8,128], index: 2, kind: input, shape index: {}]
  %s3 = inlined_call_operand.hbm [shape: f32[8,128], index: 3, kind: output, shape index: {}]
  %s4 = sld [smem:[#allocation0]]
  $region50: #{tpu_custom_call.1} parent=0
    _
  %s6 = ssub.s32 1, %s4
  %s7 = scalar_select 0, %s6, %s4
  $region1: #{tpu_custom_call.1} parent=0
    #allocation4 [shape = 'u8[4096]{0}', space=vmem, size = 0x1000, scoped, tag = 'input window, operand 0, single buffered']
    #allocation5 [shape = 's32[1]{0}', space=sflag, size = 0x4, scoped, tag = 'scoped memory for tpu_custom_call.1']
    #allocation6 [shape = 's32[1]{0}', space=sflag, size = 0x4, scoped, tag = 'scoped memory for tpu_custom_call.1']
    #allocation7 [shape = 'u8[4096]{0}', space=vmem, size = 0x1000, scoped, tag = 'input window, operand 2, single buffered']
    #allocation8 [shape = 's32[1]{0}', space=sflag, size = 0x4, scoped, tag = 'scoped memory for tpu_custom_call.1']
    #allocation9 [shape = 'u8[4096]{0}', space=vmem, size = 0x1000, scoped, tag = 'output window, operand 0, single buffered']
    %8 = vsyncpa [#allocation5], 0
    %9 = vsyncpa [#allocation8], 0
    %10 = vsyncpa [#allocation6], 0
    // Predicated region
    $region2: #{tpu_custom_call.1} parent=1 // pred_check
      _
    $region3: #{tpu_custom_call.1} parent=1 // pred_check_branch
      %12 = sbr.rel (0) target = $region5
    $region4: #{tpu_custom_call.1} parent=1 // pred_region
      %s14 = ssub.s32 128, 128
      %15 = vsyncadd [#allocation5], %s14
      %s17 = sshll.u32 [#allocation4], 4
      %s18 = int_to_ptr.vmem [resolvable:$true] %s17
      %20 = dma.hbm_to_vmem [thread:$0]  %s0, 128, %s18, [#allocation5]
    $region5: #{tpu_custom_call.1} parent=1 // pred_fallthru
      _
    // Predicated region
    $region6: #{tpu_custom_call.1} parent=1 // pred_check
      _
    $region7: #{tpu_custom_call.1} parent=1 // pred_check_branch
      %22 = sbr.rel (0) target = $region9
    $region8: #{tpu_custom_call.1} parent=1 // pred_region
      %s24 = ssub.s32 128, 128
      %25 = vsyncadd [#allocation8], %s24
      %s27 = sshll.u32 [#allocation7], 4
      %s28 = int_to_ptr.vmem [resolvable:$true] %s27
      %30 = dma.hbm_to_vmem [thread:$0]  %s2, 128, %s28, [#allocation8]
    $region9: #{tpu_custom_call.1} parent=1 // pred_fallthru
      _
    // Predicated region
    $region10: #{tpu_custom_call.1} parent=1 // pred_check
      _
    $region11: #{tpu_custom_call.1} parent=1 // pred_check_branch
      %32 = sbr.rel (0) target = $region13
    $region12: #{tpu_custom_call.1} parent=1 // pred_region
      %33 = dma.done [#allocation5], 128
    $region13: #{tpu_custom_call.1} parent=1 // pred_fallthru
      _
    // Predicated region
    $region14: #{tpu_custom_call.1} parent=1 // pred_check
      _
    $region15: #{tpu_custom_call.1} parent=1 // pred_check_branch
      %35 = sbr.rel (0) target = $region17
    $region16: #{tpu_custom_call.1} parent=1 // pred_region
      %36 = dma.done [#allocation8], 128
    $region17: #{tpu_custom_call.1} parent=1 // pred_fallthru
      _
    // Predicated region
    $region18: #{tpu_custom_call.1} parent=1 // pred_check
      _
    $region19: #{tpu_custom_call.1} parent=1 // pred_check_branch
      %39 = sbr.rel target = $region21
    $region20: #{tpu_custom_call.1} parent=1 // pred_region
      %40 = sst [smem:[#allocation12]] [#allocation11]
      %41 = sst [smem:[#allocation13]] [#allocation10]
    $region21: #{tpu_custom_call.1} parent=1 // pred_fallthru
      _
    %43 = shalt.err (0)
    %s45 = sshll.u32 [#allocation2], 4
    %s46 = int_to_ptr.vmem [resolvable:$true] %s45
    %48 = dma.hbm_to_vmem [thread:$0]  %s1, 1024, %s46, [#allocation3]
    %v49 = vld [vmem:[#allocation7] sm:$0xff]
    %v50 = vld [vmem:[#allocation4] sm:$0xff]
    %s51 = smul.u32 4, 16
    %s52 = smul.u32 %s51, 1
    %s53 = sshll.u32 %s52, 4
    %54 = dma.done [#allocation3], %s53
    %s55 = scalar_lea.hbm %s1, 1024
    %s56 = scalar_lea.vmem [#allocation2], 64
    %s57 = scalar_lea.sflag [#allocation3], 1
    // Predicated region
    $region22: #{tpu_custom_call.1} parent=1 // pred_check
      _
    $region23: #{tpu_custom_call.1} parent=1 // pred_check_branch
      %59 = sbr.rel target = $region25
    $region24: #{tpu_custom_call.1} parent=1 // pred_region
      %60 = sst [smem:[#allocation12]] [#allocation15]
      %61 = sst [smem:[#allocation13]] [#allocation14]
    $region25: #{tpu_custom_call.1} parent=1 // pred_fallthru
      _
    %63 = shalt.err (0)
    %s65 = sshll.u32 %s56, 4
    %s66 = int_to_ptr.vmem [resolvable:$true] %s65
    %68 = dma.hbm_to_vmem [thread:$0]  %s55, 1024, %s66, %s57
    %v69 = vpack.c.bf16 %v50, %v50
    %v70 = vld [vmem:[#allocation2] sm:$0xf]
    %v71 = vld [vmem:[#allocation2 + $0x4] sm:$0xf]
    %v72 = vld [vmem:[#allocation2 + $0x8] sm:$0xf]
    %v73 = vld [vmem:[#allocation2 + $0xc] sm:$0xf]
    %v74 = vld [vmem:[#allocation2 + $0x10] sm:$0xf]
    %v75 = vld [vmem:[#allocation2 + $0x14] sm:$0xf]
    %v76 = vld [vmem:[#allocation2 + $0x18] sm:$0xf]
    %v77 = vld [vmem:[#allocation2 + $0x1c] sm:$0xf]
    %v78 = vld [vmem:[#allocation2 + $0x20] sm:$0xf]
    %v79 = vld [vmem:[#allocation2 + $0x24] sm:$0xf]
    %v80 = vld [vmem:[#allocation2 + $0x28] sm:$0xf]
    %v81 = vld [vmem:[#allocation2 + $0x2c] sm:$0xf]
    %v82 = vld [vmem:[#allocation2 + $0x30] sm:$0xf]
    %v83 = vld [vmem:[#allocation2 + $0x34] sm:$0xf]
    %v84 = vld [vmem:[#allocation2 + $0x38] sm:$0xf]
    %v85 = vld [vmem:[#allocation2 + $0x3c] sm:$0xf]
    %v86 = vlaneseq
    %v87 = vshrl.u32 %v86, 7
    %v88 = vsub.s32 0, %v87
    %v89 = vrot.slane %v49, %v88
    %v106 = vunpack.c.l.b16 %v70
    %v107 = vunpack.c.l.b16 %v71
    %v108 = vunpack.c.l.b16 %v72
    %v109 = vunpack.c.l.b16 %v73
    %v110 = vunpack.c.l.b16 %v74
    %v111 = vunpack.c.l.b16 %v75
    %v112 = vunpack.c.l.b16 %v76
    %v113 = vunpack.c.l.b16 %v77
    %v114 = vunpack.c.l.b16 %v78
    %v115 = vunpack.c.l.b16 %v79
    %v116 = vunpack.c.l.b16 %v80
    %v117 = vunpack.c.l.b16 %v81
    %v118 = vunpack.c.l.b16 %v82
    %v119 = vunpack.c.l.b16 %v83
    %v120 = vunpack.c.l.b16 %v84
    %v121 = vunpack.c.l.b16 %v85
    %v122 = vpack.c.b16 %v107, %v106
    %v123 = vpack.c.b16 %v109, %v108
    %v124 = vpack.c.b16 %v111, %v110
    %v125 = vpack.c.b16 %v113, %v112
    %v126 = vpack.c.b16 %v115, %v114
    %v127 = vpack.c.b16 %v117, %v116
    %v128 = vpack.c.b16 %v119, %v118
    %v129 = vpack.c.b16 %v121, %v120
    %138 = vmatprep.subr.bf16.mxu0 0
    %139 = vmatpush1.bf16.msra.mxu0 %v129
    %140 = vmatprep.subr.bf16.mxu0 0
    %141 = vmatpush1.bf16.msra.mxu0 %v128
    %142 = vmatprep.subr.bf16.mxu0 0
    %143 = vmatpush1.bf16.msra.mxu0 %v127
    %144 = vmatprep.subr.bf16.mxu0 0
    %145 = vmatpush1.bf16.msra.mxu0 %v126
    %146 = vmatprep.subr.bf16.mxu0 0
    %147 = vmatpush1.bf16.msra.mxu0 %v125
    %148 = vmatprep.subr.bf16.mxu0 0
    %149 = vmatpush1.bf16.msra.mxu0 %v124
    %150 = vmatprep.subr.bf16.mxu0 0
    %151 = vmatpush1.bf16.msra.mxu0 %v123
    %152 = vmatprep.subr.bf16.mxu0 0
    %153 = vmatpush1.bf16.msra.mxu0 %v122
    %154 = vmatprep.subr.bf16.mxu0 0
    %155 = vmatpush2.bf16.msra.mxu0 0
    %156 = vmatprep.subr.bf16.mxu0 0
    %157 = vmatpush2.bf16.msra.mxu0 0
    %158 = vmatprep.subr.bf16.mxu0 0
    %159 = vmatpush2.bf16.msra.mxu0 0
    %160 = vmatprep.subr.bf16.mxu0 0
    %161 = vmatpush2.bf16.msra.mxu0 0
    %162 = vmatprep.subr.bf16.mxu0 0
    %163 = vmatpush2.bf16.msra.mxu0 0
    %164 = vmatprep.subr.bf16.mxu0 0
    %165 = vmatpush2.bf16.msra.mxu0 0
    %166 = vmatprep.subr.bf16.mxu0 0
    %167 = vmatpush2.bf16.msra.mxu0 0
    %168 = vmatprep.subr.bf16.mxu0 0
    %169 = vmatpush2.bf16.msra.mxu0 0
    %170 = vmatprep.mubr.bf16.mxu0 0
    %171 = vmatmul.mubr.bf16.gmra.mxu0 %v69
    %v172 = vpop.f32.mrf.mxu0
    %v173 = vadd.f32 %v89, %v172
    %v174 = vpop.f32.mrf.mxu0
    %v175 = vpop.f32.mrf.mxu0
    %v176 = vpop.f32.mrf.mxu0
    %177 = vdwg.mxu0
    %v178 = vmax.f32 %v173, 0.0
    %s179 = sshll.u32 %s52, 4
    %180 = dma.done %s57, %s179
    %s181 = scalar_lea.hbm %s1, 2048
    // Predicated region
    $region26: #{tpu_custom_call.1} parent=1 // pred_check
      _
    $region27: #{tpu_custom_call.1} parent=1 // pred_check_branch
      %183 = sbr.rel target = $region29
    $region28: #{tpu_custom_call.1} parent=1 // pred_region
      %184 = sst [smem:[#allocation12]] [#allocation17]
      %185 = sst [smem:[#allocation13]] [#allocation16]
    $region29: #{tpu_custom_call.1} parent=1 // pred_fallthru
      _
    %187 = shalt.err (0)
    %s189 = sshll.u32 [#allocation2], 4
    %s190 = int_to_ptr.vmem [resolvable:$true] %s189
    %192 = dma.hbm_to_vmem [thread:$0]  %s181, 1024, %s190, [#allocation3]
    %v193 = vpack.c.bf16 %v178, %v178
    %v194 = vld [vmem:[%s56] sm:$0xf]
    %v195 = vld [vmem:[%s56 + $0x4] sm:$0xf]
    %v196 = vld [vmem:[%s56 + $0x8] sm:$0xf]
    %v197 = vld [vmem:[%s56 + $0xc] sm:$0xf]
    %v198 = vld [vmem:[%s56 + $0x10] sm:$0xf]
    %v199 = vld [vmem:[%s56 + $0x14] sm:$0xf]
    %v200 = vld [vmem:[%s56 + $0x18] sm:$0xf]
    %v201 = vld [vmem:[%s56 + $0x1c] sm:$0xf]
    %v202 = vld [vmem:[%s56 + $0x20] sm:$0xf]
    %v203 = vld [vmem:[%s56 + $0x24] sm:$0xf]
    %v204 = vld [vmem:[%s56 + $0x28] sm:$0xf]
    %v205 = vld [vmem:[%s56 + $0x2c] sm:$0xf]
    %v206 = vld [vmem:[%s56 + $0x30] sm:$0xf]
    %v207 = vld [vmem:[%s56 + $0x34] sm:$0xf]
    %v208 = vld [vmem:[%s56 + $0x38] sm:$0xf]
    %v209 = vld [vmem:[%s56 + $0x3c] sm:$0xf]
    %v210 = vlaneseq
    %v211 = vshrl.u32 %v210, 7
    %v212 = vsub.s32 1, %v211
    %v213 = vrot.slane %v49, %v212
    %v230 = vunpack.c.l.b16 %v194
    %v231 = vunpack.c.l.b16 %v195
    %v232 = vunpack.c.l.b16 %v196
    %v233 = vunpack.c.l.b16 %v197
    %v234 = vunpack.c.l.b16 %v198
    %v235 = vunpack.c.l.b16 %v199
    %v236 = vunpack.c.l.b16 %v200
    %v237 = vunpack.c.l.b16 %v201
    %v238 = vunpack.c.l.b16 %v202
    %v239 = vunpack.c.l.b16 %v203
    %v240 = vunpack.c.l.b16 %v204
    %v241 = vunpack.c.l.b16 %v205
    %v242 = vunpack.c.l.b16 %v206
    %v243 = vunpack.c.l.b16 %v207
    %v244 = vunpack.c.l.b16 %v208
    %v245 = vunpack.c.l.b16 %v209
    %v246 = vpack.c.b16 %v231, %v230
    %v247 = vpack.c.b16 %v233, %v232
    %v248 = vpack.c.b16 %v235, %v234
    %v249 = vpack.c.b16 %v237, %v236
    %v250 = vpack.c.b16 %v239, %v238
    %v251 = vpack.c.b16 %v241, %v240
    %v252 = vpack.c.b16 %v243, %v242
    %v253 = vpack.c.b16 %v245, %v244
    %262 = vmatprep.subr.bf16.mxu0 0
    %263 = vmatpush1.bf16.msra.mxu0 %v253
    %264 = vmatprep.subr.bf16.mxu0 0
    %265 = vmatpush1.bf16.msra.mxu0 %v252
    %266 = vmatprep.subr.bf16.mxu0 0
    %267 = vmatpush1.bf16.msra.mxu0 %v251
    %268 = vmatprep.subr.bf16.mxu0 0
    %269 = vmatpush1.bf16.msra.mxu0 %v250
    %270 = vmatprep.subr.bf16.mxu0 0
    %271 = vmatpush1.bf16.msra.mxu0 %v249
    %272 = vmatprep.subr.bf16.mxu0 0
    %273 = vmatpush1.bf16.msra.mxu0 %v248
    %274 = vmatprep.subr.bf16.mxu0 0
    %275 = vmatpush1.bf16.msra.mxu0 %v247
    %276 = vmatprep.subr.bf16.mxu0 0
    %277 = vmatpush1.bf16.msra.mxu0 %v246
    %278 = vmatprep.subr.bf16.mxu0 0
    %279 = vmatpush2.bf16.msra.mxu0 0
    %280 = vmatprep.subr.bf16.mxu0 0
    %281 = vmatpush2.bf16.msra.mxu0 0
    %282 = vmatprep.subr.bf16.mxu0 0
    %283 = vmatpush2.bf16.msra.mxu0 0
    %284 = vmatprep.subr.bf16.mxu0 0
    %285 = vmatpush2.bf16.msra.mxu0 0
    %286 = vmatprep.subr.bf16.mxu0 0
    %287 = vmatpush2.bf16.msra.mxu0 0
    %288 = vmatprep.subr.bf16.mxu0 0
    %289 = vmatpush2.bf16.msra.mxu0 0
    %290 = vmatprep.subr.bf16.mxu0 0
    %291 = vmatpush2.bf16.msra.mxu0 0
    %292 = vmatprep.subr.bf16.mxu0 0
    %293 = vmatpush2.bf16.msra.mxu0 0
    %294 = vmatprep.mubr.bf16.mxu0 0
    %295 = vmatmul.mubr.bf16.gmra.mxu0 %v193
    %v296 = vpop.f32.mrf.mxu0
    %v297 = vadd.f32 %v213, %v296
    %v298 = vpop.f32.mrf.mxu0
    %v299 = vpop.f32.mrf.mxu0
    %v300 = vpop.f32.mrf.mxu0
    %301 = vdwg.mxu0
    %v302 = vmax.f32 %v297, 0.0
    %s303 = sshll.u32 %s52, 4
    %304 = dma.done [#allocation3], %s303
    %s305 = scalar_lea.hbm %s1, 3072
    // Predicated region
    $region30: #{tpu_custom_call.1} parent=1 // pred_check
      _
    $region31: #{tpu_custom_call.1} parent=1 // pred_check_branch
      %307 = sbr.rel target = $region33
    $region32: #{tpu_custom_call.1} parent=1 // pred_region
      %308 = sst [smem:[#allocation12]] [#allocation19]
      %309 = sst [smem:[#allocation13]] [#allocation18]
    $region33: #{tpu_custom_call.1} parent=1 // pred_fallthru
      _
    %311 = shalt.err (0)
    %s313 = sshll.u32 %s56, 4
    %s314 = int_to_ptr.vmem [resolvable:$true] %s313
    %316 = dma.hbm_to_vmem [thread:$0]  %s305, 1024, %s314, %s57
    %v317 = vpack.c.bf16 %v302, %v302
    %v318 = vld [vmem:[#allocation2] sm:$0xf]
    %v319 = vld [vmem:[#allocation2 + $0x4] sm:$0xf]
    %v320 = vld [vmem:[#allocation2 + $0x8] sm:$0xf]
    %v321 = vld [vmem:[#allocation2 + $0xc] sm:$0xf]
    %v322 = vld [vmem:[#allocation2 + $0x10] sm:$0xf]
    %v323 = vld [vmem:[#allocation2 + $0x14] sm:$0xf]
    %v324 = vld [vmem:[#allocation2 + $0x18] sm:$0xf]
    %v325 = vld [vmem:[#allocation2 + $0x1c] sm:$0xf]
    %v326 = vld [vmem:[#allocation2 + $0x20] sm:$0xf]
    %v327 = vld [vmem:[#allocation2 + $0x24] sm:$0xf]
    %v328 = vld [vmem:[#allocation2 + $0x28] sm:$0xf]
    %v329 = vld [vmem:[#allocation2 + $0x2c] sm:$0xf]
    %v330 = vld [vmem:[#allocation2 + $0x30] sm:$0xf]
    %v331 = vld [vmem:[#allocation2 + $0x34] sm:$0xf]
    %v332 = vld [vmem:[#allocation2 + $0x38] sm:$0xf]
    %v333 = vld [vmem:[#allocation2 + $0x3c] sm:$0xf]
    %v334 = vlaneseq
    %v335 = vshrl.u32 %v334, 7
    %v336 = vsub.s32 2, %v335
    %v337 = vrot.slane %v49, %v336
    %v354 = vunpack.c.l.b16 %v318
    %v355 = vunpack.c.l.b16 %v319
    %v356 = vunpack.c.l.b16 %v320
    %v357 = vunpack.c.l.b16 %v321
    %v358 = vunpack.c.l.b16 %v322
    %v359 = vunpack.c.l.b16 %v323
    %v360 = vunpack.c.l.b16 %v324
    %v361 = vunpack.c.l.b16 %v325
    %v362 = vunpack.c.l.b16 %v326
    %v363 = vunpack.c.l.b16 %v327
    %v364 = vunpack.c.l.b16 %v328
    %v365 = vunpack.c.l.b16 %v329
    %v366 = vunpack.c.l.b16 %v330
    %v367 = vunpack.c.l.b16 %v331
    %v368 = vunpack.c.l.b16 %v332
    %v369 = vunpack.c.l.b16 %v333
    %v370 = vpack.c.b16 %v355, %v354
    %v371 = vpack.c.b16 %v357, %v356
    %v372 = vpack.c.b16 %v359, %v358
    %v373 = vpack.c.b16 %v361, %v360
    %v374 = vpack.c.b16 %v363, %v362
    %v375 = vpack.c.b16 %v365, %v364
    %v376 = vpack.c.b16 %v367, %v366
    %v377 = vpack.c.b16 %v369, %v368
    %386 = vmatprep.subr.bf16.mxu0 0
    %387 = vmatpush1.bf16.msra.mxu0 %v377
    %388 = vmatprep.subr.bf16.mxu0 0
    %389 = vmatpush1.bf16.msra.mxu0 %v376
    %390 = vmatprep.subr.bf16.mxu0 0
    %391 = vmatpush1.bf16.msra.mxu0 %v375
    %392 = vmatprep.subr.bf16.mxu0 0
    %393 = vmatpush1.bf16.msra.mxu0 %v374
    %394 = vmatprep.subr.bf16.mxu0 0
    %395 = vmatpush1.bf16.msra.mxu0 %v373
    %396 = vmatprep.subr.bf16.mxu0 0
    %397 = vmatpush1.bf16.msra.mxu0 %v372
    %398 = vmatprep.subr.bf16.mxu0 0
    %399 = vmatpush1.bf16.msra.mxu0 %v371
    %400 = vmatprep.subr.bf16.mxu0 0
    %401 = vmatpush1.bf16.msra.mxu0 %v370
    %402 = vmatprep.subr.bf16.mxu0 0
    %403 = vmatpush2.bf16.msra.mxu0 0
    %404 = vmatprep.subr.bf16.mxu0 0
    %405 = vmatpush2.bf16.msra.mxu0 0
    %406 = vmatprep.subr.bf16.mxu0 0
    %407 = vmatpush2.bf16.msra.mxu0 0
    %408 = vmatprep.subr.bf16.mxu0 0
    %409 = vmatpush2.bf16.msra.mxu0 0
    %410 = vmatprep.subr.bf16.mxu0 0
    %411 = vmatpush2.bf16.msra.mxu0 0
    %412 = vmatprep.subr.bf16.mxu0 0
    %413 = vmatpush2.bf16.msra.mxu0 0
    %414 = vmatprep.subr.bf16.mxu0 0
    %415 = vmatpush2.bf16.msra.mxu0 0
    %416 = vmatprep.subr.bf16.mxu0 0
    %417 = vmatpush2.bf16.msra.mxu0 0
    %418 = vmatprep.mubr.bf16.mxu0 0
    %419 = vmatmul.mubr.bf16.gmra.mxu0 %v317
    %v420 = vpop.f32.mrf.mxu0
    %v421 = vadd.f32 %v337, %v420
    %v422 = vpop.f32.mrf.mxu0
    %v423 = vpop.f32.mrf.mxu0
    %v424 = vpop.f32.mrf.mxu0
    %425 = vdwg.mxu0
    %v426 = vmax.f32 %v421, 0.0
    %s427 = sshll.u32 %s52, 4
    %428 = dma.done %s57, %s427
    %s429 = scalar_lea.hbm %s1, 4096
    // Predicated region
    $region34: #{tpu_custom_call.1} parent=1 // pred_check
      _
    $region35: #{tpu_custom_call.1} parent=1 // pred_check_branch
      %431 = sbr.rel target = $region37
    $region36: #{tpu_custom_call.1} parent=1 // pred_region
      %432 = sst [smem:[#allocation12]] [#allocation21]
      %433 = sst [smem:[#allocation13]] [#allocation20]
    $region37: #{tpu_custom_call.1} parent=1 // pred_fallthru
      _
    %435 = shalt.err (0)
    %s437 = sshll.u32 [#allocation2], 4
    %s438 = int_to_ptr.vmem [resolvable:$true] %s437
    %440 = dma.hbm_to_vmem [thread:$0]  %s429, 1024, %s438, [#allocation3]
    %v441 = vpack.c.bf16 %v426, %v426
    %v442 = vld [vmem:[%s56] sm:$0xf]
    %v443 = vld [vmem:[%s56 + $0x4] sm:$0xf]
    %v444 = vld [vmem:[%s56 + $0x8] sm:$0xf]
    %v445 = vld [vmem:[%s56 + $0xc] sm:$0xf]
    %v446 = vld [vmem:[%s56 + $0x10] sm:$0xf]
    %v447 = vld [vmem:[%s56 + $0x14] sm:$0xf]
    %v448 = vld [vmem:[%s56 + $0x18] sm:$0xf]
    %v449 = vld [vmem:[%s56 + $0x1c] sm:$0xf]
    %v450 = vld [vmem:[%s56 + $0x20] sm:$0xf]
    %v451 = vld [vmem:[%s56 + $0x24] sm:$0xf]
    %v452 = vld [vmem:[%s56 + $0x28] sm:$0xf]
    %v453 = vld [vmem:[%s56 + $0x2c] sm:$0xf]
    %v454 = vld [vmem:[%s56 + $0x30] sm:$0xf]
    %v455 = vld [vmem:[%s56 + $0x34] sm:$0xf]
    %v456 = vld [vmem:[%s56 + $0x38] sm:$0xf]
    %v457 = vld [vmem:[%s56 + $0x3c] sm:$0xf]
    %v458 = vlaneseq
    %v459 = vshrl.u32 %v458, 7
    %v460 = vsub.s32 3, %v459
    %v461 = vrot.slane %v49, %v460
    %v478 = vunpack.c.l.b16 %v442
    %v479 = vunpack.c.l.b16 %v443
    %v480 = vunpack.c.l.b16 %v444
    %v481 = vunpack.c.l.b16 %v445
    %v482 = vunpack.c.l.b16 %v446
    %v483 = vunpack.c.l.b16 %v447
    %v484 = vunpack.c.l.b16 %v448
    %v485 = vunpack.c.l.b16 %v449
    %v486 = vunpack.c.l.b16 %v450
    %v487 = vunpack.c.l.b16 %v451
    %v488 = vunpack.c.l.b16 %v452
    %v489 = vunpack.c.l.b16 %v453
    %v490 = vunpack.c.l.b16 %v454
    %v491 = vunpack.c.l.b16 %v455
    %v492 = vunpack.c.l.b16 %v456
    %v493 = vunpack.c.l.b16 %v457
    %v494 = vpack.c.b16 %v479, %v478
    %v495 = vpack.c.b16 %v481, %v480
    %v496 = vpack.c.b16 %v483, %v482
    %v497 = vpack.c.b16 %v485, %v484
    %v498 = vpack.c.b16 %v487, %v486
    %v499 = vpack.c.b16 %v489, %v488
    %v500 = vpack.c.b16 %v491, %v490
    %v501 = vpack.c.b16 %v493, %v492
    %510 = vmatprep.subr.bf16.mxu0 0
    %511 = vmatpush1.bf16.msra.mxu0 %v501
    %512 = vmatprep.subr.bf16.mxu0 0
    %513 = vmatpush1.bf16.msra.mxu0 %v500
    %514 = vmatprep.subr.bf16.mxu0 0
    %515 = vmatpush1.bf16.msra.mxu0 %v499
    %516 = vmatprep.subr.bf16.mxu0 0
    %517 = vmatpush1.bf16.msra.mxu0 %v498
    %518 = vmatprep.subr.bf16.mxu0 0
    %519 = vmatpush1.bf16.msra.mxu0 %v497
    %520 = vmatprep.subr.bf16.mxu0 0
    %521 = vmatpush1.bf16.msra.mxu0 %v496
    %522 = vmatprep.subr.bf16.mxu0 0
    %523 = vmatpush1.bf16.msra.mxu0 %v495
    %524 = vmatprep.subr.bf16.mxu0 0
    %525 = vmatpush1.bf16.msra.mxu0 %v494
    %526 = vmatprep.subr.bf16.mxu0 0
    %527 = vmatpush2.bf16.msra.mxu0 0
    %528 = vmatprep.subr.bf16.mxu0 0
    %529 = vmatpush2.bf16.msra.mxu0 0
    %530 = vmatprep.subr.bf16.mxu0 0
    %531 = vmatpush2.bf16.msra.mxu0 0
    %532 = vmatprep.subr.bf16.mxu0 0
    %533 = vmatpush2.bf16.msra.mxu0 0
    %534 = vmatprep.subr.bf16.mxu0 0
    %535 = vmatpush2.bf16.msra.mxu0 0
    %536 = vmatprep.subr.bf16.mxu0 0
    %537 = vmatpush2.bf16.msra.mxu0 0
    %538 = vmatprep.subr.bf16.mxu0 0
    %539 = vmatpush2.bf16.msra.mxu0 0
    %540 = vmatprep.subr.bf16.mxu0 0
    %541 = vmatpush2.bf16.msra.mxu0 0
    %542 = vmatprep.mubr.bf16.mxu0 0
    %543 = vmatmul.mubr.bf16.gmra.mxu0 %v441
    %v544 = vpop.f32.mrf.mxu0
    %v545 = vadd.f32 %v461, %v544
    %v546 = vpop.f32.mrf.mxu0
    %v547 = vpop.f32.mrf.mxu0
    %v548 = vpop.f32.mrf.mxu0
    %549 = vdwg.mxu0
    %v550 = vmax.f32 %v545, 0.0
    %s551 = sshll.u32 %s52, 4
    %552 = dma.done [#allocation3], %s551
    %s553 = scalar_lea.hbm %s1, 5120
    // Predicated region
    $region38: #{tpu_custom_call.1} parent=1 // pred_check
      _
    $region39: #{tpu_custom_call.1} parent=1 // pred_check_branch
      %555 = sbr.rel target = $region41
    $region40: #{tpu_custom_call.1} parent=1 // pred_region
      %556 = sst [smem:[#allocation12]] [#allocation23]
      %557 = sst [smem:[#allocation13]] [#allocation22]
    $region41: #{tpu_custom_call.1} parent=1 // pred_fallthru
      _
    %559 = shalt.err (0)
    %s561 = sshll.u32 %s56, 4
    %s562 = int_to_ptr.vmem [resolvable:$true] %s561
    %564 = dma.hbm_to_vmem [thread:$0]  %s553, 1024, %s562, %s57
    %v565 = vpack.c.bf16 %v550, %v550
    %v566 = vld [vmem:[#allocation2] sm:$0xf]
    %v567 = vld [vmem:[#allocation2 + $0x4] sm:$0xf]
    %v568 = vld [vmem:[#allocation2 + $0x8] sm:$0xf]
    %v569 = vld [vmem:[#allocation2 + $0xc] sm:$0xf]
    %v570 = vld [vmem:[#allocation2 + $0x10] sm:$0xf]
    %v571 = vld [vmem:[#allocation2 + $0x14] sm:$0xf]
    %v572 = vld [vmem:[#allocation2 + $0x18] sm:$0xf]
    %v573 = vld [vmem:[#allocation2 + $0x1c] sm:$0xf]
    %v574 = vld [vmem:[#allocation2 + $0x20] sm:$0xf]
    %v575 = vld [vmem:[#allocation2 + $0x24] sm:$0xf]
    %v576 = vld [vmem:[#allocation2 + $0x28] sm:$0xf]
    %v577 = vld [vmem:[#allocation2 + $0x2c] sm:$0xf]
    %v578 = vld [vmem:[#allocation2 + $0x30] sm:$0xf]
    %v579 = vld [vmem:[#allocation2 + $0x34] sm:$0xf]
    %v580 = vld [vmem:[#allocation2 + $0x38] sm:$0xf]
    %v581 = vld [vmem:[#allocation2 + $0x3c] sm:$0xf]
    %v582 = vlaneseq
    %v583 = vshrl.u32 %v582, 7
    %v584 = vsub.s32 4, %v583
    %v585 = vrot.slane %v49, %v584
    %v602 = vunpack.c.l.b16 %v566
    %v603 = vunpack.c.l.b16 %v567
    %v604 = vunpack.c.l.b16 %v568
    %v605 = vunpack.c.l.b16 %v569
    %v606 = vunpack.c.l.b16 %v570
    %v607 = vunpack.c.l.b16 %v571
    %v608 = vunpack.c.l.b16 %v572
    %v609 = vunpack.c.l.b16 %v573
    %v610 = vunpack.c.l.b16 %v574
    %v611 = vunpack.c.l.b16 %v575
    %v612 = vunpack.c.l.b16 %v576
    %v613 = vunpack.c.l.b16 %v577
    %v614 = vunpack.c.l.b16 %v578
    %v615 = vunpack.c.l.b16 %v579
    %v616 = vunpack.c.l.b16 %v580
    %v617 = vunpack.c.l.b16 %v581
    %v618 = vpack.c.b16 %v603, %v602
    %v619 = vpack.c.b16 %v605, %v604
    %v620 = vpack.c.b16 %v607, %v606
    %v621 = vpack.c.b16 %v609, %v608
    %v622 = vpack.c.b16 %v611, %v610
    %v623 = vpack.c.b16 %v613, %v612
    %v624 = vpack.c.b16 %v615, %v614
    %v625 = vpack.c.b16 %v617, %v616
    %634 = vmatprep.subr.bf16.mxu0 0
    %635 = vmatpush1.bf16.msra.mxu0 %v625
    %636 = vmatprep.subr.bf16.mxu0 0
    %637 = vmatpush1.bf16.msra.mxu0 %v624
    %638 = vmatprep.subr.bf16.mxu0 0
    %639 = vmatpush1.bf16.msra.mxu0 %v623
    %640 = vmatprep.subr.bf16.mxu0 0
    %641 = vmatpush1.bf16.msra.mxu0 %v622
    %642 = vmatprep.subr.bf16.mxu0 0
    %643 = vmatpush1.bf16.msra.mxu0 %v621
    %644 = vmatprep.subr.bf16.mxu0 0
    %645 = vmatpush1.bf16.msra.mxu0 %v620
    %646 = vmatprep.subr.bf16.mxu0 0
    %647 = vmatpush1.bf16.msra.mxu0 %v619
    %648 = vmatprep.subr.bf16.mxu0 0
    %649 = vmatpush1.bf16.msra.mxu0 %v618
    %650 = vmatprep.subr.bf16.mxu0 0
    %651 = vmatpush2.bf16.msra.mxu0 0
    %652 = vmatprep.subr.bf16.mxu0 0
    %653 = vmatpush2.bf16.msra.mxu0 0
    %654 = vmatprep.subr.bf16.mxu0 0
    %655 = vmatpush2.bf16.msra.mxu0 0
    %656 = vmatprep.subr.bf16.mxu0 0
    %657 = vmatpush2.bf16.msra.mxu0 0
    %658 = vmatprep.subr.bf16.mxu0 0
    %659 = vmatpush2.bf16.msra.mxu0 0
    %660 = vmatprep.subr.bf16.mxu0 0
    %661 = vmatpush2.bf16.msra.mxu0 0
    %662 = vmatprep.subr.bf16.mxu0 0
    %663 = vmatpush2.bf16.msra.mxu0 0
    %664 = vmatprep.subr.bf16.mxu0 0
    %665 = vmatpush2.bf16.msra.mxu0 0
    %666 = vmatprep.mubr.bf16.mxu0 0
    %667 = vmatmul.mubr.bf16.gmra.mxu0 %v565
    %v668 = vpop.f32.mrf.mxu0
    %v669 = vadd.f32 %v585, %v668
    %v670 = vpop.f32.mrf.mxu0
    %v671 = vpop.f32.mrf.mxu0
    %v672 = vpop.f32.mrf.mxu0
    %673 = vdwg.mxu0
    %v674 = vmax.f32 %v669, 0.0
    %s675 = sshll.u32 %s52, 4
    %676 = dma.done %s57, %s675
    %v677 = vpack.c.bf16 %v674, %v674
    %v678 = vld [vmem:[%s56] sm:$0xf]
    %v679 = vld [vmem:[%s56 + $0x4] sm:$0xf]
    %v680 = vld [vmem:[%s56 + $0x8] sm:$0xf]
    %v681 = vld [vmem:[%s56 + $0xc] sm:$0xf]
    %v682 = vld [vmem:[%s56 + $0x10] sm:$0xf]
    %v683 = vld [vmem:[%s56 + $0x14] sm:$0xf]
    %v684 = vld [vmem:[%s56 + $0x18] sm:$0xf]
    %v685 = vld [vmem:[%s56 + $0x1c] sm:$0xf]
    %v686 = vld [vmem:[%s56 + $0x20] sm:$0xf]
    %v687 = vld [vmem:[%s56 + $0x24] sm:$0xf]
    %v688 = vld [vmem:[%s56 + $0x28] sm:$0xf]
    %v689 = vld [vmem:[%s56 + $0x2c] sm:$0xf]
    %v690 = vld [vmem:[%s56 + $0x30] sm:$0xf]
    %v691 = vld [vmem:[%s56 + $0x34] sm:$0xf]
    %v692 = vld [vmem:[%s56 + $0x38] sm:$0xf]
    %v693 = vld [vmem:[%s56 + $0x3c] sm:$0xf]
    %v694 = vlaneseq
    %v695 = vshrl.u32 %v694, 7
    %v696 = vsub.s32 5, %v695
    %v697 = vrot.slane %v49, %v696
    %v714 = vunpack.c.l.b16 %v678
    %v715 = vunpack.c.l.b16 %v679
    %v716 = vunpack.c.l.b16 %v680
    %v717 = vunpack.c.l.b16 %v681
    %v718 = vunpack.c.l.b16 %v682
    %v719 = vunpack.c.l.b16 %v683
    %v720 = vunpack.c.l.b16 %v684
    %v721 = vunpack.c.l.b16 %v685
    %v722 = vunpack.c.l.b16 %v686
    %v723 = vunpack.c.l.b16 %v687
    %v724 = vunpack.c.l.b16 %v688
    %v725 = vunpack.c.l.b16 %v689
    %v726 = vunpack.c.l.b16 %v690
    %v727 = vunpack.c.l.b16 %v691
    %v728 = vunpack.c.l.b16 %v692
    %v729 = vunpack.c.l.b16 %v693
    %v730 = vpack.c.b16 %v715, %v714
    %v731 = vpack.c.b16 %v717, %v716
    %v732 = vpack.c.b16 %v719, %v718
    %v733 = vpack.c.b16 %v721, %v720
    %v734 = vpack.c.b16 %v723, %v722
    %v735 = vpack.c.b16 %v725, %v724
    %v736 = vpack.c.b16 %v727, %v726
    %v737 = vpack.c.b16 %v729, %v728
    %746 = vmatprep.subr.bf16.mxu0 0
    %747 = vmatpush1.bf16.msra.mxu0 %v737
    %748 = vmatprep.subr.bf16.mxu0 0
    %749 = vmatpush1.bf16.msra.mxu0 %v736
    %750 = vmatprep.subr.bf16.mxu0 0
    %751 = vmatpush1.bf16.msra.mxu0 %v735
    %752 = vmatprep.subr.bf16.mxu0 0
    %753 = vmatpush1.bf16.msra.mxu0 %v734
    %754 = vmatprep.subr.bf16.mxu0 0
    %755 = vmatpush1.bf16.msra.mxu0 %v733
    %756 = vmatprep.subr.bf16.mxu0 0
    %757 = vmatpush1.bf16.msra.mxu0 %v732
    %758 = vmatprep.subr.bf16.mxu0 0
    %759 = vmatpush1.bf16.msra.mxu0 %v731
    %760 = vmatprep.subr.bf16.mxu0 0
    %761 = vmatpush1.bf16.msra.mxu0 %v730
    %762 = vmatprep.subr.bf16.mxu0 0
    %763 = vmatpush2.bf16.msra.mxu0 0
    %764 = vmatprep.subr.bf16.mxu0 0
    %765 = vmatpush2.bf16.msra.mxu0 0
    %766 = vmatprep.subr.bf16.mxu0 0
    %767 = vmatpush2.bf16.msra.mxu0 0
    %768 = vmatprep.subr.bf16.mxu0 0
    %769 = vmatpush2.bf16.msra.mxu0 0
    %770 = vmatprep.subr.bf16.mxu0 0
    %771 = vmatpush2.bf16.msra.mxu0 0
    %772 = vmatprep.subr.bf16.mxu0 0
    %773 = vmatpush2.bf16.msra.mxu0 0
    %774 = vmatprep.subr.bf16.mxu0 0
    %775 = vmatpush2.bf16.msra.mxu0 0
    %776 = vmatprep.subr.bf16.mxu0 0
    %777 = vmatpush2.bf16.msra.mxu0 0
    %778 = vmatprep.mubr.bf16.mxu0 0
    %779 = vmatmul.mubr.bf16.gmra.mxu0 %v677
    %v780 = vpop.f32.mrf.mxu0
    %v781 = vadd.f32 %v697, %v780
    %v782 = vpop.f32.mrf.mxu0
    %v783 = vpop.f32.mrf.mxu0
    %v784 = vpop.f32.mrf.mxu0
    %785 = vdwg.mxu0
    %786 = vst [vmem:[#allocation9] sm:$0xff] %v781
    // Predicated region
    $region42: #{tpu_custom_call.1} parent=1 // pred_check
      _
    $region43: #{tpu_custom_call.1} parent=1 // pred_check_branch
      %788 = sbr.rel (0) target = $region45
    $region44: #{tpu_custom_call.1} parent=1 // pred_region
      %s790 = ssub.s32 128, 128
      %791 = vsyncadd [#allocation6], %s790
      %s793 = sshll.u32 [#allocation9], 4
      %s794 = int_to_ptr.vmem [resolvable:$true] %s793
      %796 = dma.vmem_to_hbm [thread:$0]  %s794, 128, %s3, [#allocation6]
    $region45: #{tpu_custom_call.1} parent=1 // pred_fallthru
      _
    // Predicated region
    $region46: #{tpu_custom_call.1} parent=1 // pred_check
      _
    $region47: #{tpu_custom_call.1} parent=1 // pred_check_branch
      %798 = sbr.rel (0) target = $region49
    $region48: #{tpu_custom_call.1} parent=1 // pred_region
      %799 = dma.done [#allocation6], 128
    $region49: #{tpu_custom_call.1} parent=1 // pred_fallthru
      _
    %800 = vsyncpa [#allocation5], 1
    %801 = vsyncpa [#allocation8], 1
    %802 = vsyncpa [#allocation6], 1
  %803 = vsyncmov [#allocation3]
  %s804 = vpop.sfrf %803
  %p805 = scmp.eq.s32.totalorder %s804, 0
  %p806 = pneg %p805
  %808 = shalt.err (%p806)
  %s809 = scalar_lea.sflag [#allocation3], 1
  %810 = vsyncmov %s809
  %s811 = vpop.sfrf %810
  %p812 = scmp.eq.s32.totalorder %s811, 0
  %p813 = pneg %p812
  %815 = shalt.err (%p813)

</llo_original>
